<compile_context>
chip_gen: v5e
topology: v5e:2x2
jax: 0.10.0
libtpu: 0.0.40
codegen_flags: <defaults>
</compile_context>

<pallas_src>
import math
from functools import partial

import jax
import jax.numpy as jnp
from jax import lax
from jax.experimental import pallas as pl
from jax.experimental.pallas import tpu as pltpu


def _layernorm(x, gamma, beta, eps=1e-6):
    mu = jnp.mean(x, axis=-1, keepdims=True)
    var = jnp.mean((x - mu) ** 2, axis=-1, keepdims=True)
    return (x - mu) * jax.lax.rsqrt(var + eps) * gamma + beta


# ------------------------- Pallas kernel: one encoder layer, one (batch, q-tile) ----

def encoder_layer_kernel(xT_ref, xq_ref, qh_ref, rel_ref,
                         wkT_ref, bk_ref, wvT_ref, bv_ref,
                         wo_ref, bo_ref,
                         g1_ref, be1_ref,
                         w1_ref, b1_ref, w2_ref, b2_ref,
                         g2_ref, be2_ref,
                         o_ref,
                         kT_scr, vT_scr,
                         *, num_heads, head_dim):
    f32 = jnp.float32
    bf16 = jnp.bfloat16
    dh = head_dim

    # K / V projections in transposed layout (heads live along the sublane axis, so
    # per-head slices below are cheap sublane slices, never lane relayouts).
    # Computed once per batch element (q-tile 0) into persistent VMEM scratch.
    @pl.when(pl.program_id(1) == 0)
    def _():
        xT = xT_ref[0]                                                           # (D, S) bf16
        kT_scr[...] = jnp.dot(wkT_ref[...], xT, preferred_element_type=f32) + bk_ref[...]
        vT_scr[...] = jnp.dot(wvT_ref[...], xT, preferred_element_type=f32) + bv_ref[...]

    kT = kT_scr[...]                  # (D, S) f32
    vT = vT_scr[...]                  # (D, S) f32

    qh_all = qh_ref[0]                # (H, TQ, dh) f32 - precomputed Q*(1/sqrt(dh)), head-split
    rel_all = rel_ref[0]              # (H, TQ, S)  f32 - rel-E term (pre-scaled) + rel bias

    TQ = qh_all.shape[1]
    D = kT.shape[0]

    attn = jnp.zeros((TQ, D), f32)
    for h in range(num_heads):        # static, unrolled; each iteration is MXU matmuls
        qh = qh_all[h].astype(bf16)                            # (TQ, dh)
        kTh = kT[h * dh:(h + 1) * dh, :].astype(bf16)          # (dh, S) sublane slice
        vTh = vT[h * dh:(h + 1) * dh, :].astype(bf16)          # (dh, S)

        # Q is pre-scaled, rel_all already carries the scaled rel-E term + rel bias.
        scores = jnp.dot(qh, kTh, preferred_element_type=f32) + rel_all[h]   # (TQ, S)

        # softmax over keys (f32 math; divide via EUP reciprocal)
        scores = scores - jnp.max(scores, axis=-1, keepdims=True)
        p = jnp.exp(scores)
        p = p * pl.reciprocal(jnp.sum(p, axis=-1, keepdims=True), approx=True)

        # ctx[q, f] = sum_s p[q, s] * v[s, f]   (v held transposed -> contract last dims)
        ctx = lax.dot_general(p.astype(bf16), vTh,
                              dimension_numbers=(((1,), (1,)), ((), ())),
                              preferred_element_type=f32)       # (TQ, dh)

        # Accumulate straight through this head's rows of Wo: no concat of heads,
        # single full-width (TQ, D) accumulator.
        attn = attn + jnp.dot(ctx.astype(bf16), wo_ref[pl.ds(h * dh, dh), :],
                              preferred_element_type=f32)

    attn = attn + bo_ref[...]                                   # bias once per tile

    # dropout1 (p=0.1) -> identity in eval mode
    x_rows = xq_ref[0]                                          # (TQ, D) f32 residual rows
    ff_in = _layernorm(x_rows + attn, g1_ref[...], be1_ref[...])

    h1 = jnp.maximum(
        jnp.dot(ff_in.astype(bf16), w1_ref[...], preferred_element_type=f32)
        + b1_ref[...], 0.0)
    ff_out = jnp.dot(h1.astype(bf16), w2_ref[...], preferred_element_type=f32) + b2_ref[...]

    # dropout2 (p=0.1) -> identity in eval mode
    out = _layernorm(ff_in + ff_out, g2_ref[...], be2_ref[...])
    o_ref[0] = out.astype(o_ref.dtype)


# ------------------------- wrapper: one ExtendedEncoderLayer -------------------------

def run_encoder_layer(x, relative_ids, p, num_heads, q_tile):
    B, S, D = x.shape
    H = num_heads
    assert D % H == 0, "d_model must be divisible by num_heads"
    dh = D // H                      # dh % 8 == 0 keeps per-head sublane slices tile-aligned
    assert S % q_tile == 0 and q_tile % 8 == 0
    F = p['w1'].shape[1]
    scale = 1.0 / math.sqrt(dh)
    f32, bf16 = jnp.float32, jnp.bfloat16

    # ---- glue computed with plain XLA (small, MXU-friendly) --------------------------
    # Q projection + head split; 1/sqrt(dh) folded into Q so the kernel never scales.
    q = x @ p['wq'] + p['bq']                                   # (B,S,D)
    qh = (q.reshape(B, S, H, dh).transpose(0, 2, 1, 3) * scale).astype(f32)  # (B,H,S,dh)

    # Shaw-style relative term: MXU einsum against the small (H, num_rel, dh) table,
    # then per-row column remap driven by relative_ids.  The relative bias is folded
    # into the same tensor.  O(B*H*S^2) and no VPU reduce inside the kernel.
    rel_logits = jnp.einsum('bhsd,hrd->bhsr', qh, p['rel_k'])   # (B,H,S,R) (pre-scaled via qh)
    rid = jnp.broadcast_to(relative_ids[None, None], (B, H, S, S))
    rel = jnp.take_along_axis(rel_logits, rid, axis=-1)         # (B,H,S,S)
    rel_bias = p['rel_b'][:, relative_ids]                      # (H,S,S)
    rel_pre = (rel + rel_bias[None]).astype(f32)                # (B,H,S,S)

    xT = jnp.transpose(x, (0, 2, 1)).astype(bf16)               # (B,D,S) bf16 for K/V proj

    # bf16 weights (f32 accumulation happens inside the kernel).
    wkT = p['wk'].T.astype(bf16)
    wvT = p['wv'].T.astype(bf16)
    wo = p['wo'].astype(bf16)
    w1 = p['w1'].astype(bf16)
    w2 = p['w2'].astype(bf16)
    bk_col = p['bk'].reshape(D, 1)
    bv_col = p['bv'].reshape(D, 1)

    nq = S // q_tile

    def const_spec(shape):
        n = len(shape)
        return pl.BlockSpec(shape, lambda b, qi, n=n: (0,) * n)

    in_specs = [
        pl.BlockSpec((1, D, S), lambda b, qi: (b, 0, 0)),               # xT (bf16)
        pl.BlockSpec((1, q_tile, D), lambda b, qi: (b, qi, 0)),         # x rows (residual)
        pl.BlockSpec((1, H, q_tile, dh), lambda b, qi: (b, 0, qi, 0)),  # q, head-split, pre-scaled
        pl.BlockSpec((1, H, q_tile, S), lambda b, qi: (b, 0, qi, 0)),   # rel scores (pre)
        const_spec((D, D)), const_spec((D, 1)),    # WkT, bk
        const_spec((D, D)), const_spec((D, 1)),    # WvT, bv
        const_spec((D, D)), const_spec((1, D)),    # Wo, bo
        const_spec((1, D)), const_spec((1, D)),    # norm1 gamma, beta
        const_spec((D, F)), const_spec((1, F)),    # ffn linear1
        const_spec((F, D)), const_spec((1, D)),    # ffn linear2
        const_spec((1, D)), const_spec((1, D)),    # norm2 gamma, beta
    ]
    out_spec = pl.BlockSpec((1, q_tile, D), lambda b, qi: (b, qi, 0))

    return pl.pallas_call(
        partial(encoder_layer_kernel, num_heads=H, head_dim=dh),
        out_shape=jax.ShapeDtypeStruct((B, S, D), f32),
        grid=(B, nq),
        in_specs=in_specs,
        out_specs=out_spec,
        scratch_shapes=[pltpu.VMEM((D, S), f32),   # K^T cache (per batch element)
                        pltpu.VMEM((D, S), f32)],  # V^T cache
        compiler_params=pltpu.CompilerParams(
            # q-tile axis is "arbitrary": K/V scratch written at qi==0 is reused by
            # later q-tiles of the same batch element.
            dimension_semantics=("parallel", "arbitrary")),
    )(xT, x, qh, rel_pre,
      wkT, bk_col, wvT, bv_col, wo, p['bo'],
      p['g1'], p['be1'],
      w1, p['b1'], w2, p['b2'],
      p['g2'], p['be2'])


def extended_encoder_forward(x, relative_ids, layer_params, num_heads, q_tile):
    for p in layer_params:                  # n_layers distinct layers (shared_weights=False)
        x = run_encoder_layer(x, relative_ids, p, num_heads, q_tile)
    return x


# ------------------------- pure-JAX f32 reference (for verification) -----------------

def encoder_layer_ref(x, relative_ids, p, num_heads):
    B, S, D = x.shape
    dh = D // num_heads
    relk = p['rel_k'][:, relative_ids, :]
    relb = p['rel_b'][:, relative_ids]
    q = x @ p['wq'] + p['bq']
    k = x @ p['wk'] + p['bk']
    v = x @ p['wv'] + p['bv']
    qh = q.reshape(B, S, num_heads, dh).transpose(0, 2, 1, 3)
    kh = k.reshape(B, S, num_heads, dh).transpose(0, 2, 1, 3)
    vh = v.reshape(B, S, num_heads, dh).transpose(0, 2, 1, 3)
    content = jnp.einsum('bhid,bhjd->bhij', qh, kh)
    rel = jnp.einsum('bhid,hijd->bhij', qh, relk)
    scores = (content + rel) / math.sqrt(dh) + relb[None]
    attn = jax.nn.softmax(scores, axis=-1)
    ctx = jnp.einsum('bhij,bhjd->bhid', attn, vh).transpose(0, 2, 1, 3).reshape(B, S, D)
    a_out = ctx @ p['wo'] + p['bo']
    ff_in = _layernorm(x + a_out, p['g1'], p['be1'])
    h = jax.nn.relu(ff_in @ p['w1'] + p['b1'])
    ff_out = h @ p['w2'] + p['b2']
    return _layernorm(ff_in + ff_out, p['g2'], p['be2'])


# ------------------------- deterministic parameter init ------------------------------

def xavier_uniform(key, shape):
    fan_in, fan_out = shape
    lim = math.sqrt(6.0 / (fan_in + fan_out))
    return jax.random.uniform(key, shape, jnp.float32, -lim, lim)


def init_layer_params(key, d_model, num_heads, ffn_hidden, num_rel):
    dh = d_model // num_heads
    ks = jax.random.split(key, 8)
    z = lambda *s: jnp.zeros(s, jnp.float32)
    o = lambda *s: jnp.ones(s, jnp.float32)
    return dict(
        wq=xavier_uniform(ks[0], (d_model, d_model)), bq=z(1, d_model),
        wk=xavier_uniform(ks[1], (d_model, d_model)), bk=z(1, d_model),
        wv=xavier_uniform(ks[2], (d_model, d_model)), bv=z(1, d_model),
        wo=xavier_uniform(ks[3], (d_model, d_model)), bo=z(1, d_model),
        rel_k=0.02 * jax.random.normal(ks[4], (num_heads, num_rel, dh), jnp.float32),
        rel_b=0.02 * jax.random.normal(ks[5], (num_heads, num_rel), jnp.float32),
        g1=o(1, d_model), be1=z(1, d_model),
        w1=xavier_uniform(ks[6], (d_model, ffn_hidden)), b1=z(1, ffn_hidden),
        w2=xavier_uniform(ks[7], (ffn_hidden, d_model)), b2=z(1, d_model),
        g2=o(1, d_model), be2=z(1, d_model),
    )


# ------------------------- main -------------------------------------------------------

if __name__ == "__main__":
    B, S, D, H, FFN, L = 2, 16, 32, 4, 64, 2
    TQ = 8                                   # 2 q-tiles per sequence -> exercises the tiled grid
    num_rel = 2 * S - 1

    key = jax.random.PRNGKey(0)
    kx, *layer_keys = jax.random.split(key, L + 1)

    x = jax.random.normal(kx, (B, S, D), jnp.float32)
    idx = jnp.arange(S)
    relative_ids = ((idx[None, :] - idx[:, None]) + (S - 1)).astype(jnp.int32)  # (S,S) in [0, 2S-2]

    layer_params = [init_layer_params(k, D, H, FFN, num_rel) for k in layer_keys]

    fwd = jax.jit(partial(extended_encoder_forward, num_heads=H, q_tile=TQ))
    out = fwd(x, relative_ids, layer_params)
    out = jax.block_until_ready(out)

    ref = x
    for p in layer_params:
        ref = encoder_layer_ref(ref, relative_ids, p, H)
    ref = jax.block_until_ready(ref)

    max_err = float(jnp.max(jnp.abs(out - ref)))
    assert out.shape == (B, S, D)
    # bf16 MXU operands (f32 accumulate) vs. full-f32 reference -> loose tolerance.
    assert jnp.allclose(out, ref, atol=5e-2, rtol=5e-2), f"max abs err {max_err}"

    print("KERNEL_OK")
</pallas_src>

<mosaic_0001>
module attributes {stable_mosaic.version = 11 : i64} {
  func.func @encoder_layer_kernel(%arg0: i32, %arg1: i32, %arg2: memref<1x32x16xbf16, #tpu.memory_space<vmem>>, %arg3: memref<1x8x32xf32, #tpu.memory_space<vmem>>, %arg4: memref<1x4x8x8xf32, #tpu.memory_space<vmem>>, %arg5: memref<1x4x8x16xf32, #tpu.memory_space<vmem>>, %arg6: memref<32x32xbf16, #tpu.memory_space<vmem>>, %arg7: memref<32x1xf32, #tpu.memory_space<vmem>>, %arg8: memref<32x32xbf16, #tpu.memory_space<vmem>>, %arg9: memref<32x1xf32, #tpu.memory_space<vmem>>, %arg10: memref<32x32xbf16, #tpu.memory_space<vmem>>, %arg11: memref<1x32xf32, #tpu.memory_space<vmem>>, %arg12: memref<1x32xf32, #tpu.memory_space<vmem>>, %arg13: memref<1x32xf32, #tpu.memory_space<vmem>>, %arg14: memref<32x64xbf16, #tpu.memory_space<vmem>>, %arg15: memref<1x64xf32, #tpu.memory_space<vmem>>, %arg16: memref<64x32xbf16, #tpu.memory_space<vmem>>, %arg17: memref<1x32xf32, #tpu.memory_space<vmem>>, %arg18: memref<1x32xf32, #tpu.memory_space<vmem>>, %arg19: memref<1x32xf32, #tpu.memory_space<vmem>>, %arg20: memref<1x8x32xf32, #tpu.memory_space<vmem>>, %arg21: memref<32x16xf32, #tpu.memory_space<vmem>>, %arg22: memref<32x16xf32, #tpu.memory_space<vmem>>) attributes {dimension_semantics = [#tpu.dimension_semantics<parallel>, #tpu.dimension_semantics<arbitrary>], iteration_bounds = array<i64: 2, 2>, scalar_prefetch = 0 : i64, scratch_operands = 2 : i64, tpu.core_type = #tpu.core_type<tc>, window_params = [{transform_indices = @transform_0, window_bounds = array<i64: 1, 32, 16>}, {transform_indices = @transform_1, window_bounds = array<i64: 1, 8, 32>}, {transform_indices = @transform_2, window_bounds = array<i64: 1, 4, 8, 8>}, {transform_indices = @transform_3, window_bounds = array<i64: 1, 4, 8, 16>}, {pipeline_mode = #tpu.pipeline_mode<synchronous>, transform_indices = @transform_4, window_bounds = array<i64: 32, 32>}, {pipeline_mode = #tpu.pipeline_mode<synchronous>, transform_indices = @transform_5, window_bounds = array<i64: 32, 1>}, {pipeline_mode = #tpu.pipeline_mode<synchronous>, transform_indices = @transform_6, window_bounds = array<i64: 32, 32>}, {pipeline_mode = #tpu.pipeline_mode<synchronous>, transform_indices = @transform_7, window_bounds = array<i64: 32, 1>}, {pipeline_mode = #tpu.pipeline_mode<synchronous>, transform_indices = @transform_8, window_bounds = array<i64: 32, 32>}, {pipeline_mode = #tpu.pipeline_mode<synchronous>, transform_indices = @transform_9, window_bounds = array<i64: 1, 32>}, {pipeline_mode = #tpu.pipeline_mode<synchronous>, transform_indices = @transform_10, window_bounds = array<i64: 1, 32>}, {pipeline_mode = #tpu.pipeline_mode<synchronous>, transform_indices = @transform_11, window_bounds = array<i64: 1, 32>}, {pipeline_mode = #tpu.pipeline_mode<synchronous>, transform_indices = @transform_12, window_bounds = array<i64: 32, 64>}, {pipeline_mode = #tpu.pipeline_mode<synchronous>, transform_indices = @transform_13, window_bounds = array<i64: 1, 64>}, {pipeline_mode = #tpu.pipeline_mode<synchronous>, transform_indices = @transform_14, window_bounds = array<i64: 64, 32>}, {pipeline_mode = #tpu.pipeline_mode<synchronous>, transform_indices = @transform_15, window_bounds = array<i64: 1, 32>}, {pipeline_mode = #tpu.pipeline_mode<synchronous>, transform_indices = @transform_16, window_bounds = array<i64: 1, 32>}, {pipeline_mode = #tpu.pipeline_mode<synchronous>, transform_indices = @transform_17, window_bounds = array<i64: 1, 32>}, {transform_indices = @transform_18, window_bounds = array<i64: 1, 8, 32>}]} {
    %c0_i32 = arith.constant 0 : i32
    %0 = arith.cmpi eq, %arg1, %c0_i32 : i32
    %1 = arith.extui %0 : i1 to i32
    %c0_i32_0 = arith.constant 0 : i32
    %2 = arith.cmpi ne, %1, %c0_i32_0 : i32
    scf.if %2 {
      %c0_74 = arith.constant 0 : index
      %c0_75 = arith.constant 0 : index
      %c0_76 = arith.constant 0 : index
      %190 = vector.load %arg2[%c0_74, %c0_75, %c0_76] : memref<1x32x16xbf16, #tpu.memory_space<vmem>>, vector<1x32x16xbf16>
      %191 = vector.shape_cast %190 : vector<1x32x16xbf16> to vector<32x16xbf16>
      %c0_77 = arith.constant 0 : index
      %c0_78 = arith.constant 0 : index
      %192 = vector.load %arg6[%c0_77, %c0_78] : memref<32x32xbf16, #tpu.memory_space<vmem>>, vector<32x32xbf16>
      %cst_79 = arith.constant dense<0.000000e+00> : vector<32x16xf32>
      %193 = tpu.matmul %192, %191, %cst_79 {dimension_numbers = #tpu.dot_dimension_numbers<[1], [0], [0], [1], [0, 0, 1, 1], [], []>} : vector<32x32xbf16>, vector<32x16xbf16>, vector<32x16xf32> -> vector<32x16xf32>
      %c0_80 = arith.constant 0 : index
      %c0_81 = arith.constant 0 : index
      %194 = vector.load %arg7[%c0_80, %c0_81] : memref<32x1xf32, #tpu.memory_space<vmem>>, vector<32x1xf32>
      %195 = vector.broadcast %194 : vector<32x1xf32> to vector<32x16xf32>
      %196 = arith.addf %193, %195 : vector<32x16xf32>
      %c0_82 = arith.constant 0 : index
      %c0_83 = arith.constant 0 : index
      %197 = vector.load %arg21[%c0_82, %c0_83] : memref<32x16xf32, #tpu.memory_space<vmem>>, vector<32x16xf32>
      tpu.vector_store %arg21[%c0_82, %c0_83], %196 {strides = array<i32>} : memref<32x16xf32, #tpu.memory_space<vmem>>, vector<32x16xf32>,
      %c0_84 = arith.constant 0 : index
      %c0_85 = arith.constant 0 : index
      %198 = vector.load %arg8[%c0_84, %c0_85] : memref<32x32xbf16, #tpu.memory_space<vmem>>, vector<32x32xbf16>
      %cst_86 = arith.constant dense<0.000000e+00> : vector<32x16xf32>
      %199 = tpu.matmul %198, %191, %cst_86 {dimension_numbers = #tpu.dot_dimension_numbers<[1], [0], [0], [1], [0, 0, 1, 1], [], []>} : vector<32x32xbf16>, vector<32x16xbf16>, vector<32x16xf32> -> vector<32x16xf32>
      %c0_87 = arith.constant 0 : index
      %c0_88 = arith.constant 0 : index
      %200 = vector.load %arg9[%c0_87, %c0_88] : memref<32x1xf32, #tpu.memory_space<vmem>>, vector<32x1xf32>
      %201 = vector.broadcast %200 : vector<32x1xf32> to vector<32x16xf32>
      %202 = arith.addf %199, %201 : vector<32x16xf32>
      %c0_89 = arith.constant 0 : index
      %c0_90 = arith.constant 0 : index
      %203 = vector.load %arg22[%c0_89, %c0_90] : memref<32x16xf32, #tpu.memory_space<vmem>>, vector<32x16xf32>
      tpu.vector_store %arg22[%c0_89, %c0_90], %202 {strides = array<i32>} : memref<32x16xf32, #tpu.memory_space<vmem>>, vector<32x16xf32>,
    } else {
    }
    %c0 = arith.constant 0 : index
    %c0_1 = arith.constant 0 : index
    %3 = vector.load %arg21[%c0, %c0_1] : memref<32x16xf32, #tpu.memory_space<vmem>>, vector<32x16xf32>
    %c0_2 = arith.constant 0 : index
    %c0_3 = arith.constant 0 : index
    %4 = vector.load %arg22[%c0_2, %c0_3] : memref<32x16xf32, #tpu.memory_space<vmem>>, vector<32x16xf32>
    %c0_4 = arith.constant 0 : index
    %c0_5 = arith.constant 0 : index
    %c0_6 = arith.constant 0 : index
    %c0_7 = arith.constant 0 : index
    %5 = vector.load %arg4[%c0_4, %c0_5, %c0_6, %c0_7] : memref<1x4x8x8xf32, #tpu.memory_space<vmem>>, vector<1x4x8x8xf32>
    %6 = vector.shape_cast %5 : vector<1x4x8x8xf32> to vector<4x8x8xf32>
    %c0_8 = arith.constant 0 : index
    %c0_9 = arith.constant 0 : index
    %c0_10 = arith.constant 0 : index
    %c0_11 = arith.constant 0 : index
    %7 = vector.load %arg5[%c0_8, %c0_9, %c0_10, %c0_11] : memref<1x4x8x16xf32, #tpu.memory_space<vmem>>, vector<1x4x8x16xf32>
    %8 = vector.shape_cast %7 : vector<1x4x8x16xf32> to vector<4x8x16xf32>
    %cst = arith.constant 0.000000e+00 : f32
    %9 = vector.broadcast %cst : f32 to vector<8x32xf32>
    %10 = vector.extract_strided_slice %6 {offsets = [0, 0, 0], sizes = [1, 8, 8], strides = [1, 1, 1]} : vector<4x8x8xf32> to vector<1x8x8xf32>
    %11 = vector.shape_cast %10 : vector<1x8x8xf32> to vector<8x8xf32>
    %12 = arith.truncf %11 : vector<8x8xf32> to vector<8x8xbf16>
    %13 = vector.extract_strided_slice %3 {offsets = [0, 0], sizes = [8, 16], strides = [1, 1]} : vector<32x16xf32> to vector<8x16xf32>
    %14 = arith.truncf %13 : vector<8x16xf32> to vector<8x16xbf16>
    %15 = vector.extract_strided_slice %4 {offsets = [0, 0], sizes = [8, 16], strides = [1, 1]} : vector<32x16xf32> to vector<8x16xf32>
    %16 = arith.truncf %15 : vector<8x16xf32> to vector<8x16xbf16>
    %cst_12 = arith.constant dense<0.000000e+00> : vector<8x16xf32>
    %17 = tpu.matmul %12, %14, %cst_12 {dimension_numbers = #tpu.dot_dimension_numbers<[1], [0], [0], [1], [0, 0, 1, 1], [], []>} : vector<8x8xbf16>, vector<8x16xbf16>, vector<8x16xf32> -> vector<8x16xf32>
    %18 = vector.extract_strided_slice %8 {offsets = [0, 0, 0], sizes = [1, 8, 16], strides = [1, 1, 1]} : vector<4x8x16xf32> to vector<1x8x16xf32>
    %19 = vector.shape_cast %18 : vector<1x8x16xf32> to vector<8x16xf32>
    %20 = arith.addf %17, %19 : vector<8x16xf32>
    %cst_13 = arith.constant dense<0xFF800000> : vector<8xf32>
    %21 = vector.multi_reduction <maximumf>, %20, %cst_13 [1] : vector<8x16xf32> to vector<8xf32>
    %22 = vector.shape_cast %21 : vector<8xf32> to vector<8x1xf32>
    %23 = vector.broadcast %22 : vector<8x1xf32> to vector<8x16xf32>
    %24 = arith.subf %20, %23 : vector<8x16xf32>
    %25 = math.exp %24 : vector<8x16xf32>
    %cst_14 = arith.constant dense<0.000000e+00> : vector<8xf32>
    %26 = vector.multi_reduction <add>, %25, %cst_14 [1] : vector<8x16xf32> to vector<8xf32>
    %27 = vector.shape_cast %26 : vector<8xf32> to vector<8x1xf32>
    %28 = tpu.reciprocal %27 {approx = true} : vector<8x1xf32> -> vector<8x1xf32>
    %29 = vector.broadcast %28 : vector<8x1xf32> to vector<8x16xf32>
    %30 = arith.mulf %25, %29 : vector<8x16xf32>
    %31 = arith.truncf %30 : vector<8x16xf32> to vector<8x16xbf16>
    %cst_15 = arith.constant dense<0.000000e+00> : vector<8x8xf32>
    %32 = tpu.matmul %31, %16, %cst_15 {dimension_numbers = #tpu.dot_dimension_numbers<[1], [1], [0], [0], [0, 0, 1, 0], [], []>} : vector<8x16xbf16>, vector<8x16xbf16>, vector<8x8xf32> -> vector<8x8xf32>
    %33 = arith.truncf %32 : vector<8x8xf32> to vector<8x8xbf16>
    %c0_16 = arith.constant 0 : index
    %c0_17 = arith.constant 0 : index
    %34 = vector.load %arg10[%c0_16, %c0_17] : memref<32x32xbf16, #tpu.memory_space<vmem>>, vector<8x32xbf16>
    %cst_18 = arith.constant dense<0.000000e+00> : vector<8x32xf32>
    %35 = tpu.matmul %33, %34, %cst_18 {dimension_numbers = #tpu.dot_dimension_numbers<[1], [0], [0], [1], [0, 0, 1, 1], [], []>} : vector<8x8xbf16>, vector<8x32xbf16>, vector<8x32xf32> -> vector<8x32xf32>
    %36 = arith.addf %9, %35 : vector<8x32xf32>
    %37 = vector.extract_strided_slice %6 {offsets = [1, 0, 0], sizes = [1, 8, 8], strides = [1, 1, 1]} : vector<4x8x8xf32> to vector<1x8x8xf32>
    %38 = vector.shape_cast %37 : vector<1x8x8xf32> to vector<8x8xf32>
    %39 = arith.truncf %38 : vector<8x8xf32> to vector<8x8xbf16>
    %40 = vector.extract_strided_slice %3 {offsets = [8, 0], sizes = [8, 16], strides = [1, 1]} : vector<32x16xf32> to vector<8x16xf32>
    %41 = arith.truncf %40 : vector<8x16xf32> to vector<8x16xbf16>
    %42 = vector.extract_strided_slice %4 {offsets = [8, 0], sizes = [8, 16], strides = [1, 1]} : vector<32x16xf32> to vector<8x16xf32>
    %43 = arith.truncf %42 : vector<8x16xf32> to vector<8x16xbf16>
    %cst_19 = arith.constant dense<0.000000e+00> : vector<8x16xf32>
    %44 = tpu.matmul %39, %41, %cst_19 {dimension_numbers = #tpu.dot_dimension_numbers<[1], [0], [0], [1], [0, 0, 1, 1], [], []>} : vector<8x8xbf16>, vector<8x16xbf16>, vector<8x16xf32> -> vector<8x16xf32>
    %45 = vector.extract_strided_slice %8 {offsets = [1, 0, 0], sizes = [1, 8, 16], strides = [1, 1, 1]} : vector<4x8x16xf32> to vector<1x8x16xf32>
    %46 = vector.shape_cast %45 : vector<1x8x16xf32> to vector<8x16xf32>
    %47 = arith.addf %44, %46 : vector<8x16xf32>
    %cst_20 = arith.constant dense<0xFF800000> : vector<8xf32>
    %48 = vector.multi_reduction <maximumf>, %47, %cst_20 [1] : vector<8x16xf32> to vector<8xf32>
    %49 = vector.shape_cast %48 : vector<8xf32> to vector<8x1xf32>
    %50 = vector.broadcast %49 : vector<8x1xf32> to vector<8x16xf32>
    %51 = arith.subf %47, %50 : vector<8x16xf32>
    %52 = math.exp %51 : vector<8x16xf32>
    %cst_21 = arith.constant dense<0.000000e+00> : vector<8xf32>
    %53 = vector.multi_reduction <add>, %52, %cst_21 [1] : vector<8x16xf32> to vector<8xf32>
    %54 = vector.shape_cast %53 : vector<8xf32> to vector<8x1xf32>
    %55 = tpu.reciprocal %54 {approx = true} : vector<8x1xf32> -> vector<8x1xf32>
    %56 = vector.broadcast %55 : vector<8x1xf32> to vector<8x16xf32>
    %57 = arith.mulf %52, %56 : vector<8x16xf32>
    %58 = arith.truncf %57 : vector<8x16xf32> to vector<8x16xbf16>
    %cst_22 = arith.constant dense<0.000000e+00> : vector<8x8xf32>
    %59 = tpu.matmul %58, %43, %cst_22 {dimension_numbers = #tpu.dot_dimension_numbers<[1], [1], [0], [0], [0, 0, 1, 0], [], []>} : vector<8x16xbf16>, vector<8x16xbf16>, vector<8x8xf32> -> vector<8x8xf32>
    %60 = arith.truncf %59 : vector<8x8xf32> to vector<8x8xbf16>
    %c8 = arith.constant 8 : index
    %c0_23 = arith.constant 0 : index
    %61 = vector.load %arg10[%c8, %c0_23] : memref<32x32xbf16, #tpu.memory_space<vmem>>, vector<8x32xbf16>
    %cst_24 = arith.constant dense<0.000000e+00> : vector<8x32xf32>
    %62 = tpu.matmul %60, %61, %cst_24 {dimension_numbers = #tpu.dot_dimension_numbers<[1], [0], [0], [1], [0, 0, 1, 1], [], []>} : vector<8x8xbf16>, vector<8x32xbf16>, vector<8x32xf32> -> vector<8x32xf32>
    %63 = arith.addf %36, %62 : vector<8x32xf32>
    %64 = vector.extract_strided_slice %6 {offsets = [2, 0, 0], sizes = [1, 8, 8], strides = [1, 1, 1]} : vector<4x8x8xf32> to vector<1x8x8xf32>
    %65 = vector.shape_cast %64 : vector<1x8x8xf32> to vector<8x8xf32>
    %66 = arith.truncf %65 : vector<8x8xf32> to vector<8x8xbf16>
    %67 = vector.extract_strided_slice %3 {offsets = [16, 0], sizes = [8, 16], strides = [1, 1]} : vector<32x16xf32> to vector<8x16xf32>
    %68 = arith.truncf %67 : vector<8x16xf32> to vector<8x16xbf16>
    %69 = vector.extract_strided_slice %4 {offsets = [16, 0], sizes = [8, 16], strides = [1, 1]} : vector<32x16xf32> to vector<8x16xf32>
    %70 = arith.truncf %69 : vector<8x16xf32> to vector<8x16xbf16>
    %cst_25 = arith.constant dense<0.000000e+00> : vector<8x16xf32>
    %71 = tpu.matmul %66, %68, %cst_25 {dimension_numbers = #tpu.dot_dimension_numbers<[1], [0], [0], [1], [0, 0, 1, 1], [], []>} : vector<8x8xbf16>, vector<8x16xbf16>, vector<8x16xf32> -> vector<8x16xf32>
    %72 = vector.extract_strided_slice %8 {offsets = [2, 0, 0], sizes = [1, 8, 16], strides = [1, 1, 1]} : vector<4x8x16xf32> to vector<1x8x16xf32>
    %73 = vector.shape_cast %72 : vector<1x8x16xf32> to vector<8x16xf32>
    %74 = arith.addf %71, %73 : vector<8x16xf32>
    %cst_26 = arith.constant dense<0xFF800000> : vector<8xf32>
    %75 = vector.multi_reduction <maximumf>, %74, %cst_26 [1] : vector<8x16xf32> to vector<8xf32>
    %76 = vector.shape_cast %75 : vector<8xf32> to vector<8x1xf32>
    %77 = vector.broadcast %76 : vector<8x1xf32> to vector<8x16xf32>
    %78 = arith.subf %74, %77 : vector<8x16xf32>
    %79 = math.exp %78 : vector<8x16xf32>
    %cst_27 = arith.constant dense<0.000000e+00> : vector<8xf32>
    %80 = vector.multi_reduction <add>, %79, %cst_27 [1] : vector<8x16xf32> to vector<8xf32>
    %81 = vector.shape_cast %80 : vector<8xf32> to vector<8x1xf32>
    %82 = tpu.reciprocal %81 {approx = true} : vector<8x1xf32> -> vector<8x1xf32>
    %83 = vector.broadcast %82 : vector<8x1xf32> to vector<8x16xf32>
    %84 = arith.mulf %79, %83 : vector<8x16xf32>
    %85 = arith.truncf %84 : vector<8x16xf32> to vector<8x16xbf16>
    %cst_28 = arith.constant dense<0.000000e+00> : vector<8x8xf32>
    %86 = tpu.matmul %85, %70, %cst_28 {dimension_numbers = #tpu.dot_dimension_numbers<[1], [1], [0], [0], [0, 0, 1, 0], [], []>} : vector<8x16xbf16>, vector<8x16xbf16>, vector<8x8xf32> -> vector<8x8xf32>
    %87 = arith.truncf %86 : vector<8x8xf32> to vector<8x8xbf16>
    %c16 = arith.constant 16 : index
    %c0_29 = arith.constant 0 : index
    %88 = vector.load %arg10[%c16, %c0_29] : memref<32x32xbf16, #tpu.memory_space<vmem>>, vector<8x32xbf16>
    %cst_30 = arith.constant dense<0.000000e+00> : vector<8x32xf32>
    %89 = tpu.matmul %87, %88, %cst_30 {dimension_numbers = #tpu.dot_dimension_numbers<[1], [0], [0], [1], [0, 0, 1, 1], [], []>} : vector<8x8xbf16>, vector<8x32xbf16>, vector<8x32xf32> -> vector<8x32xf32>
    %90 = arith.addf %63, %89 : vector<8x32xf32>
    %91 = vector.extract_strided_slice %6 {offsets = [3, 0, 0], sizes = [1, 8, 8], strides = [1, 1, 1]} : vector<4x8x8xf32> to vector<1x8x8xf32>
    %92 = vector.shape_cast %91 : vector<1x8x8xf32> to vector<8x8xf32>
    %93 = arith.truncf %92 : vector<8x8xf32> to vector<8x8xbf16>
    %94 = vector.extract_strided_slice %3 {offsets = [24, 0], sizes = [8, 16], strides = [1, 1]} : vector<32x16xf32> to vector<8x16xf32>
    %95 = arith.truncf %94 : vector<8x16xf32> to vector<8x16xbf16>
    %96 = vector.extract_strided_slice %4 {offsets = [24, 0], sizes = [8, 16], strides = [1, 1]} : vector<32x16xf32> to vector<8x16xf32>
    %97 = arith.truncf %96 : vector<8x16xf32> to vector<8x16xbf16>
    %cst_31 = arith.constant dense<0.000000e+00> : vector<8x16xf32>
    %98 = tpu.matmul %93, %95, %cst_31 {dimension_numbers = #tpu.dot_dimension_numbers<[1], [0], [0], [1], [0, 0, 1, 1], [], []>} : vector<8x8xbf16>, vector<8x16xbf16>, vector<8x16xf32> -> vector<8x16xf32>
    %99 = vector.extract_strided_slice %8 {offsets = [3, 0, 0], sizes = [1, 8, 16], strides = [1, 1, 1]} : vector<4x8x16xf32> to vector<1x8x16xf32>
    %100 = vector.shape_cast %99 : vector<1x8x16xf32> to vector<8x16xf32>
    %101 = arith.addf %98, %100 : vector<8x16xf32>
    %cst_32 = arith.constant dense<0xFF800000> : vector<8xf32>
    %102 = vector.multi_reduction <maximumf>, %101, %cst_32 [1] : vector<8x16xf32> to vector<8xf32>
    %103 = vector.shape_cast %102 : vector<8xf32> to vector<8x1xf32>
    %104 = vector.broadcast %103 : vector<8x1xf32> to vector<8x16xf32>
    %105 = arith.subf %101, %104 : vector<8x16xf32>
    %106 = math.exp %105 : vector<8x16xf32>
    %cst_33 = arith.constant dense<0.000000e+00> : vector<8xf32>
    %107 = vector.multi_reduction <add>, %106, %cst_33 [1] : vector<8x16xf32> to vector<8xf32>
    %108 = vector.shape_cast %107 : vector<8xf32> to vector<8x1xf32>
    %109 = tpu.reciprocal %108 {approx = true} : vector<8x1xf32> -> vector<8x1xf32>
    %110 = vector.broadcast %109 : vector<8x1xf32> to vector<8x16xf32>
    %111 = arith.mulf %106, %110 : vector<8x16xf32>
    %112 = arith.truncf %111 : vector<8x16xf32> to vector<8x16xbf16>
    %cst_34 = arith.constant dense<0.000000e+00> : vector<8x8xf32>
    %113 = tpu.matmul %112, %97, %cst_34 {dimension_numbers = #tpu.dot_dimension_numbers<[1], [1], [0], [0], [0, 0, 1, 0], [], []>} : vector<8x16xbf16>, vector<8x16xbf16>, vector<8x8xf32> -> vector<8x8xf32>
    %114 = arith.truncf %113 : vector<8x8xf32> to vector<8x8xbf16>
    %c24 = arith.constant 24 : index
    %c0_35 = arith.constant 0 : index
    %115 = vector.load %arg10[%c24, %c0_35] : memref<32x32xbf16, #tpu.memory_space<vmem>>, vector<8x32xbf16>
    %cst_36 = arith.constant dense<0.000000e+00> : vector<8x32xf32>
    %116 = tpu.matmul %114, %115, %cst_36 {dimension_numbers = #tpu.dot_dimension_numbers<[1], [0], [0], [1], [0, 0, 1, 1], [], []>} : vector<8x8xbf16>, vector<8x32xbf16>, vector<8x32xf32> -> vector<8x32xf32>
    %117 = arith.addf %90, %116 : vector<8x32xf32>
    %c0_37 = arith.constant 0 : index
    %c0_38 = arith.constant 0 : index
    %118 = vector.load %arg11[%c0_37, %c0_38] : memref<1x32xf32, #tpu.memory_space<vmem>>, vector<1x32xf32>
    %119 = vector.broadcast %118 : vector<1x32xf32> to vector<8x32xf32>
    %120 = arith.addf %117, %119 : vector<8x32xf32>
    %c0_39 = arith.constant 0 : index
    %c0_40 = arith.constant 0 : index
    %c0_41 = arith.constant 0 : index
    %121 = vector.load %arg3[%c0_39, %c0_40, %c0_41] : memref<1x8x32xf32, #tpu.memory_space<vmem>>, vector<1x8x32xf32>
    %122 = vector.shape_cast %121 : vector<1x8x32xf32> to vector<8x32xf32>
    %123 = arith.addf %122, %120 : vector<8x32xf32>
    %c0_42 = arith.constant 0 : index
    %c0_43 = arith.constant 0 : index
    %124 = vector.load %arg12[%c0_42, %c0_43] : memref<1x32xf32, #tpu.memory_space<vmem>>, vector<1x32xf32>
    %c0_44 = arith.constant 0 : index
    %c0_45 = arith.constant 0 : index
    %125 = vector.load %arg13[%c0_44, %c0_45] : memref<1x32xf32, #tpu.memory_space<vmem>>, vector<1x32xf32>
    %cst_46 = arith.constant dense<0.000000e+00> : vector<8xf32>
    %126 = vector.multi_reduction <add>, %123, %cst_46 [1] : vector<8x32xf32> to vector<8xf32>
    %127 = vector.shape_cast %126 : vector<8xf32> to vector<8x1xf32>
    %cst_47 = arith.constant 3.200000e+01 : f32
    %128 = vector.broadcast %cst_47 : f32 to vector<8x1xf32>
    %129 = arith.divf %127, %128 : vector<8x1xf32>
    %130 = vector.broadcast %129 : vector<8x1xf32> to vector<8x32xf32>
    %131 = arith.subf %123, %130 : vector<8x32xf32>
    %132 = arith.mulf %131, %131 : vector<8x32xf32>
    %cst_48 = arith.constant dense<0.000000e+00> : vector<8xf32>
    %133 = vector.multi_reduction <add>, %132, %cst_48 [1] : vector<8x32xf32> to vector<8xf32>
    %134 = vector.shape_cast %133 : vector<8xf32> to vector<8x1xf32>
    %cst_49 = arith.constant 3.200000e+01 : f32
    %135 = vector.broadcast %cst_49 : f32 to vector<8x1xf32>
    %136 = arith.divf %134, %135 : vector<8x1xf32>
    %137 = vector.broadcast %129 : vector<8x1xf32> to vector<8x32xf32>
    %138 = arith.subf %123, %137 : vector<8x32xf32>
    %cst_50 = arith.constant 9.99999997E-7 : f32
    %139 = vector.broadcast %cst_50 : f32 to vector<8x1xf32>
    %140 = arith.addf %136, %139 : vector<8x1xf32>
    %141 = math.rsqrt %140 : vector<8x1xf32>
    %142 = vector.broadcast %141 : vector<8x1xf32> to vector<8x32xf32>
    %143 = arith.mulf %138, %142 : vector<8x32xf32>
    %144 = vector.broadcast %124 : vector<1x32xf32> to vector<8x32xf32>
    %145 = arith.mulf %143, %144 : vector<8x32xf32>
    %146 = vector.broadcast %125 : vector<1x32xf32> to vector<8x32xf32>
    %147 = arith.addf %145, %146 : vector<8x32xf32>
    %148 = arith.truncf %147 : vector<8x32xf32> to vector<8x32xbf16>
    %c0_51 = arith.constant 0 : index
    %c0_52 = arith.constant 0 : index
    %149 = vector.load %arg14[%c0_51, %c0_52] : memref<32x64xbf16, #tpu.memory_space<vmem>>, vector<32x64xbf16>
    %cst_53 = arith.constant dense<0.000000e+00> : vector<8x64xf32>
    %150 = tpu.matmul %148, %149, %cst_53 {dimension_numbers = #tpu.dot_dimension_numbers<[1], [0], [0], [1], [0, 0, 1, 1], [], []>} : vector<8x32xbf16>, vector<32x64xbf16>, vector<8x64xf32> -> vector<8x64xf32>
    %c0_54 = arith.constant 0 : index
    %c0_55 = arith.constant 0 : index
    %151 = vector.load %arg15[%c0_54, %c0_55] : memref<1x64xf32, #tpu.memory_space<vmem>>, vector<1x64xf32>
    %152 = vector.broadcast %151 : vector<1x64xf32> to vector<8x64xf32>
    %153 = arith.addf %150, %152 : vector<8x64xf32>
    %cst_56 = arith.constant 0.000000e+00 : f32
    %154 = vector.broadcast %cst_56 : f32 to vector<8x64xf32>
    %155 = arith.maximumf %153, %154 : vector<8x64xf32>
    %156 = arith.truncf %155 : vector<8x64xf32> to vector<8x64xbf16>
    %c0_57 = arith.constant 0 : index
    %c0_58 = arith.constant 0 : index
    %157 = vector.load %arg16[%c0_57, %c0_58] : memref<64x32xbf16, #tpu.memory_space<vmem>>, vector<64x32xbf16>
    %cst_59 = arith.constant dense<0.000000e+00> : vector<8x32xf32>
    %158 = tpu.matmul %156, %157, %cst_59 {dimension_numbers = #tpu.dot_dimension_numbers<[1], [0], [0], [1], [0, 0, 1, 1], [], []>} : vector<8x64xbf16>, vector<64x32xbf16>, vector<8x32xf32> -> vector<8x32xf32>
    %c0_60 = arith.constant 0 : index
    %c0_61 = arith.constant 0 : index
    %159 = vector.load %arg17[%c0_60, %c0_61] : memref<1x32xf32, #tpu.memory_space<vmem>>, vector<1x32xf32>
    %160 = vector.broadcast %159 : vector<1x32xf32> to vector<8x32xf32>
    %161 = arith.addf %158, %160 : vector<8x32xf32>
    %162 = arith.addf %147, %161 : vector<8x32xf32>
    %c0_62 = arith.constant 0 : index
    %c0_63 = arith.constant 0 : index
    %163 = vector.load %arg18[%c0_62, %c0_63] : memref<1x32xf32, #tpu.memory_space<vmem>>, vector<1x32xf32>
    %c0_64 = arith.constant 0 : index
    %c0_65 = arith.constant 0 : index
    %164 = vector.load %arg19[%c0_64, %c0_65] : memref<1x32xf32, #tpu.memory_space<vmem>>, vector<1x32xf32>
    %cst_66 = arith.constant dense<0.000000e+00> : vector<8xf32>
    %165 = vector.multi_reduction <add>, %162, %cst_66 [1] : vector<8x32xf32> to vector<8xf32>
    %166 = vector.shape_cast %165 : vector<8xf32> to vector<8x1xf32>
    %cst_67 = arith.constant 3.200000e+01 : f32
    %167 = vector.broadcast %cst_67 : f32 to vector<8x1xf32>
    %168 = arith.divf %166, %167 : vector<8x1xf32>
    %169 = vector.broadcast %168 : vector<8x1xf32> to vector<8x32xf32>
    %170 = arith.subf %162, %169 : vector<8x32xf32>
    %171 = arith.mulf %170, %170 : vector<8x32xf32>
    %cst_68 = arith.constant dense<0.000000e+00> : vector<8xf32>
    %172 = vector.multi_reduction <add>, %171, %cst_68 [1] : vector<8x32xf32> to vector<8xf32>
    %173 = vector.shape_cast %172 : vector<8xf32> to vector<8x1xf32>
    %cst_69 = arith.constant 3.200000e+01 : f32
    %174 = vector.broadcast %cst_69 : f32 to vector<8x1xf32>
    %175 = arith.divf %173, %174 : vector<8x1xf32>
    %176 = vector.broadcast %168 : vector<8x1xf32> to vector<8x32xf32>
    %177 = arith.subf %162, %176 : vector<8x32xf32>
    %cst_70 = arith.constant 9.99999997E-7 : f32
    %178 = vector.broadcast %cst_70 : f32 to vector<8x1xf32>
    %179 = arith.addf %175, %178 : vector<8x1xf32>
    %180 = math.rsqrt %179 : vector<8x1xf32>
    %181 = vector.broadcast %180 : vector<8x1xf32> to vector<8x32xf32>
    %182 = arith.mulf %177, %181 : vector<8x32xf32>
    %183 = vector.broadcast %163 : vector<1x32xf32> to vector<8x32xf32>
    %184 = arith.mulf %182, %183 : vector<8x32xf32>
    %185 = vector.broadcast %164 : vector<1x32xf32> to vector<8x32xf32>
    %186 = arith.addf %184, %185 : vector<8x32xf32>
    %c0_71 = arith.constant 0 : index
    %c0_72 = arith.constant 0 : index
    %c0_73 = arith.constant 0 : index
    %187 = vector.load %arg20[%c0_71, %c0_72, %c0_73] : memref<1x8x32xf32, #tpu.memory_space<vmem>>, vector<1x8x32xf32>
    %188 = vector.shape_cast %187 : vector<1x8x32xf32> to vector<8x32xf32>
    %189 = vector.shape_cast %186 : vector<8x32xf32> to vector<1x8x32xf32>
    tpu.vector_store %arg20[%c0_71, %c0_72, %c0_73], %189 {strides = array<i32>} : memref<1x8x32xf32, #tpu.memory_space<vmem>>, vector<1x8x32xf32>,
    return
  }
  func.func @transform_0(%arg0: i32, %arg1: i32) -> (i32, i32, i32) {
    %c0_i32 = arith.constant 0 : i32
    %c0_i32_0 = arith.constant 0 : i32
    %c0_i32_1 = arith.constant 0 : i32
    return %arg0, %c0_i32, %c0_i32_0 : i32, i32, i32
  }
  func.func @transform_1(%arg0: i32, %arg1: i32) -> (i32, i32, i32) {
    %c0_i32 = arith.constant 0 : i32
    %c0_i32_0 = arith.constant 0 : i32
    return %arg0, %arg1, %c0_i32 : i32, i32, i32
  }
  func.func @transform_2(%arg0: i32, %arg1: i32) -> (i32, i32, i32, i32) {
    %c0_i32 = arith.constant 0 : i32
    %c0_i32_0 = arith.constant 0 : i32
    %c0_i32_1 = arith.constant 0 : i32
    return %arg0, %c0_i32, %arg1, %c0_i32_0 : i32, i32, i32, i32
  }
  func.func @transform_3(%arg0: i32, %arg1: i32) -> (i32, i32, i32, i32) {
    %c0_i32 = arith.constant 0 : i32
    %c0_i32_0 = arith.constant 0 : i32
    %c0_i32_1 = arith.constant 0 : i32
    return %arg0, %c0_i32, %arg1, %c0_i32_0 : i32, i32, i32, i32
  }
  func.func @transform_4(%arg0: i32, %arg1: i32) -> (i32, i32) {
    %c0_i32 = arith.constant 0 : i32
    %c0_i32_0 = arith.constant 0 : i32
    %c0_i32_1 = arith.constant 0 : i32
    return %c0_i32, %c0_i32_0 : i32, i32
  }
  func.func @transform_5(%arg0: i32, %arg1: i32) -> (i32, i32) {
    %c0_i32 = arith.constant 0 : i32
    %c0_i32_0 = arith.constant 0 : i32
    %c0_i32_1 = arith.constant 0 : i32
    return %c0_i32, %c0_i32_0 : i32, i32
  }
  func.func @transform_6(%arg0: i32, %arg1: i32) -> (i32, i32) {
    %c0_i32 = arith.constant 0 : i32
    %c0_i32_0 = arith.constant 0 : i32
    %c0_i32_1 = arith.constant 0 : i32
    return %c0_i32, %c0_i32_0 : i32, i32
  }
  func.func @transform_7(%arg0: i32, %arg1: i32) -> (i32, i32) {
    %c0_i32 = arith.constant 0 : i32
    %c0_i32_0 = arith.constant 0 : i32
    %c0_i32_1 = arith.constant 0 : i32
    return %c0_i32, %c0_i32_0 : i32, i32
  }
  func.func @transform_8(%arg0: i32, %arg1: i32) -> (i32, i32) {
    %c0_i32 = arith.constant 0 : i32
    %c0_i32_0 = arith.constant 0 : i32
    %c0_i32_1 = arith.constant 0 : i32
    return %c0_i32, %c0_i32_0 : i32, i32
  }
  func.func @transform_9(%arg0: i32, %arg1: i32) -> (i32, i32) {
    %c0_i32 = arith.constant 0 : i32
    %c0_i32_0 = arith.constant 0 : i32
    %c0_i32_1 = arith.constant 0 : i32
    return %c0_i32, %c0_i32_0 : i32, i32
  }
  func.func @transform_10(%arg0: i32, %arg1: i32) -> (i32, i32) {
    %c0_i32 = arith.constant 0 : i32
    %c0_i32_0 = arith.constant 0 : i32
    %c0_i32_1 = arith.constant 0 : i32
    return %c0_i32, %c0_i32_0 : i32, i32
  }
  func.func @transform_11(%arg0: i32, %arg1: i32) -> (i32, i32) {
    %c0_i32 = arith.constant 0 : i32
    %c0_i32_0 = arith.constant 0 : i32
    %c0_i32_1 = arith.constant 0 : i32
    return %c0_i32, %c0_i32_0 : i32, i32
  }
  func.func @transform_12(%arg0: i32, %arg1: i32) -> (i32, i32) {
    %c0_i32 = arith.constant 0 : i32
    %c0_i32_0 = arith.constant 0 : i32
    %c0_i32_1 = arith.constant 0 : i32
    return %c0_i32, %c0_i32_0 : i32, i32
  }
  func.func @transform_13(%arg0: i32, %arg1: i32) -> (i32, i32) {
    %c0_i32 = arith.constant 0 : i32
    %c0_i32_0 = arith.constant 0 : i32
    %c0_i32_1 = arith.constant 0 : i32
    return %c0_i32, %c0_i32_0 : i32, i32
  }
  func.func @transform_14(%arg0: i32, %arg1: i32) -> (i32, i32) {
    %c0_i32 = arith.constant 0 : i32
    %c0_i32_0 = arith.constant 0 : i32
    %c0_i32_1 = arith.constant 0 : i32
    return %c0_i32, %c0_i32_0 : i32, i32
  }
  func.func @transform_15(%arg0: i32, %arg1: i32) -> (i32, i32) {
    %c0_i32 = arith.constant 0 : i32
    %c0_i32_0 = arith.constant 0 : i32
    %c0_i32_1 = arith.constant 0 : i32
    return %c0_i32, %c0_i32_0 : i32, i32
  }
  func.func @transform_16(%arg0: i32, %arg1: i32) -> (i32, i32) {
    %c0_i32 = arith.constant 0 : i32
    %c0_i32_0 = arith.constant 0 : i32
    %c0_i32_1 = arith.constant 0 : i32
    return %c0_i32, %c0_i32_0 : i32, i32
  }
  func.func @transform_17(%arg0: i32, %arg1: i32) -> (i32, i32) {
    %c0_i32 = arith.constant 0 : i32
    %c0_i32_0 = arith.constant 0 : i32
    %c0_i32_1 = arith.constant 0 : i32
    return %c0_i32, %c0_i32_0 : i32, i32
  }
  func.func @transform_18(%arg0: i32, %arg1: i32) -> (i32, i32, i32) {
    %c0_i32 = arith.constant 0 : i32
    %c0_i32_0 = arith.constant 0 : i32
    return %arg0, %arg1, %c0_i32 : i32, i32, i32
  }
}

module attributes {stable_mosaic.version = 11 : i64} {
  func.func @encoder_layer_kernel(%arg0: i32, %arg1: i32, %arg2: memref<1x32x16xbf16, #tpu.memory_space<vmem>>, %arg3: memref<1x8x32xf32, #tpu.memory_space<vmem>>, %arg4: memref<1x4x8x8xf32, #tpu.memory_space<vmem>>, %arg5: memref<1x4x8x16xf32, #tpu.memory_space<vmem>>, %arg6: memref<32x32xbf16, #tpu.memory_space<vmem>>, %arg7: memref<32x1xf32, #tpu.memory_space<vmem>>, %arg8: memref<32x32xbf16, #tpu.memory_space<vmem>>, %arg9: memref<32x1xf32, #tpu.memory_space<vmem>>, %arg10: memref<32x32xbf16, #tpu.memory_space<vmem>>, %arg11: memref<1x32xf32, #tpu.memory_space<vmem>>, %arg12: memref<1x32xf32, #tpu.memory_space<vmem>>, %arg13: memref<1x32xf32, #tpu.memory_space<vmem>>, %arg14: memref<32x64xbf16, #tpu.memory_space<vmem>>, %arg15: memref<1x64xf32, #tpu.memory_space<vmem>>, %arg16: memref<64x32xbf16, #tpu.memory_space<vmem>>, %arg17: memref<1x32xf32, #tpu.memory_space<vmem>>, %arg18: memref<1x32xf32, #tpu.memory_space<vmem>>, %arg19: memref<1x32xf32, #tpu.memory_space<vmem>>, %arg20: memref<1x8x32xf32, #tpu.memory_space<vmem>>, %arg21: memref<32x16xf32, #tpu.memory_space<vmem>>, %arg22: memref<32x16xf32, #tpu.memory_space<vmem>>) attributes {dimension_semantics = [#tpu.dimension_semantics<parallel>, #tpu.dimension_semantics<arbitrary>], iteration_bounds = array<i64: 2, 2>, scalar_prefetch = 0 : i64, scratch_operands = 2 : i64, tpu.core_type = #tpu.core_type<tc>, window_params = [{transform_indices = @transform_0, window_bounds = array<i64: 1, 32, 16>}, {transform_indices = @transform_1, window_bounds = array<i64: 1, 8, 32>}, {transform_indices = @transform_2, window_bounds = array<i64: 1, 4, 8, 8>}, {transform_indices = @transform_3, window_bounds = array<i64: 1, 4, 8, 16>}, {pipeline_mode = #tpu.pipeline_mode<synchronous>, transform_indices = @transform_4, window_bounds = array<i64: 32, 32>}, {pipeline_mode = #tpu.pipeline_mode<synchronous>, transform_indices = @transform_5, window_bounds = array<i64: 32, 1>}, {pipeline_mode = #tpu.pipeline_mode<synchronous>, transform_indices = @transform_6, window_bounds = array<i64: 32, 32>}, {pipeline_mode = #tpu.pipeline_mode<synchronous>, transform_indices = @transform_7, window_bounds = array<i64: 32, 1>}, {pipeline_mode = #tpu.pipeline_mode<synchronous>, transform_indices = @transform_8, window_bounds = array<i64: 32, 32>}, {pipeline_mode = #tpu.pipeline_mode<synchronous>, transform_indices = @transform_9, window_bounds = array<i64: 1, 32>}, {pipeline_mode = #tpu.pipeline_mode<synchronous>, transform_indices = @transform_10, window_bounds = array<i64: 1, 32>}, {pipeline_mode = #tpu.pipeline_mode<synchronous>, transform_indices = @transform_11, window_bounds = array<i64: 1, 32>}, {pipeline_mode = #tpu.pipeline_mode<synchronous>, transform_indices = @transform_12, window_bounds = array<i64: 32, 64>}, {pipeline_mode = #tpu.pipeline_mode<synchronous>, transform_indices = @transform_13, window_bounds = array<i64: 1, 64>}, {pipeline_mode = #tpu.pipeline_mode<synchronous>, transform_indices = @transform_14, window_bounds = array<i64: 64, 32>}, {pipeline_mode = #tpu.pipeline_mode<synchronous>, transform_indices = @transform_15, window_bounds = array<i64: 1, 32>}, {pipeline_mode = #tpu.pipeline_mode<synchronous>, transform_indices = @transform_16, window_bounds = array<i64: 1, 32>}, {pipeline_mode = #tpu.pipeline_mode<synchronous>, transform_indices = @transform_17, window_bounds = array<i64: 1, 32>}, {transform_indices = @transform_18, window_bounds = array<i64: 1, 8, 32>}]} {
    %c0_i32 = arith.constant 0 : i32
    %0 = arith.cmpi eq, %arg1, %c0_i32 : i32
    %1 = arith.extui %0 : i1 to i32
    %c0_i32_0 = arith.constant 0 : i32
    %2 = arith.cmpi ne, %1, %c0_i32_0 : i32
    scf.if %2 {
      %c0_74 = arith.constant 0 : index
      %c0_75 = arith.constant 0 : index
      %c0_76 = arith.constant 0 : index
      %190 = vector.load %arg2[%c0_74, %c0_75, %c0_76] : memref<1x32x16xbf16, #tpu.memory_space<vmem>>, vector<1x32x16xbf16>
      %191 = vector.shape_cast %190 : vector<1x32x16xbf16> to vector<32x16xbf16>
      %c0_77 = arith.constant 0 : index
      %c0_78 = arith.constant 0 : index
      %192 = vector.load %arg6[%c0_77, %c0_78] : memref<32x32xbf16, #tpu.memory_space<vmem>>, vector<32x32xbf16>
      %cst_79 = arith.constant dense<0.000000e+00> : vector<32x16xf32>
      %193 = tpu.matmul %192, %191, %cst_79 {dimension_numbers = #tpu.dot_dimension_numbers<[1], [0], [0], [1], [0, 0, 1, 1], [], []>} : vector<32x32xbf16>, vector<32x16xbf16>, vector<32x16xf32> -> vector<32x16xf32>
      %c0_80 = arith.constant 0 : index
      %c0_81 = arith.constant 0 : index
      %194 = vector.load %arg7[%c0_80, %c0_81] : memref<32x1xf32, #tpu.memory_space<vmem>>, vector<32x1xf32>
      %195 = vector.broadcast %194 : vector<32x1xf32> to vector<32x16xf32>
      %196 = arith.addf %193, %195 : vector<32x16xf32>
      %c0_82 = arith.constant 0 : index
      %c0_83 = arith.constant 0 : index
      %197 = vector.load %arg21[%c0_82, %c0_83] : memref<32x16xf32, #tpu.memory_space<vmem>>, vector<32x16xf32>
      tpu.vector_store %arg21[%c0_82, %c0_83], %196 {strides = array<i32>} : memref<32x16xf32, #tpu.memory_space<vmem>>, vector<32x16xf32>,
      %c0_84 = arith.constant 0 : index
      %c0_85 = arith.constant 0 : index
      %198 = vector.load %arg8[%c0_84, %c0_85] : memref<32x32xbf16, #tpu.memory_space<vmem>>, vector<32x32xbf16>
      %cst_86 = arith.constant dense<0.000000e+00> : vector<32x16xf32>
      %199 = tpu.matmul %198, %191, %cst_86 {dimension_numbers = #tpu.dot_dimension_numbers<[1], [0], [0], [1], [0, 0, 1, 1], [], []>} : vector<32x32xbf16>, vector<32x16xbf16>, vector<32x16xf32> -> vector<32x16xf32>
      %c0_87 = arith.constant 0 : index
      %c0_88 = arith.constant 0 : index
      %200 = vector.load %arg9[%c0_87, %c0_88] : memref<32x1xf32, #tpu.memory_space<vmem>>, vector<32x1xf32>
      %201 = vector.broadcast %200 : vector<32x1xf32> to vector<32x16xf32>
      %202 = arith.addf %199, %201 : vector<32x16xf32>
      %c0_89 = arith.constant 0 : index
      %c0_90 = arith.constant 0 : index
      %203 = vector.load %arg22[%c0_89, %c0_90] : memref<32x16xf32, #tpu.memory_space<vmem>>, vector<32x16xf32>
      tpu.vector_store %arg22[%c0_89, %c0_90], %202 {strides = array<i32>} : memref<32x16xf32, #tpu.memory_space<vmem>>, vector<32x16xf32>,
    } else {
    }
    %c0 = arith.constant 0 : index
    %c0_1 = arith.constant 0 : index
    %3 = vector.load %arg21[%c0, %c0_1] : memref<32x16xf32, #tpu.memory_space<vmem>>, vector<32x16xf32>
    %c0_2 = arith.constant 0 : index
    %c0_3 = arith.constant 0 : index
    %4 = vector.load %arg22[%c0_2, %c0_3] : memref<32x16xf32, #tpu.memory_space<vmem>>, vector<32x16xf32>
    %c0_4 = arith.constant 0 : index
    %c0_5 = arith.constant 0 : index
    %c0_6 = arith.constant 0 : index
    %c0_7 = arith.constant 0 : index
    %5 = vector.load %arg4[%c0_4, %c0_5, %c0_6, %c0_7] : memref<1x4x8x8xf32, #tpu.memory_space<vmem>>, vector<1x4x8x8xf32>
    %6 = vector.shape_cast %5 : vector<1x4x8x8xf32> to vector<4x8x8xf32>
    %c0_8 = arith.constant 0 : index
    %c0_9 = arith.constant 0 : index
    %c0_10 = arith.constant 0 : index
    %c0_11 = arith.constant 0 : index
    %7 = vector.load %arg5[%c0_8, %c0_9, %c0_10, %c0_11] : memref<1x4x8x16xf32, #tpu.memory_space<vmem>>, vector<1x4x8x16xf32>
    %8 = vector.shape_cast %7 : vector<1x4x8x16xf32> to vector<4x8x16xf32>
    %cst = arith.constant 0.000000e+00 : f32
    %9 = vector.broadcast %cst : f32 to vector<8x32xf32>
    %10 = vector.extract_strided_slice %6 {offsets = [0, 0, 0], sizes = [1, 8, 8], strides = [1, 1, 1]} : vector<4x8x8xf32> to vector<1x8x8xf32>
    %11 = vector.shape_cast %10 : vector<1x8x8xf32> to vector<8x8xf32>
    %12 = arith.truncf %11 : vector<8x8xf32> to vector<8x8xbf16>
    %13 = vector.extract_strided_slice %3 {offsets = [0, 0], sizes = [8, 16], strides = [1, 1]} : vector<32x16xf32> to vector<8x16xf32>
    %14 = arith.truncf %13 : vector<8x16xf32> to vector<8x16xbf16>
    %15 = vector.extract_strided_slice %4 {offsets = [0, 0], sizes = [8, 16], strides = [1, 1]} : vector<32x16xf32> to vector<8x16xf32>
    %16 = arith.truncf %15 : vector<8x16xf32> to vector<8x16xbf16>
    %cst_12 = arith.constant dense<0.000000e+00> : vector<8x16xf32>
    %17 = tpu.matmul %12, %14, %cst_12 {dimension_numbers = #tpu.dot_dimension_numbers<[1], [0], [0], [1], [0, 0, 1, 1], [], []>} : vector<8x8xbf16>, vector<8x16xbf16>, vector<8x16xf32> -> vector<8x16xf32>
    %18 = vector.extract_strided_slice %8 {offsets = [0, 0, 0], sizes = [1, 8, 16], strides = [1, 1, 1]} : vector<4x8x16xf32> to vector<1x8x16xf32>
    %19 = vector.shape_cast %18 : vector<1x8x16xf32> to vector<8x16xf32>
    %20 = arith.addf %17, %19 : vector<8x16xf32>
    %cst_13 = arith.constant dense<0xFF800000> : vector<8xf32>
    %21 = vector.multi_reduction <maximumf>, %20, %cst_13 [1] : vector<8x16xf32> to vector<8xf32>
    %22 = vector.shape_cast %21 : vector<8xf32> to vector<8x1xf32>
    %23 = vector.broadcast %22 : vector<8x1xf32> to vector<8x16xf32>
    %24 = arith.subf %20, %23 : vector<8x16xf32>
    %25 = math.exp %24 : vector<8x16xf32>
    %cst_14 = arith.constant dense<0.000000e+00> : vector<8xf32>
    %26 = vector.multi_reduction <add>, %25, %cst_14 [1] : vector<8x16xf32> to vector<8xf32>
    %27 = vector.shape_cast %26 : vector<8xf32> to vector<8x1xf32>
    %28 = tpu.reciprocal %27 {approx = true} : vector<8x1xf32> -> vector<8x1xf32>
    %29 = vector.broadcast %28 : vector<8x1xf32> to vector<8x16xf32>
    %30 = arith.mulf %25, %29 : vector<8x16xf32>
    %31 = arith.truncf %30 : vector<8x16xf32> to vector<8x16xbf16>
    %cst_15 = arith.constant dense<0.000000e+00> : vector<8x8xf32>
    %32 = tpu.matmul %31, %16, %cst_15 {dimension_numbers = #tpu.dot_dimension_numbers<[1], [1], [0], [0], [0, 0, 1, 0], [], []>} : vector<8x16xbf16>, vector<8x16xbf16>, vector<8x8xf32> -> vector<8x8xf32>
    %33 = arith.truncf %32 : vector<8x8xf32> to vector<8x8xbf16>
    %c0_16 = arith.constant 0 : index
    %c0_17 = arith.constant 0 : index
    %34 = vector.load %arg10[%c0_16, %c0_17] : memref<32x32xbf16, #tpu.memory_space<vmem>>, vector<8x32xbf16>
    %cst_18 = arith.constant dense<0.000000e+00> : vector<8x32xf32>
    %35 = tpu.matmul %33, %34, %cst_18 {dimension_numbers = #tpu.dot_dimension_numbers<[1], [0], [0], [1], [0, 0, 1, 1], [], []>} : vector<8x8xbf16>, vector<8x32xbf16>, vector<8x32xf32> -> vector<8x32xf32>
    %36 = arith.addf %9, %35 : vector<8x32xf32>
    %37 = vector.extract_strided_slice %6 {offsets = [1, 0, 0], sizes = [1, 8, 8], strides = [1, 1, 1]} : vector<4x8x8xf32> to vector<1x8x8xf32>
    %38 = vector.shape_cast %37 : vector<1x8x8xf32> to vector<8x8xf32>
    %39 = arith.truncf %38 : vector<8x8xf32> to vector<8x8xbf16>
    %40 = vector.extract_strided_slice %3 {offsets = [8, 0], sizes = [8, 16], strides = [1, 1]} : vector<32x16xf32> to vector<8x16xf32>
    %41 = arith.truncf %40 : vector<8x16xf32> to vector<8x16xbf16>
    %42 = vector.extract_strided_slice %4 {offsets = [8, 0], sizes = [8, 16], strides = [1, 1]} : vector<32x16xf32> to vector<8x16xf32>
    %43 = arith.truncf %42 : vector<8x16xf32> to vector<8x16xbf16>
    %cst_19 = arith.constant dense<0.000000e+00> : vector<8x16xf32>
    %44 = tpu.matmul %39, %41, %cst_19 {dimension_numbers = #tpu.dot_dimension_numbers<[1], [0], [0], [1], [0, 0, 1, 1], [], []>} : vector<8x8xbf16>, vector<8x16xbf16>, vector<8x16xf32> -> vector<8x16xf32>
    %45 = vector.extract_strided_slice %8 {offsets = [1, 0, 0], sizes = [1, 8, 16], strides = [1, 1, 1]} : vector<4x8x16xf32> to vector<1x8x16xf32>
    %46 = vector.shape_cast %45 : vector<1x8x16xf32> to vector<8x16xf32>
    %47 = arith.addf %44, %46 : vector<8x16xf32>
    %cst_20 = arith.constant dense<0xFF800000> : vector<8xf32>
    %48 = vector.multi_reduction <maximumf>, %47, %cst_20 [1] : vector<8x16xf32> to vector<8xf32>
    %49 = vector.shape_cast %48 : vector<8xf32> to vector<8x1xf32>
    %50 = vector.broadcast %49 : vector<8x1xf32> to vector<8x16xf32>
    %51 = arith.subf %47, %50 : vector<8x16xf32>
    %52 = math.exp %51 : vector<8x16xf32>
    %cst_21 = arith.constant dense<0.000000e+00> : vector<8xf32>
    %53 = vector.multi_reduction <add>, %52, %cst_21 [1] : vector<8x16xf32> to vector<8xf32>
    %54 = vector.shape_cast %53 : vector<8xf32> to vector<8x1xf32>
    %55 = tpu.reciprocal %54 {approx = true} : vector<8x1xf32> -> vector<8x1xf32>
    %56 = vector.broadcast %55 : vector<8x1xf32> to vector<8x16xf32>
    %57 = arith.mulf %52, %56 : vector<8x16xf32>
    %58 = arith.truncf %57 : vector<8x16xf32> to vector<8x16xbf16>
    %cst_22 = arith.constant dense<0.000000e+00> : vector<8x8xf32>
    %59 = tpu.matmul %58, %43, %cst_22 {dimension_numbers = #tpu.dot_dimension_numbers<[1], [1], [0], [0], [0, 0, 1, 0], [], []>} : vector<8x16xbf16>, vector<8x16xbf16>, vector<8x8xf32> -> vector<8x8xf32>
    %60 = arith.truncf %59 : vector<8x8xf32> to vector<8x8xbf16>
    %c8 = arith.constant 8 : index
    %c0_23 = arith.constant 0 : index
    %61 = vector.load %arg10[%c8, %c0_23] : memref<32x32xbf16, #tpu.memory_space<vmem>>, vector<8x32xbf16>
    %cst_24 = arith.constant dense<0.000000e+00> : vector<8x32xf32>
    %62 = tpu.matmul %60, %61, %cst_24 {dimension_numbers = #tpu.dot_dimension_numbers<[1], [0], [0], [1], [0, 0, 1, 1], [], []>} : vector<8x8xbf16>, vector<8x32xbf16>, vector<8x32xf32> -> vector<8x32xf32>
    %63 = arith.addf %36, %62 : vector<8x32xf32>
    %64 = vector.extract_strided_slice %6 {offsets = [2, 0, 0], sizes = [1, 8, 8], strides = [1, 1, 1]} : vector<4x8x8xf32> to vector<1x8x8xf32>
    %65 = vector.shape_cast %64 : vector<1x8x8xf32> to vector<8x8xf32>
    %66 = arith.truncf %65 : vector<8x8xf32> to vector<8x8xbf16>
    %67 = vector.extract_strided_slice %3 {offsets = [16, 0], sizes = [8, 16], strides = [1, 1]} : vector<32x16xf32> to vector<8x16xf32>
    %68 = arith.truncf %67 : vector<8x16xf32> to vector<8x16xbf16>
    %69 = vector.extract_strided_slice %4 {offsets = [16, 0], sizes = [8, 16], strides = [1, 1]} : vector<32x16xf32> to vector<8x16xf32>
    %70 = arith.truncf %69 : vector<8x16xf32> to vector<8x16xbf16>
    %cst_25 = arith.constant dense<0.000000e+00> : vector<8x16xf32>
    %71 = tpu.matmul %66, %68, %cst_25 {dimension_numbers = #tpu.dot_dimension_numbers<[1], [0], [0], [1], [0, 0, 1, 1], [], []>} : vector<8x8xbf16>, vector<8x16xbf16>, vector<8x16xf32> -> vector<8x16xf32>
    %72 = vector.extract_strided_slice %8 {offsets = [2, 0, 0], sizes = [1, 8, 16], strides = [1, 1, 1]} : vector<4x8x16xf32> to vector<1x8x16xf32>
    %73 = vector.shape_cast %72 : vector<1x8x16xf32> to vector<8x16xf32>
    %74 = arith.addf %71, %73 : vector<8x16xf32>
    %cst_26 = arith.constant dense<0xFF800000> : vector<8xf32>
    %75 = vector.multi_reduction <maximumf>, %74, %cst_26 [1] : vector<8x16xf32> to vector<8xf32>
    %76 = vector.shape_cast %75 : vector<8xf32> to vector<8x1xf32>
    %77 = vector.broadcast %76 : vector<8x1xf32> to vector<8x16xf32>
    %78 = arith.subf %74, %77 : vector<8x16xf32>
    %79 = math.exp %78 : vector<8x16xf32>
    %cst_27 = arith.constant dense<0.000000e+00> : vector<8xf32>
    %80 = vector.multi_reduction <add>, %79, %cst_27 [1] : vector<8x16xf32> to vector<8xf32>
    %81 = vector.shape_cast %80 : vector<8xf32> to vector<8x1xf32>
    %82 = tpu.reciprocal %81 {approx = true} : vector<8x1xf32> -> vector<8x1xf32>
    %83 = vector.broadcast %82 : vector<8x1xf32> to vector<8x16xf32>
    %84 = arith.mulf %79, %83 : vector<8x16xf32>
    %85 = arith.truncf %84 : vector<8x16xf32> to vector<8x16xbf16>
    %cst_28 = arith.constant dense<0.000000e+00> : vector<8x8xf32>
    %86 = tpu.matmul %85, %70, %cst_28 {dimension_numbers = #tpu.dot_dimension_numbers<[1], [1], [0], [0], [0, 0, 1, 0], [], []>} : vector<8x16xbf16>, vector<8x16xbf16>, vector<8x8xf32> -> vector<8x8xf32>
    %87 = arith.truncf %86 : vector<8x8xf32> to vector<8x8xbf16>
    %c16 = arith.constant 16 : index
    %c0_29 = arith.constant 0 : index
    %88 = vector.load %arg10[%c16, %c0_29] : memref<32x32xbf16, #tpu.memory_space<vmem>>, vector<8x32xbf16>
    %cst_30 = arith.constant dense<0.000000e+00> : vector<8x32xf32>
    %89 = tpu.matmul %87, %88, %cst_30 {dimension_numbers = #tpu.dot_dimension_numbers<[1], [0], [0], [1], [0, 0, 1, 1], [], []>} : vector<8x8xbf16>, vector<8x32xbf16>, vector<8x32xf32> -> vector<8x32xf32>
    %90 = arith.addf %63, %89 : vector<8x32xf32>
    %91 = vector.extract_strided_slice %6 {offsets = [3, 0, 0], sizes = [1, 8, 8], strides = [1, 1, 1]} : vector<4x8x8xf32> to vector<1x8x8xf32>
    %92 = vector.shape_cast %91 : vector<1x8x8xf32> to vector<8x8xf32>
    %93 = arith.truncf %92 : vector<8x8xf32> to vector<8x8xbf16>
    %94 = vector.extract_strided_slice %3 {offsets = [24, 0], sizes = [8, 16], strides = [1, 1]} : vector<32x16xf32> to vector<8x16xf32>
    %95 = arith.truncf %94 : vector<8x16xf32> to vector<8x16xbf16>
    %96 = vector.extract_strided_slice %4 {offsets = [24, 0], sizes = [8, 16], strides = [1, 1]} : vector<32x16xf32> to vector<8x16xf32>
    %97 = arith.truncf %96 : vector<8x16xf32> to vector<8x16xbf16>
    %cst_31 = arith.constant dense<0.000000e+00> : vector<8x16xf32>
    %98 = tpu.matmul %93, %95, %cst_31 {dimension_numbers = #tpu.dot_dimension_numbers<[1], [0], [0], [1], [0, 0, 1, 1], [], []>} : vector<8x8xbf16>, vector<8x16xbf16>, vector<8x16xf32> -> vector<8x16xf32>
    %99 = vector.extract_strided_slice %8 {offsets = [3, 0, 0], sizes = [1, 8, 16], strides = [1, 1, 1]} : vector<4x8x16xf32> to vector<1x8x16xf32>
    %100 = vector.shape_cast %99 : vector<1x8x16xf32> to vector<8x16xf32>
    %101 = arith.addf %98, %100 : vector<8x16xf32>
    %cst_32 = arith.constant dense<0xFF800000> : vector<8xf32>
    %102 = vector.multi_reduction <maximumf>, %101, %cst_32 [1] : vector<8x16xf32> to vector<8xf32>
    %103 = vector.shape_cast %102 : vector<8xf32> to vector<8x1xf32>
    %104 = vector.broadcast %103 : vector<8x1xf32> to vector<8x16xf32>
    %105 = arith.subf %101, %104 : vector<8x16xf32>
    %106 = math.exp %105 : vector<8x16xf32>
    %cst_33 = arith.constant dense<0.000000e+00> : vector<8xf32>
    %107 = vector.multi_reduction <add>, %106, %cst_33 [1] : vector<8x16xf32> to vector<8xf32>
    %108 = vector.shape_cast %107 : vector<8xf32> to vector<8x1xf32>
    %109 = tpu.reciprocal %108 {approx = true} : vector<8x1xf32> -> vector<8x1xf32>
    %110 = vector.broadcast %109 : vector<8x1xf32> to vector<8x16xf32>
    %111 = arith.mulf %106, %110 : vector<8x16xf32>
    %112 = arith.truncf %111 : vector<8x16xf32> to vector<8x16xbf16>
    %cst_34 = arith.constant dense<0.000000e+00> : vector<8x8xf32>
    %113 = tpu.matmul %112, %97, %cst_34 {dimension_numbers = #tpu.dot_dimension_numbers<[1], [1], [0], [0], [0, 0, 1, 0], [], []>} : vector<8x16xbf16>, vector<8x16xbf16>, vector<8x8xf32> -> vector<8x8xf32>
    %114 = arith.truncf %113 : vector<8x8xf32> to vector<8x8xbf16>
    %c24 = arith.constant 24 : index
    %c0_35 = arith.constant 0 : index
    %115 = vector.load %arg10[%c24, %c0_35] : memref<32x32xbf16, #tpu.memory_space<vmem>>, vector<8x32xbf16>
    %cst_36 = arith.constant dense<0.000000e+00> : vector<8x32xf32>
    %116 = tpu.matmul %114, %115, %cst_36 {dimension_numbers = #tpu.dot_dimension_numbers<[1], [0], [0], [1], [0, 0, 1, 1], [], []>} : vector<8x8xbf16>, vector<8x32xbf16>, vector<8x32xf32> -> vector<8x32xf32>
    %117 = arith.addf %90, %116 : vector<8x32xf32>
    %c0_37 = arith.constant 0 : index
    %c0_38 = arith.constant 0 : index
    %118 = vector.load %arg11[%c0_37, %c0_38] : memref<1x32xf32, #tpu.memory_space<vmem>>, vector<1x32xf32>
    %119 = vector.broadcast %118 : vector<1x32xf32> to vector<8x32xf32>
    %120 = arith.addf %117, %119 : vector<8x32xf32>
    %c0_39 = arith.constant 0 : index
    %c0_40 = arith.constant 0 : index
    %c0_41 = arith.constant 0 : index
    %121 = vector.load %arg3[%c0_39, %c0_40, %c0_41] : memref<1x8x32xf32, #tpu.memory_space<vmem>>, vector<1x8x32xf32>
    %122 = vector.shape_cast %121 : vector<1x8x32xf32> to vector<8x32xf32>
    %123 = arith.addf %122, %120 : vector<8x32xf32>
    %c0_42 = arith.constant 0 : index
    %c0_43 = arith.constant 0 : index
    %124 = vector.load %arg12[%c0_42, %c0_43] : memref<1x32xf32, #tpu.memory_space<vmem>>, vector<1x32xf32>
    %c0_44 = arith.constant 0 : index
    %c0_45 = arith.constant 0 : index
    %125 = vector.load %arg13[%c0_44, %c0_45] : memref<1x32xf32, #tpu.memory_space<vmem>>, vector<1x32xf32>
    %cst_46 = arith.constant dense<0.000000e+00> : vector<8xf32>
    %126 = vector.multi_reduction <add>, %123, %cst_46 [1] : vector<8x32xf32> to vector<8xf32>
    %127 = vector.shape_cast %126 : vector<8xf32> to vector<8x1xf32>
    %cst_47 = arith.constant 3.200000e+01 : f32
    %128 = vector.broadcast %cst_47 : f32 to vector<8x1xf32>
    %129 = arith.divf %127, %128 : vector<8x1xf32>
    %130 = vector.broadcast %129 : vector<8x1xf32> to vector<8x32xf32>
    %131 = arith.subf %123, %130 : vector<8x32xf32>
    %132 = arith.mulf %131, %131 : vector<8x32xf32>
    %cst_48 = arith.constant dense<0.000000e+00> : vector<8xf32>
    %133 = vector.multi_reduction <add>, %132, %cst_48 [1] : vector<8x32xf32> to vector<8xf32>
    %134 = vector.shape_cast %133 : vector<8xf32> to vector<8x1xf32>
    %cst_49 = arith.constant 3.200000e+01 : f32
    %135 = vector.broadcast %cst_49 : f32 to vector<8x1xf32>
    %136 = arith.divf %134, %135 : vector<8x1xf32>
    %137 = vector.broadcast %129 : vector<8x1xf32> to vector<8x32xf32>
    %138 = arith.subf %123, %137 : vector<8x32xf32>
    %cst_50 = arith.constant 9.99999997E-7 : f32
    %139 = vector.broadcast %cst_50 : f32 to vector<8x1xf32>
    %140 = arith.addf %136, %139 : vector<8x1xf32>
    %141 = math.rsqrt %140 : vector<8x1xf32>
    %142 = vector.broadcast %141 : vector<8x1xf32> to vector<8x32xf32>
    %143 = arith.mulf %138, %142 : vector<8x32xf32>
    %144 = vector.broadcast %124 : vector<1x32xf32> to vector<8x32xf32>
    %145 = arith.mulf %143, %144 : vector<8x32xf32>
    %146 = vector.broadcast %125 : vector<1x32xf32> to vector<8x32xf32>
    %147 = arith.addf %145, %146 : vector<8x32xf32>
    %148 = arith.truncf %147 : vector<8x32xf32> to vector<8x32xbf16>
    %c0_51 = arith.constant 0 : index
    %c0_52 = arith.constant 0 : index
    %149 = vector.load %arg14[%c0_51, %c0_52] : memref<32x64xbf16, #tpu.memory_space<vmem>>, vector<32x64xbf16>
    %cst_53 = arith.constant dense<0.000000e+00> : vector<8x64xf32>
    %150 = tpu.matmul %148, %149, %cst_53 {dimension_numbers = #tpu.dot_dimension_numbers<[1], [0], [0], [1], [0, 0, 1, 1], [], []>} : vector<8x32xbf16>, vector<32x64xbf16>, vector<8x64xf32> -> vector<8x64xf32>
    %c0_54 = arith.constant 0 : index
    %c0_55 = arith.constant 0 : index
    %151 = vector.load %arg15[%c0_54, %c0_55] : memref<1x64xf32, #tpu.memory_space<vmem>>, vector<1x64xf32>
    %152 = vector.broadcast %151 : vector<1x64xf32> to vector<8x64xf32>
    %153 = arith.addf %150, %152 : vector<8x64xf32>
    %cst_56 = arith.constant 0.000000e+00 : f32
    %154 = vector.broadcast %cst_56 : f32 to vector<8x64xf32>
    %155 = arith.maximumf %153, %154 : vector<8x64xf32>
    %156 = arith.truncf %155 : vector<8x64xf32> to vector<8x64xbf16>
    %c0_57 = arith.constant 0 : index
    %c0_58 = arith.constant 0 : index
    %157 = vector.load %arg16[%c0_57, %c0_58] : memref<64x32xbf16, #tpu.memory_space<vmem>>, vector<64x32xbf16>
    %cst_59 = arith.constant dense<0.000000e+00> : vector<8x32xf32>
    %158 = tpu.matmul %156, %157, %cst_59 {dimension_numbers = #tpu.dot_dimension_numbers<[1], [0], [0], [1], [0, 0, 1, 1], [], []>} : vector<8x64xbf16>, vector<64x32xbf16>, vector<8x32xf32> -> vector<8x32xf32>
    %c0_60 = arith.constant 0 : index
    %c0_61 = arith.constant 0 : index
    %159 = vector.load %arg17[%c0_60, %c0_61] : memref<1x32xf32, #tpu.memory_space<vmem>>, vector<1x32xf32>
    %160 = vector.broadcast %159 : vector<1x32xf32> to vector<8x32xf32>
    %161 = arith.addf %158, %160 : vector<8x32xf32>
    %162 = arith.addf %147, %161 : vector<8x32xf32>
    %c0_62 = arith.constant 0 : index
    %c0_63 = arith.constant 0 : index
    %163 = vector.load %arg18[%c0_62, %c0_63] : memref<1x32xf32, #tpu.memory_space<vmem>>, vector<1x32xf32>
    %c0_64 = arith.constant 0 : index
    %c0_65 = arith.constant 0 : index
    %164 = vector.load %arg19[%c0_64, %c0_65] : memref<1x32xf32, #tpu.memory_space<vmem>>, vector<1x32xf32>
    %cst_66 = arith.constant dense<0.000000e+00> : vector<8xf32>
    %165 = vector.multi_reduction <add>, %162, %cst_66 [1] : vector<8x32xf32> to vector<8xf32>
    %166 = vector.shape_cast %165 : vector<8xf32> to vector<8x1xf32>
    %cst_67 = arith.constant 3.200000e+01 : f32
    %167 = vector.broadcast %cst_67 : f32 to vector<8x1xf32>
    %168 = arith.divf %166, %167 : vector<8x1xf32>
    %169 = vector.broadcast %168 : vector<8x1xf32> to vector<8x32xf32>
    %170 = arith.subf %162, %169 : vector<8x32xf32>
    %171 = arith.mulf %170, %170 : vector<8x32xf32>
    %cst_68 = arith.constant dense<0.000000e+00> : vector<8xf32>
    %172 = vector.multi_reduction <add>, %171, %cst_68 [1] : vector<8x32xf32> to vector<8xf32>
    %173 = vector.shape_cast %172 : vector<8xf32> to vector<8x1xf32>
    %cst_69 = arith.constant 3.200000e+01 : f32
    %174 = vector.broadcast %cst_69 : f32 to vector<8x1xf32>
    %175 = arith.divf %173, %174 : vector<8x1xf32>
    %176 = vector.broadcast %168 : vector<8x1xf32> to vector<8x32xf32>
    %177 = arith.subf %162, %176 : vector<8x32xf32>
    %cst_70 = arith.constant 9.99999997E-7 : f32
    %178 = vector.broadcast %cst_70 : f32 to vector<8x1xf32>
    %179 = arith.addf %175, %178 : vector<8x1xf32>
    %180 = math.rsqrt %179 : vector<8x1xf32>
    %181 = vector.broadcast %180 : vector<8x1xf32> to vector<8x32xf32>
    %182 = arith.mulf %177, %181 : vector<8x32xf32>
    %183 = vector.broadcast %163 : vector<1x32xf32> to vector<8x32xf32>
    %184 = arith.mulf %182, %183 : vector<8x32xf32>
    %185 = vector.broadcast %164 : vector<1x32xf32> to vector<8x32xf32>
    %186 = arith.addf %184, %185 : vector<8x32xf32>
    %c0_71 = arith.constant 0 : index
    %c0_72 = arith.constant 0 : index
    %c0_73 = arith.constant 0 : index
    %187 = vector.load %arg20[%c0_71, %c0_72, %c0_73] : memref<1x8x32xf32, #tpu.memory_space<vmem>>, vector<1x8x32xf32>
    %188 = vector.shape_cast %187 : vector<1x8x32xf32> to vector<8x32xf32>
    %189 = vector.shape_cast %186 : vector<8x32xf32> to vector<1x8x32xf32>
    tpu.vector_store %arg20[%c0_71, %c0_72, %c0_73], %189 {strides = array<i32>} : memref<1x8x32xf32, #tpu.memory_space<vmem>>, vector<1x8x32xf32>,
    return
  }
  func.func @transform_0(%arg0: i32, %arg1: i32) -> (i32, i32, i32) {
    %c0_i32 = arith.constant 0 : i32
    %c0_i32_0 = arith.constant 0 : i32
    %c0_i32_1 = arith.constant 0 : i32
    return %arg0, %c0_i32, %c0_i32_0 : i32, i32, i32
  }
  func.func @transform_1(%arg0: i32, %arg1: i32) -> (i32, i32, i32) {
    %c0_i32 = arith.constant 0 : i32
    %c0_i32_0 = arith.constant 0 : i32
    return %arg0, %arg1, %c0_i32 : i32, i32, i32
  }
  func.func @transform_2(%arg0: i32, %arg1: i32) -> (i32, i32, i32, i32) {
    %c0_i32 = arith.constant 0 : i32
    %c0_i32_0 = arith.constant 0 : i32
    %c0_i32_1 = arith.constant 0 : i32
    return %arg0, %c0_i32, %arg1, %c0_i32_0 : i32, i32, i32, i32
  }
  func.func @transform_3(%arg0: i32, %arg1: i32) -> (i32, i32, i32, i32) {
    %c0_i32 = arith.constant 0 : i32
    %c0_i32_0 = arith.constant 0 : i32
    %c0_i32_1 = arith.constant 0 : i32
    return %arg0, %c0_i32, %arg1, %c0_i32_0 : i32, i32, i32, i32
  }
  func.func @transform_4(%arg0: i32, %arg1: i32) -> (i32, i32) {
    %c0_i32 = arith.constant 0 : i32
    %c0_i32_0 = arith.constant 0 : i32
    %c0_i32_1 = arith.constant 0 : i32
    return %c0_i32, %c0_i32_0 : i32, i32
  }
  func.func @transform_5(%arg0: i32, %arg1: i32) -> (i32, i32) {
    %c0_i32 = arith.constant 0 : i32
    %c0_i32_0 = arith.constant 0 : i32
    %c0_i32_1 = arith.constant 0 : i32
    return %c0_i32, %c0_i32_0 : i32, i32
  }
  func.func @transform_6(%arg0: i32, %arg1: i32) -> (i32, i32) {
    %c0_i32 = arith.constant 0 : i32
    %c0_i32_0 = arith.constant 0 : i32
    %c0_i32_1 = arith.constant 0 : i32
    return %c0_i32, %c0_i32_0 : i32, i32
  }
  func.func @transform_7(%arg0: i32, %arg1: i32) -> (i32, i32) {
    %c0_i32 = arith.constant 0 : i32
    %c0_i32_0 = arith.constant 0 : i32
    %c0_i32_1 = arith.constant 0 : i32
    return %c0_i32, %c0_i32_0 : i32, i32
  }
  func.func @transform_8(%arg0: i32, %arg1: i32) -> (i32, i32) {
    %c0_i32 = arith.constant 0 : i32
    %c0_i32_0 = arith.constant 0 : i32
    %c0_i32_1 = arith.constant 0 : i32
    return %c0_i32, %c0_i32_0 : i32, i32
  }
  func.func @transform_9(%arg0: i32, %arg1: i32) -> (i32, i32) {
    %c0_i32 = arith.constant 0 : i32
    %c0_i32_0 = arith.constant 0 : i32
    %c0_i32_1 = arith.constant 0 : i32
    return %c0_i32, %c0_i32_0 : i32, i32
  }
  func.func @transform_10(%arg0: i32, %arg1: i32) -> (i32, i32) {
    %c0_i32 = arith.constant 0 : i32
    %c0_i32_0 = arith.constant 0 : i32
    %c0_i32_1 = arith.constant 0 : i32
    return %c0_i32, %c0_i32_0 : i32, i32
  }
  func.func @transform_11(%arg0: i32, %arg1: i32) -> (i32, i32) {
    %c0_i32 = arith.constant 0 : i32
    %c0_i32_0 = arith.constant 0 : i32
    %c0_i32_1 = arith.constant 0 : i32
    return %c0_i32, %c0_i32_0 : i32, i32
  }
  func.func @transform_12(%arg0: i32, %arg1: i32) -> (i32, i32) {
    %c0_i32 = arith.constant 0 : i32
    %c0_i32_0 = arith.constant 0 : i32
    %c0_i32_1 = arith.constant 0 : i32
    return %c0_i32, %c0_i32_0 : i32, i32
  }
  func.func @transform_13(%arg0: i32, %arg1: i32) -> (i32, i32) {
    %c0_i32 = arith.constant 0 : i32
    %c0_i32_0 = arith.constant 0 : i32
    %c0_i32_1 = arith.constant 0 : i32
    return %c0_i32, %c0_i32_0 : i32, i32
  }
  func.func @transform_14(%arg0: i32, %arg1: i32) -> (i32, i32) {
    %c0_i32 = arith.constant 0 : i32
    %c0_i32_0 = arith.constant 0 : i32
    %c0_i32_1 = arith.constant 0 : i32
    return %c0_i32, %c0_i32_0 : i32, i32
  }
  func.func @transform_15(%arg0: i32, %arg1: i32) -> (i32, i32) {
    %c0_i32 = arith.constant 0 : i32
    %c0_i32_0 = arith.constant 0 : i32
    %c0_i32_1 = arith.constant 0 : i32
    return %c0_i32, %c0_i32_0 : i32, i32
  }
  func.func @transform_16(%arg0: i32, %arg1: i32) -> (i32, i32) {
    %c0_i32 = arith.constant 0 : i32
    %c0_i32_0 = arith.constant 0 : i32
    %c0_i32_1 = arith.constant 0 : i32
    return %c0_i32, %c0_i32_0 : i32, i32
  }
  func.func @transform_17(%arg0: i32, %arg1: i32) -> (i32, i32) {
    %c0_i32 = arith.constant 0 : i32
    %c0_i32_0 = arith.constant 0 : i32
    %c0_i32_1 = arith.constant 0 : i32
    return %c0_i32, %c0_i32_0 : i32, i32
  }
  func.func @transform_18(%arg0: i32, %arg1: i32) -> (i32, i32, i32) {
    %c0_i32 = arith.constant 0 : i32
    %c0_i32_0 = arith.constant 0 : i32
    return %arg0, %arg1, %c0_i32 : i32, i32, i32
  }
}

</mosaic_0001>

<llo_original>
// kernel: extended_encoder_forward.3
$region0: #{extended_encoder_forward.3}
  #allocation0 [shape = 'u32[]', space=smem, size = 0x4, offset = 0x4, fixed_abs, tag = 'smem constant byte address 0x4 - core index']
  #allocation1 [shape = 'u32[72,128]{1,0:T(1,128)}', space=vmem, size = 0x9000, scoped, tag = 'internal scratch']
  #allocation2 [shape = 'f32[32,16]{1,0:T(8,128)}', space=vmem, size = 0x4000, scoped, tag = 'scratch operand']
  #allocation3 [shape = 'f32[32,16]{1,0:T(8,128)}', space=vmem, size = 0x4000, scoped, tag = 'scratch operand']
  %s0 = inlined_call_operand.vmem [shape: bf16[2,32,16], index: 0, kind: input, shape index: {}]
  %s1 = inlined_call_operand.vmem [shape: f32[2,16,32], index: 1, kind: input, shape index: {}]
  %s2 = inlined_call_operand.vmem [shape: f32[2,4,16,8], index: 2, kind: input, shape index: {}]
  %s3 = inlined_call_operand.vmem [shape: f32[2,4,16,16], index: 3, kind: input, shape index: {}]
  %s4 = inlined_call_operand.vmem [shape: bf16[32,32], index: 4, kind: input, shape index: {}]
  %s5 = inlined_call_operand.vmem [shape: f32[32,1], index: 5, kind: input, shape index: {}]
  %s6 = inlined_call_operand.vmem [shape: bf16[32,32], index: 6, kind: input, shape index: {}]
  %s7 = inlined_call_operand.vmem [shape: f32[32,1], index: 7, kind: input, shape index: {}]
  %s8 = inlined_call_operand.vmem [shape: bf16[32,32], index: 8, kind: input, shape index: {}]
  %s9 = inlined_call_operand.vmem [shape: f32[1,32], index: 9, kind: input, shape index: {}]
  %s10 = inlined_call_operand.vmem [shape: f32[1,32], index: 10, kind: input, shape index: {}]
  %s11 = inlined_call_operand.vmem [shape: f32[1,32], index: 11, kind: input, shape index: {}]
  %s12 = inlined_call_operand.vmem [shape: bf16[32,64], index: 12, kind: input, shape index: {}]
  %s13 = inlined_call_operand.vmem [shape: f32[1,64], index: 13, kind: input, shape index: {}]
  %s14 = inlined_call_operand.vmem [shape: bf16[64,32], index: 14, kind: input, shape index: {}]
  %s15 = inlined_call_operand.vmem [shape: f32[1,32], index: 15, kind: input, shape index: {}]
  %s16 = inlined_call_operand.vmem [shape: f32[1,32], index: 16, kind: input, shape index: {}]
  %s17 = inlined_call_operand.vmem [shape: f32[1,32], index: 17, kind: input, shape index: {}]
  %s18 = inlined_call_operand.hbm [shape: f32[2,16,32], index: 18, kind: output, shape index: {}]
  %s19 = sld [smem:[#allocation0]]
  $region185: #{extended_encoder_forward.3} parent=0
    _
  %s21 = ssub.s32 1, %s19
  %s22 = scalar_select 0, %s21, %s19
  $region1: #{extended_encoder_forward.3} parent=0
    #allocation4 [shape = 'u8[32768]{0}', space=vmem, size = 0x8000, scoped, tag = 'input window, operand 2']
    #allocation5 [shape = 'u8[32768]{0}', space=vmem, size = 0x8000, scoped, tag = 'input window, operand 3']
    #allocation6 [shape = 'u8[8192]{0}', space=vmem, size = 0x2000, scoped, tag = 'output window, operand 0']
    #allocation7 [shape = 's32[2]{0}', space=sflag, size = 0x8, scoped, tag = 'scoped memory for extended_encoder_forward.3']
    %23 = vsyncpa [#allocation7], 0
    %s24 = scalar_lea.sflag [#allocation7], 1
    %25 = vsyncpa %s24, 0
    loop: start=0, step=1, limit=6
    $region2: #{extended_encoder_forward.3} parent=1 // loop_pre_header
      _
    $region3: #{extended_encoder_forward.3} parent=1 // loop_header
      %s27 = sphi 0, %s31
      %p28 = scmp.ge.s32.totalorder %s27, 6
      %s34 = sphi 0, %s46
      %s35 = sphi 0, %s42
      %s36 = sphi 0, %s34
      %s37 = sphi 0, %s35
      %s38 = sphi 0, %s36
      %s39 = sphi 0, %s37
      %s49 = sphi 0, %s51
      %s52 = sphi 0, %s49
      %s53 = sphi 0, %s52
      %s69 = sphi 0, %s53
      %s77 = sphi 0, %s79
      %s80 = sphi 0, %s77
      %s81 = sphi 0, %s80
      %s97 = sphi 0, %s81
      %s105 = sphi 0, %s107
      %s108 = sphi 0, %s105
      %s109 = sphi 0, %s108
      %s125 = sphi 0, %s109
      %s133 = sphi 0, %s135
      %s136 = sphi 0, %s133
      %s137 = sphi 0, %s136
      %s153 = sphi 0, %s137
      %s157 = sphi 0, %s157
      %s159 = sphi 0, %s157
      %s160 = sphi 0, %s159
      %s174 = sphi 0, %s160
      %s178 = sphi 0, %s178
      %s180 = sphi 0, %s178
      %s181 = sphi 0, %s180
      %s195 = sphi 0, %s181
      %s199 = sphi 0, %s199
      %s201 = sphi 0, %s199
      %s202 = sphi 0, %s201
      %s216 = sphi 0, %s202
      %s220 = sphi 0, %s220
      %s222 = sphi 0, %s220
      %s223 = sphi 0, %s222
      %s237 = sphi 0, %s223
      %s241 = sphi 0, %s241
      %s243 = sphi 0, %s241
      %s244 = sphi 0, %s243
      %s258 = sphi 0, %s244
      %s262 = sphi 0, %s262
      %s264 = sphi 0, %s262
      %s265 = sphi 0, %s264
      %s279 = sphi 0, %s265
      %s283 = sphi 0, %s283
      %s285 = sphi 0, %s283
      %s286 = sphi 0, %s285
      %s300 = sphi 0, %s286
      %s304 = sphi 0, %s304
      %s306 = sphi 0, %s304
      %s307 = sphi 0, %s306
      %s321 = sphi 0, %s307
      %s325 = sphi 0, %s325
      %s327 = sphi 0, %s325
      %s328 = sphi 0, %s327
      %s342 = sphi 0, %s328
      %s346 = sphi 0, %s346
      %s348 = sphi 0, %s346
      %s349 = sphi 0, %s348
      %s363 = sphi 0, %s349
      %s367 = sphi 0, %s367
      %s369 = sphi 0, %s367
      %s370 = sphi 0, %s369
      %s384 = sphi 0, %s370
      %s388 = sphi 0, %s388
      %s390 = sphi 0, %s388
      %s391 = sphi 0, %s390
      %s405 = sphi 0, %s391
      %s409 = sphi 0, %s409
      %s411 = sphi 0, %s409
      %s412 = sphi 0, %s411
      %s426 = sphi 0, %s412
      %s430 = sphi 0, %s430
      %s432 = sphi 0, %s430
      %s433 = sphi 0, %s432
      %s447 = sphi 0, %s433
      %s455 = sphi 0, %s457
      %s458 = sphi 0, %s455
      %s459 = sphi 0, %s458
      %s475 = sphi 0, %s459
    $region4: #{extended_encoder_forward.3} parent=1 // loop_header_branch
      %30 = sbr.rel (%p28) target = $region8
    $region5: #{extended_encoder_forward.3} parent=1 // loop_body
      %s32 = ssub.s32 %s27, 1
      %s33 = ssub.s32 %s27, 2
      %s40 = sadd.s32 1, %s35
      %p41 = scmp.ge.s32.totalorder %s40, 2
      %s42 = scalar_select %p41, 0, %s40
      %s43 = sadd.s32 1, %s34
      %s44 = scalar_select %p41, %s43, %s34
      %p45 = scmp.ge.s32.totalorder %s44, 2
      %s46 = scalar_select %p45, 0, %s44
      %s47 = ssub.s32 %s34, %s46
      %p48 = scmp.eq.s32.totalorder %s47, 0
      %s50 = sadd.s32 %s49, 1
      %s51 = scalar_select %p48, %s49, %s50
      %p54 = pneg %p48
      %p55 = scmp.eq.s32.totalorder %s27, 3
      %p56 = por %p54, %p55
      %p57 = scmp.ne.s32.totalorder %s49, %s52
      %p58 = scmp.eq.s32.totalorder %s27, 0
      %p59 = por %p57, %p58
      %p60 = scmp.ne.s32.totalorder %s49, %s52
      %p61 = scmp.eq.s32.totalorder %s32, 3
      %p62 = por %p60, %p61
      %p63 = scmp.ne.s32.totalorder %s52, %s53
      %p64 = scmp.eq.s32.totalorder %s32, 0
      %p65 = por %p63, %p64
      %p66 = scmp.ne.s32.totalorder %s52, %s53
      %p67 = scmp.eq.s32.totalorder %s33, 3
      %p68 = por %p66, %p67
      %p70 = scmp.ne.s32.totalorder %s53, %s69
      %p71 = scmp.eq.s32.totalorder %s33, 0
      %p72 = por %p70, %p71
      %s73 = ssub.s32 %s34, %s46
      %s74 = ssub.s32 %s35, %s42
      %s75 = sor.u32 %s73, %s74
      %p76 = scmp.eq.s32.totalorder %s75, 0
      %s78 = sadd.s32 %s77, 1
      %s79 = scalar_select %p76, %s77, %s78
      %p82 = pneg %p76
      %p83 = scmp.eq.s32.totalorder %s27, 3
      %p84 = por %p82, %p83
      %p85 = scmp.ne.s32.totalorder %s77, %s80
      %p86 = scmp.eq.s32.totalorder %s27, 0
      %p87 = por %p85, %p86
      %p88 = scmp.ne.s32.totalorder %s77, %s80
      %p89 = scmp.eq.s32.totalorder %s32, 3
      %p90 = por %p88, %p89
      %p91 = scmp.ne.s32.totalorder %s80, %s81
      %p92 = scmp.eq.s32.totalorder %s32, 0
      %p93 = por %p91, %p92
      %p94 = scmp.ne.s32.totalorder %s80, %s81
      %p95 = scmp.eq.s32.totalorder %s33, 3
      %p96 = por %p94, %p95
      %p98 = scmp.ne.s32.totalorder %s81, %s97
      %p99 = scmp.eq.s32.totalorder %s33, 0
      %p100 = por %p98, %p99
      %s101 = ssub.s32 %s34, %s46
      %s102 = ssub.s32 %s35, %s42
      %s103 = sor.u32 %s101, %s102
      %p104 = scmp.eq.s32.totalorder %s103, 0
      %s106 = sadd.s32 %s105, 1
      %s107 = scalar_select %p104, %s105, %s106
      %p110 = pneg %p104
      %p111 = scmp.eq.s32.totalorder %s27, 3
      %p112 = por %p110, %p111
      %p113 = scmp.ne.s32.totalorder %s105, %s108
      %p114 = scmp.eq.s32.totalorder %s27, 0
      %p115 = por %p113, %p114
      %p116 = scmp.ne.s32.totalorder %s105, %s108
      %p117 = scmp.eq.s32.totalorder %s32, 3
      %p118 = por %p116, %p117
      %p119 = scmp.ne.s32.totalorder %s108, %s109
      %p120 = scmp.eq.s32.totalorder %s32, 0
      %p121 = por %p119, %p120
      %p122 = scmp.ne.s32.totalorder %s108, %s109
      %p123 = scmp.eq.s32.totalorder %s33, 3
      %p124 = por %p122, %p123
      %p126 = scmp.ne.s32.totalorder %s109, %s125
      %p127 = scmp.eq.s32.totalorder %s33, 0
      %p128 = por %p126, %p127
      %s129 = ssub.s32 %s34, %s46
      %s130 = ssub.s32 %s35, %s42
      %s131 = sor.u32 %s129, %s130
      %p132 = scmp.eq.s32.totalorder %s131, 0
      %s134 = sadd.s32 %s133, 1
      %s135 = scalar_select %p132, %s133, %s134
      %p138 = pneg %p132
      %p139 = scmp.eq.s32.totalorder %s27, 3
      %p140 = por %p138, %p139
      %p141 = scmp.ne.s32.totalorder %s133, %s136
      %p142 = scmp.eq.s32.totalorder %s27, 0
      %p143 = por %p141, %p142
      %p144 = scmp.ne.s32.totalorder %s133, %s136
      %p145 = scmp.eq.s32.totalorder %s32, 3
      %p146 = por %p144, %p145
      %p147 = scmp.ne.s32.totalorder %s136, %s137
      %p148 = scmp.eq.s32.totalorder %s32, 0
      %p149 = por %p147, %p148
      %p150 = scmp.ne.s32.totalorder %s136, %s137
      %p151 = scmp.eq.s32.totalorder %s33, 3
      %p152 = por %p150, %p151
      %p154 = scmp.ne.s32.totalorder %s137, %s153
      %p155 = scmp.eq.s32.totalorder %s33, 0
      %p156 = por %p154, %p155
      %s158 = sadd.s32 %s157, 1
      %p161 = scmp.eq.s32.totalorder %s27, 3
      %p162 = scmp.ne.s32.totalorder %s157, %s159
      %p163 = scmp.eq.s32.totalorder %s27, 0
      %p164 = por %p162, %p163
      %p165 = scmp.ne.s32.totalorder %s157, %s159
      %p166 = scmp.eq.s32.totalorder %s32, 3
      %p167 = por %p165, %p166
      %p168 = scmp.ne.s32.totalorder %s159, %s160
      %p169 = scmp.eq.s32.totalorder %s32, 0
      %p170 = por %p168, %p169
      %p171 = scmp.ne.s32.totalorder %s159, %s160
      %p172 = scmp.eq.s32.totalorder %s33, 3
      %p173 = por %p171, %p172
      %p175 = scmp.ne.s32.totalorder %s160, %s174
      %p176 = scmp.eq.s32.totalorder %s33, 0
      %p177 = por %p175, %p176
      %s179 = sadd.s32 %s178, 1
      %p182 = scmp.eq.s32.totalorder %s27, 3
      %p183 = scmp.ne.s32.totalorder %s178, %s180
      %p184 = scmp.eq.s32.totalorder %s27, 0
      %p185 = por %p183, %p184
      %p186 = scmp.ne.s32.totalorder %s178, %s180
      %p187 = scmp.eq.s32.totalorder %s32, 3
      %p188 = por %p186, %p187
      %p189 = scmp.ne.s32.totalorder %s180, %s181
      %p190 = scmp.eq.s32.totalorder %s32, 0
      %p191 = por %p189, %p190
      %p192 = scmp.ne.s32.totalorder %s180, %s181
      %p193 = scmp.eq.s32.totalorder %s33, 3
      %p194 = por %p192, %p193
      %p196 = scmp.ne.s32.totalorder %s181, %s195
      %p197 = scmp.eq.s32.totalorder %s33, 0
      %p198 = por %p196, %p197
      %s200 = sadd.s32 %s199, 1
      %p203 = scmp.eq.s32.totalorder %s27, 3
      %p204 = scmp.ne.s32.totalorder %s199, %s201
      %p205 = scmp.eq.s32.totalorder %s27, 0
      %p206 = por %p204, %p205
      %p207 = scmp.ne.s32.totalorder %s199, %s201
      %p208 = scmp.eq.s32.totalorder %s32, 3
      %p209 = por %p207, %p208
      %p210 = scmp.ne.s32.totalorder %s201, %s202
      %p211 = scmp.eq.s32.totalorder %s32, 0
      %p212 = por %p210, %p211
      %p213 = scmp.ne.s32.totalorder %s201, %s202
      %p214 = scmp.eq.s32.totalorder %s33, 3
      %p215 = por %p213, %p214
      %p217 = scmp.ne.s32.totalorder %s202, %s216
      %p218 = scmp.eq.s32.totalorder %s33, 0
      %p219 = por %p217, %p218
      %s221 = sadd.s32 %s220, 1
      %p224 = scmp.eq.s32.totalorder %s27, 3
      %p225 = scmp.ne.s32.totalorder %s220, %s222
      %p226 = scmp.eq.s32.totalorder %s27, 0
      %p227 = por %p225, %p226
      %p228 = scmp.ne.s32.totalorder %s220, %s222
      %p229 = scmp.eq.s32.totalorder %s32, 3
      %p230 = por %p228, %p229
      %p231 = scmp.ne.s32.totalorder %s222, %s223
      %p232 = scmp.eq.s32.totalorder %s32, 0
      %p233 = por %p231, %p232
      %p234 = scmp.ne.s32.totalorder %s222, %s223
      %p235 = scmp.eq.s32.totalorder %s33, 3
      %p236 = por %p234, %p235
      %p238 = scmp.ne.s32.totalorder %s223, %s237
      %p239 = scmp.eq.s32.totalorder %s33, 0
      %p240 = por %p238, %p239
      %s242 = sadd.s32 %s241, 1
      %p245 = scmp.eq.s32.totalorder %s27, 3
      %p246 = scmp.ne.s32.totalorder %s241, %s243
      %p247 = scmp.eq.s32.totalorder %s27, 0
      %p248 = por %p246, %p247
      %p249 = scmp.ne.s32.totalorder %s241, %s243
      %p250 = scmp.eq.s32.totalorder %s32, 3
      %p251 = por %p249, %p250
      %p252 = scmp.ne.s32.totalorder %s243, %s244
      %p253 = scmp.eq.s32.totalorder %s32, 0
      %p254 = por %p252, %p253
      %p255 = scmp.ne.s32.totalorder %s243, %s244
      %p256 = scmp.eq.s32.totalorder %s33, 3
      %p257 = por %p255, %p256
      %p259 = scmp.ne.s32.totalorder %s244, %s258
      %p260 = scmp.eq.s32.totalorder %s33, 0
      %p261 = por %p259, %p260
      %s263 = sadd.s32 %s262, 1
      %p266 = scmp.eq.s32.totalorder %s27, 3
      %p267 = scmp.ne.s32.totalorder %s262, %s264
      %p268 = scmp.eq.s32.totalorder %s27, 0
      %p269 = por %p267, %p268
      %p270 = scmp.ne.s32.totalorder %s262, %s264
      %p271 = scmp.eq.s32.totalorder %s32, 3
      %p272 = por %p270, %p271
      %p273 = scmp.ne.s32.totalorder %s264, %s265
      %p274 = scmp.eq.s32.totalorder %s32, 0
      %p275 = por %p273, %p274
      %p276 = scmp.ne.s32.totalorder %s264, %s265
      %p277 = scmp.eq.s32.totalorder %s33, 3
      %p278 = por %p276, %p277
      %p280 = scmp.ne.s32.totalorder %s265, %s279
      %p281 = scmp.eq.s32.totalorder %s33, 0
      %p282 = por %p280, %p281
      %s284 = sadd.s32 %s283, 1
      %p287 = scmp.eq.s32.totalorder %s27, 3
      %p288 = scmp.ne.s32.totalorder %s283, %s285
      %p289 = scmp.eq.s32.totalorder %s27, 0
      %p290 = por %p288, %p289
      %p291 = scmp.ne.s32.totalorder %s283, %s285
      %p292 = scmp.eq.s32.totalorder %s32, 3
      %p293 = por %p291, %p292
      %p294 = scmp.ne.s32.totalorder %s285, %s286
      %p295 = scmp.eq.s32.totalorder %s32, 0
      %p296 = por %p294, %p295
      %p297 = scmp.ne.s32.totalorder %s285, %s286
      %p298 = scmp.eq.s32.totalorder %s33, 3
      %p299 = por %p297, %p298
      %p301 = scmp.ne.s32.totalorder %s286, %s300
      %p302 = scmp.eq.s32.totalorder %s33, 0
      %p303 = por %p301, %p302
      %s305 = sadd.s32 %s304, 1
      %p308 = scmp.eq.s32.totalorder %s27, 3
      %p309 = scmp.ne.s32.totalorder %s304, %s306
      %p310 = scmp.eq.s32.totalorder %s27, 0
      %p311 = por %p309, %p310
      %p312 = scmp.ne.s32.totalorder %s304, %s306
      %p313 = scmp.eq.s32.totalorder %s32, 3
      %p314 = por %p312, %p313
      %p315 = scmp.ne.s32.totalorder %s306, %s307
      %p316 = scmp.eq.s32.totalorder %s32, 0
      %p317 = por %p315, %p316
      %p318 = scmp.ne.s32.totalorder %s306, %s307
      %p319 = scmp.eq.s32.totalorder %s33, 3
      %p320 = por %p318, %p319
      %p322 = scmp.ne.s32.totalorder %s307, %s321
      %p323 = scmp.eq.s32.totalorder %s33, 0
      %p324 = por %p322, %p323
      %s326 = sadd.s32 %s325, 1
      %p329 = scmp.eq.s32.totalorder %s27, 3
      %p330 = scmp.ne.s32.totalorder %s325, %s327
      %p331 = scmp.eq.s32.totalorder %s27, 0
      %p332 = por %p330, %p331
      %p333 = scmp.ne.s32.totalorder %s325, %s327
      %p334 = scmp.eq.s32.totalorder %s32, 3
      %p335 = por %p333, %p334
      %p336 = scmp.ne.s32.totalorder %s327, %s328
      %p337 = scmp.eq.s32.totalorder %s32, 0
      %p338 = por %p336, %p337
      %p339 = scmp.ne.s32.totalorder %s327, %s328
      %p340 = scmp.eq.s32.totalorder %s33, 3
      %p341 = por %p339, %p340
      %p343 = scmp.ne.s32.totalorder %s328, %s342
      %p344 = scmp.eq.s32.totalorder %s33, 0
      %p345 = por %p343, %p344
      %s347 = sadd.s32 %s346, 1
      %p350 = scmp.eq.s32.totalorder %s27, 3
      %p351 = scmp.ne.s32.totalorder %s346, %s348
      %p352 = scmp.eq.s32.totalorder %s27, 0
      %p353 = por %p351, %p352
      %p354 = scmp.ne.s32.totalorder %s346, %s348
      %p355 = scmp.eq.s32.totalorder %s32, 3
      %p356 = por %p354, %p355
      %p357 = scmp.ne.s32.totalorder %s348, %s349
      %p358 = scmp.eq.s32.totalorder %s32, 0
      %p359 = por %p357, %p358
      %p360 = scmp.ne.s32.totalorder %s348, %s349
      %p361 = scmp.eq.s32.totalorder %s33, 3
      %p362 = por %p360, %p361
      %p364 = scmp.ne.s32.totalorder %s349, %s363
      %p365 = scmp.eq.s32.totalorder %s33, 0
      %p366 = por %p364, %p365
      %s368 = sadd.s32 %s367, 1
      %p371 = scmp.eq.s32.totalorder %s27, 3
      %p372 = scmp.ne.s32.totalorder %s367, %s369
      %p373 = scmp.eq.s32.totalorder %s27, 0
      %p374 = por %p372, %p373
      %p375 = scmp.ne.s32.totalorder %s367, %s369
      %p376 = scmp.eq.s32.totalorder %s32, 3
      %p377 = por %p375, %p376
      %p378 = scmp.ne.s32.totalorder %s369, %s370
      %p379 = scmp.eq.s32.totalorder %s32, 0
      %p380 = por %p378, %p379
      %p381 = scmp.ne.s32.totalorder %s369, %s370
      %p382 = scmp.eq.s32.totalorder %s33, 3
      %p383 = por %p381, %p382
      %p385 = scmp.ne.s32.totalorder %s370, %s384
      %p386 = scmp.eq.s32.totalorder %s33, 0
      %p387 = por %p385, %p386
      %s389 = sadd.s32 %s388, 1
      %p392 = scmp.eq.s32.totalorder %s27, 3
      %p393 = scmp.ne.s32.totalorder %s388, %s390
      %p394 = scmp.eq.s32.totalorder %s27, 0
      %p395 = por %p393, %p394
      %p396 = scmp.ne.s32.totalorder %s388, %s390
      %p397 = scmp.eq.s32.totalorder %s32, 3
      %p398 = por %p396, %p397
      %p399 = scmp.ne.s32.totalorder %s390, %s391
      %p400 = scmp.eq.s32.totalorder %s32, 0
      %p401 = por %p399, %p400
      %p402 = scmp.ne.s32.totalorder %s390, %s391
      %p403 = scmp.eq.s32.totalorder %s33, 3
      %p404 = por %p402, %p403
      %p406 = scmp.ne.s32.totalorder %s391, %s405
      %p407 = scmp.eq.s32.totalorder %s33, 0
      %p408 = por %p406, %p407
      %s410 = sadd.s32 %s409, 1
      %p413 = scmp.eq.s32.totalorder %s27, 3
      %p414 = scmp.ne.s32.totalorder %s409, %s411
      %p415 = scmp.eq.s32.totalorder %s27, 0
      %p416 = por %p414, %p415
      %p417 = scmp.ne.s32.totalorder %s409, %s411
      %p418 = scmp.eq.s32.totalorder %s32, 3
      %p419 = por %p417, %p418
      %p420 = scmp.ne.s32.totalorder %s411, %s412
      %p421 = scmp.eq.s32.totalorder %s32, 0
      %p422 = por %p420, %p421
      %p423 = scmp.ne.s32.totalorder %s411, %s412
      %p424 = scmp.eq.s32.totalorder %s33, 3
      %p425 = por %p423, %p424
      %p427 = scmp.ne.s32.totalorder %s412, %s426
      %p428 = scmp.eq.s32.totalorder %s33, 0
      %p429 = por %p427, %p428
      %s431 = sadd.s32 %s430, 1
      %p434 = scmp.eq.s32.totalorder %s27, 3
      %p435 = scmp.ne.s32.totalorder %s430, %s432
      %p436 = scmp.eq.s32.totalorder %s27, 0
      %p437 = por %p435, %p436
      %p438 = scmp.ne.s32.totalorder %s430, %s432
      %p439 = scmp.eq.s32.totalorder %s32, 3
      %p440 = por %p438, %p439
      %p441 = scmp.ne.s32.totalorder %s432, %s433
      %p442 = scmp.eq.s32.totalorder %s32, 0
      %p443 = por %p441, %p442
      %p444 = scmp.ne.s32.totalorder %s432, %s433
      %p445 = scmp.eq.s32.totalorder %s33, 3
      %p446 = por %p444, %p445
      %p448 = scmp.ne.s32.totalorder %s433, %s447
      %p449 = scmp.eq.s32.totalorder %s33, 0
      %p450 = por %p448, %p449
      %s451 = ssub.s32 %s34, %s46
      %s452 = ssub.s32 %s35, %s42
      %s453 = sor.u32 %s451, %s452
      %p454 = scmp.eq.s32.totalorder %s453, 0
      %s456 = sadd.s32 %s455, 1
      %s457 = scalar_select %p454, %s455, %s456
      %p460 = pneg %p454
      %p461 = scmp.eq.s32.totalorder %s27, 3
      %p462 = por %p460, %p461
      %p463 = scmp.ne.s32.totalorder %s455, %s458
      %p464 = scmp.eq.s32.totalorder %s27, 0
      %p465 = por %p463, %p464
      %p466 = scmp.ne.s32.totalorder %s455, %s458
      %p467 = scmp.eq.s32.totalorder %s32, 3
      %p468 = por %p466, %p467
      %p469 = scmp.ne.s32.totalorder %s458, %s459
      %p470 = scmp.eq.s32.totalorder %s32, 0
      %p471 = por %p469, %p470
      %p472 = scmp.ne.s32.totalorder %s458, %s459
      %p473 = scmp.eq.s32.totalorder %s33, 3
      %p474 = por %p472, %p473
      %p476 = scmp.ne.s32.totalorder %s459, %s475
      %p477 = scmp.eq.s32.totalorder %s33, 0
      %p478 = por %p476, %p477
      %p479 = scmp.le.s32.totalorder 1, %s27
      %p480 = scmp.lt.s32.totalorder %s27, 5
      %p481 = pnand %p479, %p480
      %p482 = pneg %p481
      // Predicated region
      $region9: #{extended_encoder_forward.3} parent=5 // pred_check
        _
      $region10: #{extended_encoder_forward.3} parent=5 // pred_check_branch
        %484 = sbr.rel (%p481) target = $region12
      $region11: #{extended_encoder_forward.3} parent=5 // pred_region
        %s485 = ssub.s32 %s27, 1
        // Predicated region
        $region13: #{extended_encoder_forward.3} parent=11 // pred_check
          %p486 = pneg %p170
        $region14: #{extended_encoder_forward.3} parent=11 // pred_check_branch
          %488 = sbr.rel (%p486) target = $region16
        $region15: #{extended_encoder_forward.3} parent=11 // pred_region
          _
        $region16: #{extended_encoder_forward.3} parent=11 // pred_fallthru
          _
        // Predicated region
        $region17: #{extended_encoder_forward.3} parent=11 // pred_check
          %p489 = pneg %p191
        $region18: #{extended_encoder_forward.3} parent=11 // pred_check_branch
          %491 = sbr.rel (%p489) target = $region20
        $region19: #{extended_encoder_forward.3} parent=11 // pred_region
          _
        $region20: #{extended_encoder_forward.3} parent=11 // pred_fallthru
          _
        // Predicated region
        $region21: #{extended_encoder_forward.3} parent=11 // pred_check
          %p492 = pneg %p212
        $region22: #{extended_encoder_forward.3} parent=11 // pred_check_branch
          %494 = sbr.rel (%p492) target = $region24
        $region23: #{extended_encoder_forward.3} parent=11 // pred_region
          _
        $region24: #{extended_encoder_forward.3} parent=11 // pred_fallthru
          _
        // Predicated region
        $region25: #{extended_encoder_forward.3} parent=11 // pred_check
          %p495 = pneg %p233
        $region26: #{extended_encoder_forward.3} parent=11 // pred_check_branch
          %497 = sbr.rel (%p495) target = $region28
        $region27: #{extended_encoder_forward.3} parent=11 // pred_region
          _
        $region28: #{extended_encoder_forward.3} parent=11 // pred_fallthru
          _
        // Predicated region
        $region29: #{extended_encoder_forward.3} parent=11 // pred_check
          %p498 = pneg %p254
        $region30: #{extended_encoder_forward.3} parent=11 // pred_check_branch
          %500 = sbr.rel (%p498) target = $region32
        $region31: #{extended_encoder_forward.3} parent=11 // pred_region
          _
        $region32: #{extended_encoder_forward.3} parent=11 // pred_fallthru
          _
        // Predicated region
        $region33: #{extended_encoder_forward.3} parent=11 // pred_check
          %p501 = pneg %p275
        $region34: #{extended_encoder_forward.3} parent=11 // pred_check_branch
          %503 = sbr.rel (%p501) target = $region36
        $region35: #{extended_encoder_forward.3} parent=11 // pred_region
          _
        $region36: #{extended_encoder_forward.3} parent=11 // pred_fallthru
          _
        // Predicated region
        $region37: #{extended_encoder_forward.3} parent=11 // pred_check
          %p504 = pneg %p296
        $region38: #{extended_encoder_forward.3} parent=11 // pred_check_branch
          %506 = sbr.rel (%p504) target = $region40
        $region39: #{extended_encoder_forward.3} parent=11 // pred_region
          _
        $region40: #{extended_encoder_forward.3} parent=11 // pred_fallthru
          _
        // Predicated region
        $region41: #{extended_encoder_forward.3} parent=11 // pred_check
          %p507 = pneg %p317
        $region42: #{extended_encoder_forward.3} parent=11 // pred_check_branch
          %509 = sbr.rel (%p507) target = $region44
        $region43: #{extended_encoder_forward.3} parent=11 // pred_region
          _
        $region44: #{extended_encoder_forward.3} parent=11 // pred_fallthru
          _
        // Predicated region
        $region45: #{extended_encoder_forward.3} parent=11 // pred_check
          %p510 = pneg %p338
        $region46: #{extended_encoder_forward.3} parent=11 // pred_check_branch
          %512 = sbr.rel (%p510) target = $region48
        $region47: #{extended_encoder_forward.3} parent=11 // pred_region
          _
        $region48: #{extended_encoder_forward.3} parent=11 // pred_fallthru
          _
        // Predicated region
        $region49: #{extended_encoder_forward.3} parent=11 // pred_check
          %p513 = pneg %p359
        $region50: #{extended_encoder_forward.3} parent=11 // pred_check_branch
          %515 = sbr.rel (%p513) target = $region52
        $region51: #{extended_encoder_forward.3} parent=11 // pred_region
          _
        $region52: #{extended_encoder_forward.3} parent=11 // pred_fallthru
          _
        // Predicated region
        $region53: #{extended_encoder_forward.3} parent=11 // pred_check
          %p516 = pneg %p380
        $region54: #{extended_encoder_forward.3} parent=11 // pred_check_branch
          %518 = sbr.rel (%p516) target = $region56
        $region55: #{extended_encoder_forward.3} parent=11 // pred_region
          _
        $region56: #{extended_encoder_forward.3} parent=11 // pred_fallthru
          _
        // Predicated region
        $region57: #{extended_encoder_forward.3} parent=11 // pred_check
          %p519 = pneg %p401
        $region58: #{extended_encoder_forward.3} parent=11 // pred_check_branch
          %521 = sbr.rel (%p519) target = $region60
        $region59: #{extended_encoder_forward.3} parent=11 // pred_region
          _
        $region60: #{extended_encoder_forward.3} parent=11 // pred_fallthru
          _
        // Predicated region
        $region61: #{extended_encoder_forward.3} parent=11 // pred_check
          %p522 = pneg %p422
        $region62: #{extended_encoder_forward.3} parent=11 // pred_check_branch
          %524 = sbr.rel (%p522) target = $region64
        $region63: #{extended_encoder_forward.3} parent=11 // pred_region
          _
        $region64: #{extended_encoder_forward.3} parent=11 // pred_fallthru
          _
        // Predicated region
        $region65: #{extended_encoder_forward.3} parent=11 // pred_check
          %p525 = pneg %p443
        $region66: #{extended_encoder_forward.3} parent=11 // pred_check_branch
          %527 = sbr.rel (%p525) target = $region68
        $region67: #{extended_encoder_forward.3} parent=11 // pred_region
          _
        $region68: #{extended_encoder_forward.3} parent=11 // pred_fallthru
          _
      $region12: #{extended_encoder_forward.3} parent=5 // pred_fallthru
        _
      %p528 = scmp.lt.s32.totalorder %s27, 4
      // Predicated region
      $region69: #{extended_encoder_forward.3} parent=5 // pred_check
        %p529 = pneg %p528
      $region70: #{extended_encoder_forward.3} parent=5 // pred_check_branch
        %531 = sbr.rel (%p529) target = $region72
      $region71: #{extended_encoder_forward.3} parent=5 // pred_region
        // Predicated region
        $region73: #{extended_encoder_forward.3} parent=71 // pred_check
          %p532 = pneg %p59
        $region74: #{extended_encoder_forward.3} parent=71 // pred_check_branch
          %534 = sbr.rel (%p532) target = $region76
        $region75: #{extended_encoder_forward.3} parent=71 // pred_region
          %p535 = scmp.lt.s32.totalorder %s34, 1
          %s536 = scalar_select %p535, %s34, 1
          %s537 = smul.addr %s536, 4
          %s538 = smul.addr %s537, 4
          %s539 = scalar_lea.vmem %s0, %s538
        $region76: #{extended_encoder_forward.3} parent=71 // pred_fallthru
          _
        // Predicated region
        $region77: #{extended_encoder_forward.3} parent=71 // pred_check
          %p540 = pneg %p87
        $region78: #{extended_encoder_forward.3} parent=71 // pred_check_branch
          %542 = sbr.rel (%p540) target = $region80
        $region79: #{extended_encoder_forward.3} parent=71 // pred_region
          %p543 = scmp.lt.s32.totalorder %s34, 1
          %s544 = scalar_select %p543, %s34, 1
          %p545 = scmp.lt.s32.totalorder %s35, 1
          %s546 = scalar_select %p545, %s35, 1
          %s547 = smul.addr %s544, 2
          %s548 = sadd.s32 %s546, %s547
          %s549 = smul.addr %s548, 8
          %s550 = scalar_lea.vmem %s1, %s549
        $region80: #{extended_encoder_forward.3} parent=71 // pred_fallthru
          _
        // Predicated region
        $region81: #{extended_encoder_forward.3} parent=71 // pred_check
          %p551 = pneg %p115
        $region82: #{extended_encoder_forward.3} parent=71 // pred_check_branch
          %553 = sbr.rel (%p551) target = $region84
        $region83: #{extended_encoder_forward.3} parent=71 // pred_region
          %s554 = sand.u32 %s105, 1
          %s555 = sand.u32 %s105, 1
          %s556 = smul.addr %s555, 32
          %s557 = scalar_lea.vmem [#allocation4], %s556
          %s558 = smul.addr %s34, 8
          %s559 = sadd.s32 %s35, %s558
          %s560 = smul.addr %s559, 8
          %s561 = scalar_lea.vmem %s2, %s560
          // Predicated region
          $region85: #{extended_encoder_forward.3} parent=83 // pred_check
            _
          $region86: #{extended_encoder_forward.3} parent=83 // pred_check_branch
            %563 = sbr.rel (0) target = $region88
          $region87: #{extended_encoder_forward.3} parent=83 // pred_region
            // Predicated region
            $region89: #{extended_encoder_forward.3} parent=87 // pred_check
              _
            $region90: #{extended_encoder_forward.3} parent=87 // pred_check_branch
              %565 = sbr.rel (0) target = $region92
            $region91: #{extended_encoder_forward.3} parent=87 // pred_region
              // Predicated region
              $region104: #{extended_encoder_forward.3} parent=91 // pred_check
                _
              $region105: #{extended_encoder_forward.3} parent=91 // pred_check_branch
                %587 = sbr.rel (0) target = $region107
              $region106: #{extended_encoder_forward.3} parent=91 // pred_region
                loop: start=0, step=1, limit=1
                $region108: #{extended_encoder_forward.3} parent=106 // loop_pre_header
                  _
                $region109: #{extended_encoder_forward.3} parent=106 // loop_header
                  %s589 = sphi 0, %s593
                  %p590 = scmp.ge.s32.totalorder %s589, 1
                  %s594 = sphi %s561, %s561
                  %s595 = sphi %s557, %s557
                $region110: #{extended_encoder_forward.3} parent=106 // loop_header_branch
                  %592 = sbr.rel (%p590) target = $region114
                $region111: #{extended_encoder_forward.3} parent=106 // loop_body
                  %v596 = vld [vmem:[%s594] sm:$0xff]
                  %597 = vst [vmem:[%s595] sm:$0xff] %v596
                  %v598 = vld [vmem:[%s594 + $0x10] sm:$0xff]
                  %599 = vst [vmem:[%s595 + $0x8] sm:$0xff] %v598
                  %v600 = vld [vmem:[%s594 + $0x20] sm:$0xff]
                  %601 = vst [vmem:[%s595 + $0x10] sm:$0xff] %v600
                  %v602 = vld [vmem:[%s594 + $0x30] sm:$0xff]
                  %603 = vst [vmem:[%s595 + $0x18] sm:$0xff] %v602
                $region112: #{extended_encoder_forward.3} parent=106 // loop_footer
                  %s593 = sadd.s32 1, %s589
                $region113: #{extended_encoder_forward.3} parent=106 // loop_footer_branch
                  %588 = sbr.rel target = $region109
                $region114: #{extended_encoder_forward.3} parent=106 // loop_exit
                  _
              $region107: #{extended_encoder_forward.3} parent=91 // pred_fallthru
                _
              // Predicated region
              $region115: #{extended_encoder_forward.3} parent=91 // pred_check
                _
              $region116: #{extended_encoder_forward.3} parent=91 // pred_check_branch
                %605 = sbr.rel target = $region118
              $region117: #{extended_encoder_forward.3} parent=91 // pred_region
                _
              $region118: #{extended_encoder_forward.3} parent=91 // pred_fallthru
                _
            $region92: #{extended_encoder_forward.3} parent=87 // pred_fallthru
              _
            // Predicated region
            $region93: #{extended_encoder_forward.3} parent=87 // pred_check
              _
            $region94: #{extended_encoder_forward.3} parent=87 // pred_check_branch
              %567 = sbr.rel target = $region96
            $region95: #{extended_encoder_forward.3} parent=87 // pred_region
              %s569 = ssub.s32 256, 1
              loop: start=0, step=1, limit=1
              $region97: #{extended_encoder_forward.3} parent=95 // loop_pre_header
                _
              $region98: #{extended_encoder_forward.3} parent=95 // loop_header
                %s571 = sphi 0, %s575
                %p572 = scmp.ge.s32.totalorder %s571, 1
                %s576 = sphi %s561, %s561
                %s577 = sphi %s557, %s557
              $region99: #{extended_encoder_forward.3} parent=95 // loop_header_branch
                %574 = sbr.rel (%p572) target = $region103
              $region100: #{extended_encoder_forward.3} parent=95 // loop_body
                %v578 = vld [vmem:[%s576] sm:%s569]
                %579 = vst [vmem:[%s577] sm:%s569] %v578
                %v580 = vld [vmem:[%s576 + $0x10] sm:%s569]
                %581 = vst [vmem:[%s577 + $0x8] sm:%s569] %v580
                %v582 = vld [vmem:[%s576 + $0x20] sm:%s569]
                %583 = vst [vmem:[%s577 + $0x10] sm:%s569] %v582
                %v584 = vld [vmem:[%s576 + $0x30] sm:%s569]
                %585 = vst [vmem:[%s577 + $0x18] sm:%s569] %v584
              $region101: #{extended_encoder_forward.3} parent=95 // loop_footer
                %s575 = sadd.s32 1, %s571
              $region102: #{extended_encoder_forward.3} parent=95 // loop_footer_branch
                %570 = sbr.rel target = $region98
              $region103: #{extended_encoder_forward.3} parent=95 // loop_exit
                _
            $region96: #{extended_encoder_forward.3} parent=87 // pred_fallthru
              _
          $region88: #{extended_encoder_forward.3} parent=83 // pred_fallthru
            _
          %606 = vnop
        $region84: #{extended_encoder_forward.3} parent=71 // pred_fallthru
          _
        // Predicated region
        $region119: #{extended_encoder_forward.3} parent=71 // pred_check
          %p607 = pneg %p143
        $region120: #{extended_encoder_forward.3} parent=71 // pred_check_branch
          %609 = sbr.rel (%p607) target = $region122
        $region121: #{extended_encoder_forward.3} parent=71 // pred_region
          %s610 = sand.u32 %s133, 1
          %s611 = sand.u32 %s133, 1
          %s612 = smul.addr %s611, 32
          %s613 = scalar_lea.vmem [#allocation5], %s612
          %s614 = smul.addr %s34, 8
          %s615 = sadd.s32 %s35, %s614
          %s616 = smul.addr %s615, 8
          %s617 = scalar_lea.vmem %s3, %s616
          // Predicated region
          $region123: #{extended_encoder_forward.3} parent=121 // pred_check
            _
          $region124: #{extended_encoder_forward.3} parent=121 // pred_check_branch
            %619 = sbr.rel (0) target = $region126
          $region125: #{extended_encoder_forward.3} parent=121 // pred_region
            // Predicated region
            $region127: #{extended_encoder_forward.3} parent=125 // pred_check
              _
            $region128: #{extended_encoder_forward.3} parent=125 // pred_check_branch
              %621 = sbr.rel (0) target = $region130
            $region129: #{extended_encoder_forward.3} parent=125 // pred_region
              // Predicated region
              $region142: #{extended_encoder_forward.3} parent=129 // pred_check
                _
              $region143: #{extended_encoder_forward.3} parent=129 // pred_check_branch
                %643 = sbr.rel (0) target = $region145
              $region144: #{extended_encoder_forward.3} parent=129 // pred_region
                loop: start=0, step=1, limit=1
                $region146: #{extended_encoder_forward.3} parent=144 // loop_pre_header
                  _
                $region147: #{extended_encoder_forward.3} parent=144 // loop_header
                  %s645 = sphi 0, %s649
                  %p646 = scmp.ge.s32.totalorder %s645, 1
                  %s650 = sphi %s617, %s617
                  %s651 = sphi %s613, %s613
                $region148: #{extended_encoder_forward.3} parent=144 // loop_header_branch
                  %648 = sbr.rel (%p646) target = $region152
                $region149: #{extended_encoder_forward.3} parent=144 // loop_body
                  %v652 = vld [vmem:[%s650] sm:$0xff]
                  %653 = vst [vmem:[%s651] sm:$0xff] %v652
                  %v654 = vld [vmem:[%s650 + $0x10] sm:$0xff]
                  %655 = vst [vmem:[%s651 + $0x8] sm:$0xff] %v654
                  %v656 = vld [vmem:[%s650 + $0x20] sm:$0xff]
                  %657 = vst [vmem:[%s651 + $0x10] sm:$0xff] %v656
                  %v658 = vld [vmem:[%s650 + $0x30] sm:$0xff]
                  %659 = vst [vmem:[%s651 + $0x18] sm:$0xff] %v658
                $region150: #{extended_encoder_forward.3} parent=144 // loop_footer
                  %s649 = sadd.s32 1, %s645
                $region151: #{extended_encoder_forward.3} parent=144 // loop_footer_branch
                  %644 = sbr.rel target = $region147
                $region152: #{extended_encoder_forward.3} parent=144 // loop_exit
                  _
              $region145: #{extended_encoder_forward.3} parent=129 // pred_fallthru
                _
              // Predicated region
              $region153: #{extended_encoder_forward.3} parent=129 // pred_check
                _
              $region154: #{extended_encoder_forward.3} parent=129 // pred_check_branch
                %661 = sbr.rel target = $region156
              $region155: #{extended_encoder_forward.3} parent=129 // pred_region
                _
              $region156: #{extended_encoder_forward.3} parent=129 // pred_fallthru
                _
            $region130: #{extended_encoder_forward.3} parent=125 // pred_fallthru
              _
            // Predicated region
            $region131: #{extended_encoder_forward.3} parent=125 // pred_check
              _
            $region132: #{extended_encoder_forward.3} parent=125 // pred_check_branch
              %623 = sbr.rel target = $region134
            $region133: #{extended_encoder_forward.3} parent=125 // pred_region
              %s625 = ssub.s32 256, 1
              loop: start=0, step=1, limit=1
              $region135: #{extended_encoder_forward.3} parent=133 // loop_pre_header
                _
              $region136: #{extended_encoder_forward.3} parent=133 // loop_header
                %s627 = sphi 0, %s631
                %p628 = scmp.ge.s32.totalorder %s627, 1
                %s632 = sphi %s617, %s617
                %s633 = sphi %s613, %s613
              $region137: #{extended_encoder_forward.3} parent=133 // loop_header_branch
                %630 = sbr.rel (%p628) target = $region141
              $region138: #{extended_encoder_forward.3} parent=133 // loop_body
                %v634 = vld [vmem:[%s632] sm:%s625]
                %635 = vst [vmem:[%s633] sm:%s625] %v634
                %v636 = vld [vmem:[%s632 + $0x10] sm:%s625]
                %637 = vst [vmem:[%s633 + $0x8] sm:%s625] %v636
                %v638 = vld [vmem:[%s632 + $0x20] sm:%s625]
                %639 = vst [vmem:[%s633 + $0x10] sm:%s625] %v638
                %v640 = vld [vmem:[%s632 + $0x30] sm:%s625]
                %641 = vst [vmem:[%s633 + $0x18] sm:%s625] %v640
              $region139: #{extended_encoder_forward.3} parent=133 // loop_footer
                %s631 = sadd.s32 1, %s627
              $region140: #{extended_encoder_forward.3} parent=133 // loop_footer_branch
                %626 = sbr.rel target = $region136
              $region141: #{extended_encoder_forward.3} parent=133 // loop_exit
                _
            $region134: #{extended_encoder_forward.3} parent=125 // pred_fallthru
              _
          $region126: #{extended_encoder_forward.3} parent=121 // pred_fallthru
            _
          %662 = vnop
        $region122: #{extended_encoder_forward.3} parent=71 // pred_fallthru
          _
      $region72: #{extended_encoder_forward.3} parent=5 // pred_fallthru
        _
      %p663 = scmp.le.s32.totalorder 1, %s27
      %p664 = scmp.lt.s32.totalorder %s27, 5
      %p665 = pnand %p663, %p664
      %p666 = pneg %p665
      // Predicated region
      $region157: #{extended_encoder_forward.3} parent=5 // pred_check
        _
      $region158: #{extended_encoder_forward.3} parent=5 // pred_check_branch
        %668 = sbr.rel (%p665) target = $region160
      $region159: #{extended_encoder_forward.3} parent=5 // pred_region
        %s669 = ssub.s32 %s27, 1
        %s670 = sand.u32 %s108, 1
        %s671 = sand.u32 %s108, 1
        %s672 = smul.addr %s671, 32
        %s673 = scalar_lea.vmem [#allocation4], %s672
        // Predicated region
        $region161: #{extended_encoder_forward.3} parent=159 // pred_check
          %p674 = pneg %p121
        $region162: #{extended_encoder_forward.3} parent=159 // pred_check_branch
          %676 = sbr.rel (%p674) target = $region164
        $region163: #{extended_encoder_forward.3} parent=159 // pred_region
          _
        $region164: #{extended_encoder_forward.3} parent=159 // pred_fallthru
          _
        %s677 = sand.u32 %s136, 1
        %s678 = sand.u32 %s136, 1
        %s679 = smul.addr %s678, 32
        %s680 = scalar_lea.vmem [#allocation5], %s679
        // Predicated region
        $region165: #{extended_encoder_forward.3} parent=159 // pred_check
          %p681 = pneg %p149
        $region166: #{extended_encoder_forward.3} parent=159 // pred_check_branch
          %683 = sbr.rel (%p681) target = $region168
        $region167: #{extended_encoder_forward.3} parent=159 // pred_region
          _
        $region168: #{extended_encoder_forward.3} parent=159 // pred_fallthru
          _
        %p684 = scmp.lt.s32.totalorder %s36, 1
        %s685 = scalar_select %p684, %s36, 1
        %s686 = smul.addr %s685, 4
        %s687 = smul.addr %s686, 4
        %s688 = scalar_lea.vmem %s0, %s687
        %p689 = pneg %p65
        %p690 = pneg %p62
        %p691 = scmp.lt.s32.totalorder %s36, 1
        %s692 = scalar_select %p691, %s36, 1
        %p693 = scmp.lt.s32.totalorder %s37, 1
        %s694 = scalar_select %p693, %s37, 1
        %s695 = smul.addr %s692, 2
        %s696 = sadd.s32 %s694, %s695
        %s697 = smul.addr %s696, 8
        %s698 = scalar_lea.vmem %s1, %s697
        %p699 = pneg %p93
        %p700 = pneg %p90
        %s701 = sand.u32 %s108, 1
        %s702 = sand.u32 %s108, 1
        %s703 = smul.addr %s702, 32
        %s704 = scalar_lea.vmem [#allocation4], %s703
        %p705 = pneg %p121
        %p706 = pneg %p118
        %s707 = sand.u32 %s136, 1
        %s708 = sand.u32 %s136, 1
        %s709 = smul.addr %s708, 32
        %s710 = scalar_lea.vmem [#allocation5], %s709
        %p711 = pneg %p149
        %p712 = pneg %p146
        %p713 = pneg %p170
        %p714 = pneg %p167
        %p715 = pneg %p191
        %p716 = pneg %p188
        %p717 = pneg %p212
        %p718 = pneg %p209
        %p719 = pneg %p233
        %p720 = pneg %p230
        %p721 = pneg %p254
        %p722 = pneg %p251
        %p723 = pneg %p275
        %p724 = pneg %p272
        %p725 = pneg %p296
        %p726 = pneg %p293
        %p727 = pneg %p317
        %p728 = pneg %p314
        %p729 = pneg %p338
        %p730 = pneg %p335
        %p731 = pneg %p359
        %p732 = pneg %p356
        %p733 = pneg %p380
        %p734 = pneg %p377
        %p735 = pneg %p401
        %p736 = pneg %p398
        %p737 = pneg %p422
        %p738 = pneg %p419
        %p739 = pneg %p443
        %p740 = pneg %p440
        %p741 = pneg %p471
        %p742 = pneg %p468
        %s743 = sand.u32 %s458, 1
        %s744 = scalar_lea.sflag [#allocation7], %s743
        %s745 = sand.u32 %s458, 1
        %s746 = smul.addr %s745, 8
        %s747 = scalar_lea.vmem [#allocation6], %s746
        %p748 = scmp.lt.s32.totalorder %s36, 1
        %s749 = scalar_select %p748, %s36, 1
        %s750 = smul.addr %s749, 4
        %s751 = smul.addr %s750, 4
        %s752 = scalar_lea.vmem %s0, %s751
        %p753 = scmp.lt.s32.totalorder %s36, 1
        %s754 = scalar_select %p753, %s36, 1
        %p755 = scmp.lt.s32.totalorder %s37, 1
        %s756 = scalar_select %p755, %s37, 1
        %s757 = smul.addr %s754, 2
        %s758 = sadd.s32 %s756, %s757
        %s759 = smul.addr %s758, 8
        %s760 = scalar_lea.vmem %s1, %s759
        %p762 = scmp.eq.s32.totalorder %s37, 0
        // Predicated region
        $region169: #{extended_encoder_forward.3} parent=159 // pred_check
          %p763 = pneg %p762
        $region170: #{extended_encoder_forward.3} parent=159 // pred_check_branch
          %765 = sbr.rel (%p763) target = $region172
        $region171: #{extended_encoder_forward.3} parent=159 // pred_region
          %v766 = vld [vmem:[%s752] sm:$0xf]
          %v767 = vld [vmem:[%s752 + $0x4] sm:$0xf]
          %v768 = vld [vmem:[%s752 + $0x8] sm:$0xf]
          %v769 = vld [vmem:[%s752 + $0xc] sm:$0xf]
          %v770 = vld [vmem:[%s4] sm:$0xf]
          %v771 = vld [vmem:[%s4 + $0x4] sm:$0xf]
          %v772 = vld [vmem:[%s4 + $0x8] sm:$0xf]
          %v773 = vld [vmem:[%s4 + $0xc] sm:$0xf]
          %v774 = vld [vmem:[%s5] sm:$0xff]
          %v775 = vld [vmem:[%s5 + $0x8] sm:$0xff]
          %v776 = vld [vmem:[%s5 + $0x10] sm:$0xff]
          %v777 = vld [vmem:[%s5 + $0x18] sm:$0xff]
          %779 = vset.pattern.permute.xlu0 0
          %780 = vperm.xlu0 %779, %v774
          %v781 = vpop.permute.xlu0 %780
          %784 = vset.pattern.permute.xlu0 0
          %785 = vperm.xlu0 %784, %v775
          %v786 = vpop.permute.xlu0 %785
          %789 = vset.pattern.permute.xlu0 0
          %790 = vperm.xlu0 %789, %v776
          %v791 = vpop.permute.xlu0 %790
          %794 = vset.pattern.permute.xlu0 0
          %795 = vperm.xlu0 %794, %v777
          %v796 = vpop.permute.xlu0 %795
          %v802 = vunpack.c.l.b16 %v770
          %v803 = vunpack.c.l.b16 %v771
          %v804 = vunpack.c.l.b16 %v772
          %v805 = vunpack.c.l.b16 %v773
          %v806 = vpack.c.b16 %v803, %v802
          %v807 = vpack.c.b16 %v805, %v804
          %v812 = vunpack.c.l.b16 %v766
          %v813 = vunpack.c.l.b16 %v767
          %v814 = vunpack.c.l.b16 %v768
          %v815 = vunpack.c.l.b16 %v769
          %v816 = vpack.c.b16 %v813, %v812
          %v817 = vpack.c.b16 %v815, %v814
          %vm820 = vcmask 261120
          %v822 = vsel %vm820, %v806, 0
          %v825 = vsel %vm820, %v807, 0
          %827 = vmatpush.bf16.msra.mxu0 0
          %828 = vmatpush.bf16.msra.mxu0 0
          %829 = vmatpush.bf16.msra.mxu0 0
          %830 = vmatpush.bf16.msra.mxu0 0
          %831 = vmatpush.bf16.msra.mxu0 0
          %832 = vmatpush.bf16.msra.mxu0 0
          %833 = vmatpush.bf16.msra.mxu0 %v817
          %834 = vmatpush.bf16.msra.mxu0 %v816
          %835 = vmatmul.bf16.gmra.mxu0 %v822
          %v836 = vpop.f32.mrf.mxu0
          %v837 = vadd.f32 %v781, %v836
          %v838 = vpop.f32.mrf.mxu0
          %v839 = vadd.f32 %v786, %v838
          %840 = vmatmul.bf16.gmra.mxu0 %v825
          %v841 = vpop.f32.mrf.mxu0
          %v842 = vadd.f32 %v791, %v841
          %v843 = vpop.f32.mrf.mxu0
          %v844 = vadd.f32 %v796, %v843
          %845 = vdwg.mxu0
          %vm846 = vcmask 130048
          %847 = vst.msk [vmem:[#allocation2] sm:$0xff] %vm846, %v837
          %848 = vst.msk [vmem:[#allocation2 + $0x8] sm:$0xff] %vm846, %v839
          %849 = vst.msk [vmem:[#allocation2 + $0x10] sm:$0xff] %vm846, %v842
          %850 = vst.msk [vmem:[#allocation2 + $0x18] sm:$0xff] %vm846, %v844
          %v851 = vld [vmem:[%s6] sm:$0xf]
          %v852 = vld [vmem:[%s6 + $0x4] sm:$0xf]
          %v853 = vld [vmem:[%s6 + $0x8] sm:$0xf]
          %v854 = vld [vmem:[%s6 + $0xc] sm:$0xf]
          %v855 = vld [vmem:[%s7] sm:$0xff]
          %v856 = vld [vmem:[%s7 + $0x8] sm:$0xff]
          %v857 = vld [vmem:[%s7 + $0x10] sm:$0xff]
          %v858 = vld [vmem:[%s7 + $0x18] sm:$0xff]
          %860 = vset.pattern.permute.xlu0 0
          %861 = vperm.xlu0 %860, %v855
          %v862 = vpop.permute.xlu0 %861
          %865 = vset.pattern.permute.xlu0 0
          %866 = vperm.xlu0 %865, %v856
          %v867 = vpop.permute.xlu0 %866
          %870 = vset.pattern.permute.xlu0 0
          %871 = vperm.xlu0 %870, %v857
          %v872 = vpop.permute.xlu0 %871
          %875 = vset.pattern.permute.xlu0 0
          %876 = vperm.xlu0 %875, %v858
          %v877 = vpop.permute.xlu0 %876
          %v883 = vunpack.c.l.b16 %v851
          %v884 = vunpack.c.l.b16 %v852
          %v885 = vunpack.c.l.b16 %v853
          %v886 = vunpack.c.l.b16 %v854
          %v887 = vpack.c.b16 %v884, %v883
          %v888 = vpack.c.b16 %v886, %v885
          %v890 = vsel %vm820, %v887, 0
          %v893 = vsel %vm820, %v888, 0
          %895 = vmatpush.bf16.msra.mxu0 0
          %896 = vmatpush.bf16.msra.mxu0 0
          %897 = vmatpush.bf16.msra.mxu0 0
          %898 = vmatpush.bf16.msra.mxu0 0
          %899 = vmatpush.bf16.msra.mxu0 0
          %900 = vmatpush.bf16.msra.mxu0 0
          %901 = vmatpush.bf16.msra.mxu0 %v817
          %902 = vmatpush.bf16.msra.mxu0 %v816
          %903 = vmatmul.bf16.gmra.mxu0 %v890
          %v904 = vpop.f32.mrf.mxu0
          %v905 = vadd.f32 %v862, %v904
          %v906 = vpop.f32.mrf.mxu0
          %v907 = vadd.f32 %v867, %v906
          %908 = vmatmul.bf16.gmra.mxu0 %v893
          %v909 = vpop.f32.mrf.mxu0
          %v910 = vadd.f32 %v872, %v909
          %v911 = vpop.f32.mrf.mxu0
          %v912 = vadd.f32 %v877, %v911
          %913 = vdwg.mxu0
          %914 = vst.msk [vmem:[#allocation3] sm:$0xff] %vm846, %v905
          %915 = vst.msk [vmem:[#allocation3 + $0x8] sm:$0xff] %vm846, %v907
          %916 = vst.msk [vmem:[#allocation3 + $0x10] sm:$0xff] %vm846, %v910
          %917 = vst.msk [vmem:[#allocation3 + $0x18] sm:$0xff] %vm846, %v912
        $region172: #{extended_encoder_forward.3} parent=159 // pred_fallthru
          _
        %v918 = vld [vmem:[#allocation2] sm:$0xff]
        %v919 = vld [vmem:[#allocation2 + $0x8] sm:$0xff]
        %v920 = vld [vmem:[#allocation2 + $0x10] sm:$0xff]
        %v921 = vld [vmem:[#allocation2 + $0x18] sm:$0xff]
        %v922 = vld [vmem:[#allocation3] sm:$0xff]
        %v923 = vld [vmem:[#allocation3 + $0x8] sm:$0xff]
        %v924 = vld [vmem:[#allocation3 + $0x10] sm:$0xff]
        %v925 = vld [vmem:[#allocation3 + $0x18] sm:$0xff]
        %v926 = vld [vmem:[%s673] sm:$0xff]
        %v927 = vld [vmem:[%s673 + $0x8] sm:$0xff]
        %v928 = vld [vmem:[%s673 + $0x10] sm:$0xff]
        %v929 = vld [vmem:[%s673 + $0x18] sm:$0xff]
        %v930 = vld [vmem:[%s680] sm:$0xff]
        %v931 = vld [vmem:[%s680 + $0x8] sm:$0xff]
        %v932 = vld [vmem:[%s680 + $0x10] sm:$0xff]
        %v933 = vld [vmem:[%s680 + $0x18] sm:$0xff]
        %v934 = vpack.c.bf16 %v926, %v926
        %v935 = vpack.c.bf16 %v918, %v918
        %v936 = vpack.c.bf16 %v922, %v922
        %vm937 = vcmask 64512
        %v939 = vsel %vm937, %v934, 0
        %vm941 = vcmask 1043456
        %v943 = vsel %vm941, %v935, 0
        %945 = vmatpush.bf16.msra.mxu0 0
        %946 = vmatpush.bf16.msra.mxu0 0
        %947 = vmatpush.bf16.msra.mxu0 0
        %948 = vmatpush.bf16.msra.mxu0 0
        %949 = vmatpush.bf16.msra.mxu0 0
        %950 = vmatpush.bf16.msra.mxu0 0
        %951 = vmatpush.bf16.msra.mxu0 0
        %952 = vmatpush.bf16.msra.mxu0 %v943
        %953 = vmatmul.bf16.gmra.mxu0 %v939
        %v954 = vpop.f32.mrf.mxu0
        %v955 = vadd.f32 %v930, %v954
        %v956 = vpop.f32.mrf.mxu0
        %957 = vdwg.mxu0
        %vm958 = vcmask 130048
        %v959 = vsel %vm958, %v955, -inf
        %960 = vmax.xlane.f32.xlu0 %v959
        %v961 = vpop.xlane.xlu0 %960
        %v962 = vsub.f32 %v955, %v961
        %v963 = vmul.f32 %v962, 1.442695
        %v964 = vpow.pop %v963
        %v965 = vsel %vm958, %v964, 0.0
        %966 = vadd.xlane.f32.xlu0 %v965
        %v967 = vpop.xlane.xlu0 %966
        %v968 = vrcp.pop %v967
        %v969 = vmul.f32 %v964, %v968
        %v970 = vpack.c.bf16 %v969, %v969
        %v972 = vsel %vm958, %v970, 0
        %v975 = vsel %vm958, %v936, 0
        %977 = vmatpush.bf16.xpose.msra.mxu0 0
        %978 = vmatpush.bf16.xpose.msra.mxu0 0
        %979 = vmatpush.bf16.xpose.msra.mxu0 0
        %980 = vmatpush.bf16.xpose.msra.mxu0 0
        %981 = vmatpush.bf16.xpose.msra.mxu0 0
        %982 = vmatpush.bf16.xpose.msra.mxu0 0
        %983 = vmatpush.bf16.xpose.msra.mxu0 0
        %984 = vmatpush.bf16.xpose.msra.mxu0 %v975
        %985 = vmatmul.bf16.gmra.mxu0 %v972
        %v986 = vpop.f32.mrf.mxu0
        %v987 = vadd.f32 0.0, %v986
        %v988 = vpop.f32.mrf.mxu0
        %989 = vdwg.mxu0
        %v990 = vpack.c.bf16 %v987, %v987
        %v991 = vld [vmem:[%s8] sm:$0xf]
        %v992 = vpack.c.bf16 %v927, %v927
        %v993 = vpack.c.bf16 %v919, %v919
        %v994 = vpack.c.bf16 %v923, %v923
        %v996 = vsel %vm937, %v992, 0
        %v999 = vsel %vm941, %v993, 0
        %1001 = vmatpush.bf16.msra.mxu0 0
        %1002 = vmatpush.bf16.msra.mxu0 0
        %1003 = vmatpush.bf16.msra.mxu0 0
        %1004 = vmatpush.bf16.msra.mxu0 0
        %1005 = vmatpush.bf16.msra.mxu0 0
        %1006 = vmatpush.bf16.msra.mxu0 0
        %1007 = vmatpush.bf16.msra.mxu0 0
        %1008 = vmatpush.bf16.msra.mxu0 %v999
        %1009 = vmatmul.bf16.gmra.mxu0 %v996
        %v1010 = vpop.f32.mrf.mxu0
        %v1011 = vadd.f32 %v931, %v1010
        %v1012 = vpop.f32.mrf.mxu0
        %1013 = vdwg.mxu0
        %v1014 = vsel %vm958, %v1011, -inf
        %1015 = vmax.xlane.f32.xlu0 %v1014
        %v1016 = vpop.xlane.xlu0 %1015
        %v1017 = vsub.f32 %v1011, %v1016
        %v1018 = vmul.f32 %v1017, 1.442695
        %v1019 = vpow.pop %v1018
        %v1020 = vsel %vm958, %v1019, 0.0
        %1021 = vadd.xlane.f32.xlu0 %v1020
        %v1022 = vpop.xlane.xlu0 %1021
        %v1023 = vrcp.pop %v1022
        %v1024 = vmul.f32 %v1019, %v1023
        %v1025 = vpack.c.bf16 %v1024, %v1024
        %v1027 = vsel %vm958, %v1025, 0
        %v1030 = vsel %vm958, %v994, 0
        %1032 = vmatpush.bf16.xpose.msra.mxu0 0
        %1033 = vmatpush.bf16.xpose.msra.mxu0 0
        %1034 = vmatpush.bf16.xpose.msra.mxu0 0
        %1035 = vmatpush.bf16.xpose.msra.mxu0 0
        %1036 = vmatpush.bf16.xpose.msra.mxu0 0
        %1037 = vmatpush.bf16.xpose.msra.mxu0 0
        %1038 = vmatpush.bf16.xpose.msra.mxu0 0
        %1039 = vmatpush.bf16.xpose.msra.mxu0 %v1030
        %1040 = vmatmul.bf16.gmra.mxu0 %v1027
        %v1041 = vpop.f32.mrf.mxu0
        %v1042 = vadd.f32 0.0, %v1041
        %v1043 = vpop.f32.mrf.mxu0
        %1044 = vdwg.mxu0
        %v1045 = vpack.c.bf16 %v1042, %v1042
        %v1046 = vld [vmem:[%s8 + $0x4] sm:$0xf]
        %v1048 = vsel %vm937, %v1045, 0
        %v1051 = vsel %vm941, %v1046, 0
        %1053 = vmatpush.bf16.msra.mxu0 0
        %1054 = vmatpush.bf16.msra.mxu0 0
        %1055 = vmatpush.bf16.msra.mxu0 0
        %1056 = vmatpush.bf16.msra.mxu0 0
        %1057 = vmatpush.bf16.msra.mxu0 0
        %1058 = vmatpush.bf16.msra.mxu0 0
        %1059 = vmatpush.bf16.msra.mxu0 0
        %1060 = vmatpush.bf16.msra.mxu0 %v1051
        %1061 = vmatmul.bf16.gmra.mxu0 %v1048
        %v1062 = vpop.f32.mrf.mxu0
        %v1063 = vadd.f32 0.0, %v1062
        %v1064 = vpop.f32.mrf.mxu0
        %1065 = vdwg.mxu0
        %v1067 = vsel %vm937, %v990, 0
        %v1070 = vsel %vm941, %v991, 0
        %1072 = vmatpush.bf16.msra.mxu0 0
        %1073 = vmatpush.bf16.msra.mxu0 0
        %1074 = vmatpush.bf16.msra.mxu0 0
        %1075 = vmatpush.bf16.msra.mxu0 0
        %1076 = vmatpush.bf16.msra.mxu0 0
        %1077 = vmatpush.bf16.msra.mxu0 0
        %1078 = vmatpush.bf16.msra.mxu0 0
        %1079 = vmatpush.bf16.msra.mxu0 %v1070
        %1080 = vmatmul.bf16.gmra.mxu0 %v1067
        %v1081 = vpop.f32.mrf.mxu0
        %v1082 = vadd.f32 %v1063, %v1081
        %v1083 = vpop.f32.mrf.mxu0
        %1084 = vdwg.mxu0
        %v1085 = vpack.c.bf16 %v928, %v928
        %v1086 = vpack.c.bf16 %v920, %v920
        %v1087 = vpack.c.bf16 %v924, %v924
        %v1089 = vsel %vm937, %v1085, 0
        %v1092 = vsel %vm941, %v1086, 0
        %1094 = vmatpush.bf16.msra.mxu0 0
        %1095 = vmatpush.bf16.msra.mxu0 0
        %1096 = vmatpush.bf16.msra.mxu0 0
        %1097 = vmatpush.bf16.msra.mxu0 0
        %1098 = vmatpush.bf16.msra.mxu0 0
        %1099 = vmatpush.bf16.msra.mxu0 0
        %1100 = vmatpush.bf16.msra.mxu0 0
        %1101 = vmatpush.bf16.msra.mxu0 %v1092
        %1102 = vmatmul.bf16.gmra.mxu0 %v1089
        %v1103 = vpop.f32.mrf.mxu0
        %v1104 = vadd.f32 %v932, %v1103
        %v1105 = vpop.f32.mrf.mxu0
        %1106 = vdwg.mxu0
        %v1107 = vsel %vm958, %v1104, -inf
        %1108 = vmax.xlane.f32.xlu0 %v1107
        %v1109 = vpop.xlane.xlu0 %1108
        %v1110 = vsub.f32 %v1104, %v1109
        %v1111 = vmul.f32 %v1110, 1.442695
        %v1112 = vpow.pop %v1111
        %v1113 = vsel %vm958, %v1112, 0.0
        %1114 = vadd.xlane.f32.xlu0 %v1113
        %v1115 = vpop.xlane.xlu0 %1114
        %v1116 = vrcp.pop %v1115
        %v1117 = vmul.f32 %v1112, %v1116
        %v1118 = vpack.c.bf16 %v1117, %v1117
        %v1120 = vsel %vm958, %v1118, 0
        %v1123 = vsel %vm958, %v1087, 0
        %1125 = vmatpush.bf16.xpose.msra.mxu0 0
        %1126 = vmatpush.bf16.xpose.msra.mxu0 0
        %1127 = vmatpush.bf16.xpose.msra.mxu0 0
        %1128 = vmatpush.bf16.xpose.msra.mxu0 0
        %1129 = vmatpush.bf16.xpose.msra.mxu0 0
        %1130 = vmatpush.bf16.xpose.msra.mxu0 0
        %1131 = vmatpush.bf16.xpose.msra.mxu0 0
        %1132 = vmatpush.bf16.xpose.msra.mxu0 %v1123
        %1133 = vmatmul.bf16.gmra.mxu0 %v1120
        %v1134 = vpop.f32.mrf.mxu0
        %v1135 = vadd.f32 0.0, %v1134
        %v1136 = vpop.f32.mrf.mxu0
        %1137 = vdwg.mxu0
        %v1138 = vpack.c.bf16 %v1135, %v1135
        %v1139 = vld [vmem:[%s8 + $0x8] sm:$0xf]
        %v1141 = vsel %vm937, %v1138, 0
        %v1144 = vsel %vm941, %v1139, 0
        %1146 = vmatpush.bf16.msra.mxu0 0
        %1147 = vmatpush.bf16.msra.mxu0 0
        %1148 = vmatpush.bf16.msra.mxu0 0
        %1149 = vmatpush.bf16.msra.mxu0 0
        %1150 = vmatpush.bf16.msra.mxu0 0
        %1151 = vmatpush.bf16.msra.mxu0 0
        %1152 = vmatpush.bf16.msra.mxu0 0
        %1153 = vmatpush.bf16.msra.mxu0 %v1144
        %1154 = vmatmul.bf16.gmra.mxu0 %v1141
        %v1155 = vpop.f32.mrf.mxu0
        %v1156 = vadd.f32 0.0, %v1155
        %v1157 = vpop.f32.mrf.mxu0
        %1158 = vdwg.mxu0
        %v1159 = vadd.f32 %v1082, %v1156
        %v1160 = vpack.c.bf16 %v929, %v929
        %v1161 = vpack.c.bf16 %v921, %v921
        %v1162 = vpack.c.bf16 %v925, %v925
        %v1164 = vsel %vm937, %v1160, 0
        %v1167 = vsel %vm941, %v1161, 0
        %1169 = vmatpush.bf16.msra.mxu0 0
        %1170 = vmatpush.bf16.msra.mxu0 0
        %1171 = vmatpush.bf16.msra.mxu0 0
        %1172 = vmatpush.bf16.msra.mxu0 0
        %1173 = vmatpush.bf16.msra.mxu0 0
        %1174 = vmatpush.bf16.msra.mxu0 0
        %1175 = vmatpush.bf16.msra.mxu0 0
        %1176 = vmatpush.bf16.msra.mxu0 %v1167
        %1177 = vmatmul.bf16.gmra.mxu0 %v1164
        %v1178 = vpop.f32.mrf.mxu0
        %v1179 = vadd.f32 %v933, %v1178
        %v1180 = vpop.f32.mrf.mxu0
        %1181 = vdwg.mxu0
        %v1182 = vsel %vm958, %v1179, -inf
        %1183 = vmax.xlane.f32.xlu0 %v1182
        %v1184 = vpop.xlane.xlu0 %1183
        %v1185 = vsub.f32 %v1179, %v1184
        %v1186 = vmul.f32 %v1185, 1.442695
        %v1187 = vpow.pop %v1186
        %v1188 = vsel %vm958, %v1187, 0.0
        %1189 = vadd.xlane.f32.xlu0 %v1188
        %v1190 = vpop.xlane.xlu0 %1189
        %v1191 = vrcp.pop %v1190
        %v1192 = vmul.f32 %v1187, %v1191
        %v1193 = vpack.c.bf16 %v1192, %v1192
        %v1195 = vsel %vm958, %v1193, 0
        %v1198 = vsel %vm958, %v1162, 0
        %1200 = vmatpush.bf16.xpose.msra.mxu0 0
        %1201 = vmatpush.bf16.xpose.msra.mxu0 0
        %1202 = vmatpush.bf16.xpose.msra.mxu0 0
        %1203 = vmatpush.bf16.xpose.msra.mxu0 0
        %1204 = vmatpush.bf16.xpose.msra.mxu0 0
        %1205 = vmatpush.bf16.xpose.msra.mxu0 0
        %1206 = vmatpush.bf16.xpose.msra.mxu0 0
        %1207 = vmatpush.bf16.xpose.msra.mxu0 %v1198
        %1208 = vmatmul.bf16.gmra.mxu0 %v1195
        %v1209 = vpop.f32.mrf.mxu0
        %v1210 = vadd.f32 0.0, %v1209
        %v1211 = vpop.f32.mrf.mxu0
        %1212 = vdwg.mxu0
        %v1213 = vpack.c.bf16 %v1210, %v1210
        %v1214 = vld [vmem:[%s8 + $0xc] sm:$0xf]
        %v1216 = vsel %vm937, %v1213, 0
        %v1219 = vsel %vm941, %v1214, 0
        %1221 = vmatpush.bf16.msra.mxu0 0
        %1222 = vmatpush.bf16.msra.mxu0 0
        %1223 = vmatpush.bf16.msra.mxu0 0
        %1224 = vmatpush.bf16.msra.mxu0 0
        %1225 = vmatpush.bf16.msra.mxu0 0
        %1226 = vmatpush.bf16.msra.mxu0 0
        %1227 = vmatpush.bf16.msra.mxu0 0
        %1228 = vmatpush.bf16.msra.mxu0 %v1219
        %1229 = vmatmul.bf16.gmra.mxu0 %v1216
        %v1230 = vpop.f32.mrf.mxu0
        %v1231 = vadd.f32 0.0, %v1230
        %v1232 = vpop.f32.mrf.mxu0
        %1233 = vdwg.mxu0
        %v1234 = vadd.f32 %v1159, %v1231
        %v1235 = vld [vmem:[%s9] sm:$0x1]
        %v1237 = vperm.slane %v1235, 0
        %v1239 = vadd.f32 %v1234, %v1237
        %v1240 = vld [vmem:[%s760] sm:$0xff]
        %v1241 = vadd.f32 %v1240, %v1239
        %v1242 = vld [vmem:[%s10] sm:$0x1]
        %v1243 = vld [vmem:[%s11] sm:$0x1]
        %vm1244 = vcmask 261120
        %v1245 = vsel %vm1244, %v1241, 0.0
        %1246 = vadd.xlane.f32.xlu0 %v1245
        %v1247 = vpop.xlane.xlu0 %1246
        %v1248 = vrcp.pop 32.0
        %v1249 = vmul.f32 32.0, %v1248
        %v1250 = vsub.f32 1.0, %v1249
        %v1251 = vmul.f32 %v1248, %v1250
        %v1252 = vadd.f32 %v1248, %v1251
        %vm1253 = vweird.f32 %v1248
        %v1254 = vsel %vm1253, %v1248, %v1252
        %v1255 = vmul.f32 %v1247, %v1254
        %v1256 = vsub.f32 %v1241, %v1255
        %v1257 = vmul.f32 %v1256, %v1256
        %v1258 = vsel %vm1244, %v1257, 0.0
        %1259 = vadd.xlane.f32.xlu0 %v1258
        %v1260 = vpop.xlane.xlu0 %1259
        %v1261 = vmul.f32 %v1260, %v1254
        %v1262 = vadd.f32 %v1261, 1e-06
        %v1263 = vrsqrt.pop %v1262
        %v1264 = vmul.f32 %v1263, %v1262
        %v1265 = vmul.f32 %v1264, %v1263
        %v1266 = vmul.f32 0.5, %v1265
        %v1267 = vsub.f32 1.5, %v1266
        %v1268 = vmul.f32 %v1263, %v1267
        %vm1269 = vweird.f32 %v1262
        %vm1270 = vweird.f32 %v1263
        %vm1271 = vmor %vm1269, %vm1270
        %v1272 = vsel %vm1271, %v1263, %v1268
        %v1273 = vmul.f32 %v1256, %v1272
        %v1275 = vperm.slane %v1242, 0
        %v1277 = vmul.f32 %v1273, %v1275
        %v1279 = vperm.slane %v1243, 0
        %v1281 = vadd.f32 %v1277, %v1279
        %v1282 = vpack.c.bf16 %v1281, %v1281
        %v1283 = vld [vmem:[%s12] sm:$0xf]
        %v1284 = vld [vmem:[%s12 + $0x4] sm:$0xf]
        %v1285 = vld [vmem:[%s12 + $0x8] sm:$0xf]
        %v1286 = vld [vmem:[%s12 + $0xc] sm:$0xf]
        %v1287 = vld [vmem:[%s13] sm:$0x1]
        %v1289 = vperm.slane %v1287, 0
        %v1295 = vunpack.c.l.b16 %v1283
        %v1296 = vunpack.c.l.b16 %v1284
        %v1297 = vunpack.c.l.b16 %v1285
        %v1298 = vunpack.c.l.b16 %v1286
        %v1299 = vpack.c.b16 %v1296, %v1295
        %v1300 = vpack.c.b16 %v1298, %v1297
        %v1304 = vsel %vm1244, %v1282, 0
        %1306 = vmatpush.bf16.msra.mxu0 0
        %1307 = vmatpush.bf16.msra.mxu0 0
        %1308 = vmatpush.bf16.msra.mxu0 0
        %1309 = vmatpush.bf16.msra.mxu0 0
        %1310 = vmatpush.bf16.msra.mxu0 0
        %1311 = vmatpush.bf16.msra.mxu0 0
        %1312 = vmatpush.bf16.msra.mxu0 %v1300
        %1313 = vmatpush.bf16.msra.mxu0 %v1299
        %1314 = vmatmul.bf16.gmra.mxu0 %v1304
        %v1315 = vpop.f32.mrf.mxu0
        %v1316 = vadd.f32 %v1289, %v1315
        %v1317 = vpop.f32.mrf.mxu0
        %1318 = vdwg.mxu0
        %v1319 = vmax.f32 %v1316, 0.0
        %v1320 = vpack.c.bf16 %v1319, %v1319
        %v1321 = vld [vmem:[%s14] sm:$0xf]
        %v1322 = vld [vmem:[%s14 + $0x4] sm:$0xf]
        %v1323 = vld [vmem:[%s14 + $0x8] sm:$0xf]
        %v1324 = vld [vmem:[%s14 + $0xc] sm:$0xf]
        %v1325 = vld [vmem:[%s14 + $0x10] sm:$0xf]
        %v1326 = vld [vmem:[%s14 + $0x14] sm:$0xf]
        %v1327 = vld [vmem:[%s14 + $0x18] sm:$0xf]
        %v1328 = vld [vmem:[%s14 + $0x1c] sm:$0xf]
        %v1329 = vld [vmem:[%s15] sm:$0x1]
        %v1331 = vperm.slane %v1329, 0
        %v1341 = vunpack.c.l.b16 %v1321
        %v1342 = vunpack.c.l.b16 %v1322
        %v1343 = vunpack.c.l.b16 %v1323
        %v1344 = vunpack.c.l.b16 %v1324
        %v1345 = vunpack.c.l.b16 %v1325
        %v1346 = vunpack.c.l.b16 %v1326
        %v1347 = vunpack.c.l.b16 %v1327
        %v1348 = vunpack.c.l.b16 %v1328
        %v1349 = vpack.c.b16 %v1342, %v1341
        %v1350 = vpack.c.b16 %v1344, %v1343
        %v1351 = vpack.c.b16 %v1346, %v1345
        %v1352 = vpack.c.b16 %v1348, %v1347
        %vm1357 = vcmask 523264
        %v1359 = vsel %vm1357, %v1320, 0
        %1361 = vmatpush.bf16.msra.mxu0 0
        %1362 = vmatpush.bf16.msra.mxu0 0
        %1363 = vmatpush.bf16.msra.mxu0 0
        %1364 = vmatpush.bf16.msra.mxu0 0
        %1365 = vmatpush.bf16.msra.mxu0 %v1352
        %1366 = vmatpush.bf16.msra.mxu0 %v1351
        %1367 = vmatpush.bf16.msra.mxu0 %v1350
        %1368 = vmatpush.bf16.msra.mxu0 %v1349
        %1369 = vmatmul.bf16.gmra.mxu0 %v1359
        %v1370 = vpop.f32.mrf.mxu0
        %v1371 = vadd.f32 %v1331, %v1370
        %v1372 = vpop.f32.mrf.mxu0
        %1373 = vdwg.mxu0
        %v1374 = vadd.f32 %v1281, %v1371
        %v1375 = vld [vmem:[%s16] sm:$0x1]
        %v1376 = vld [vmem:[%s17] sm:$0x1]
        %v1377 = vsel %vm1244, %v1374, 0.0
        %1378 = vadd.xlane.f32.xlu0 %v1377
        %v1379 = vpop.xlane.xlu0 %1378
        %v1380 = vmul.f32 %v1379, %v1254
        %v1381 = vsub.f32 %v1374, %v1380
        %v1382 = vmul.f32 %v1381, %v1381
        %v1383 = vsel %vm1244, %v1382, 0.0
        %1384 = vadd.xlane.f32.xlu0 %v1383
        %v1385 = vpop.xlane.xlu0 %1384
        %v1386 = vmul.f32 %v1385, %v1254
        %v1387 = vadd.f32 %v1386, 1e-06
        %v1388 = vrsqrt.pop %v1387
        %v1389 = vmul.f32 %v1388, %v1387
        %v1390 = vmul.f32 %v1389, %v1388
        %v1391 = vmul.f32 0.5, %v1390
        %v1392 = vsub.f32 1.5, %v1391
        %v1393 = vmul.f32 %v1388, %v1392
        %vm1394 = vweird.f32 %v1387
        %vm1395 = vweird.f32 %v1388
        %vm1396 = vmor %vm1394, %vm1395
        %v1397 = vsel %vm1396, %v1388, %v1393
        %v1398 = vmul.f32 %v1381, %v1397
        %v1400 = vperm.slane %v1375, 0
        %v1402 = vmul.f32 %v1398, %v1400
        %v1404 = vperm.slane %v1376, 0
        %v1406 = vadd.f32 %v1402, %v1404
        %1407 = vst.msk [vmem:[%s747] sm:$0xff] %vm1244, %v1406
        %s1408 = sand.u32 %s458, 1
        %s1409 = scalar_lea.sflag [#allocation7], %s1408
        %s1410 = sand.u32 %s458, 1
        %s1411 = smul.addr %s1410, 8
        %s1412 = scalar_lea.vmem [#allocation6], %s1411
        // Predicated region
        $region173: #{extended_encoder_forward.3} parent=159 // pred_check
          %p1413 = pneg %p468
        $region174: #{extended_encoder_forward.3} parent=159 // pred_check_branch
          %1415 = sbr.rel (%p1413) target = $region176
        $region175: #{extended_encoder_forward.3} parent=159 // pred_region
          %1417 = vsyncadd %s1409, 0
          %s1418 = smul.addr %s36, 2
          %s1419 = sadd.s32 %s37, %s1418
          %s1420 = smul.addr %s1419, 8
          %s1421 = scalar_lea.hbm %s18, %s1420
          %s1423 = sshll.u32 %s1412, 4
          %s1424 = int_to_ptr.vmem [resolvable:$true] %s1423
          %s1425 = sshll.u32 %s1421, 4
          %s1426 = int_to_ptr.hbm [resolvable:$true] %s1425
          %1428 = dma.vmem_to_hbm [thread:$0]  %s1424, 128, %s1426, %s1409
        $region176: #{extended_encoder_forward.3} parent=159 // pred_fallthru
          _
      $region160: #{extended_encoder_forward.3} parent=5 // pred_fallthru
        _
      %p1429 = scmp.le.s32.totalorder 2, %s27
      // Predicated region
      $region177: #{extended_encoder_forward.3} parent=5 // pred_check
        %p1430 = pneg %p1429
      $region178: #{extended_encoder_forward.3} parent=5 // pred_check_branch
        %1432 = sbr.rel (%p1430) target = $region180
      $region179: #{extended_encoder_forward.3} parent=5 // pred_region
        %s1433 = ssub.s32 %s27, 2
        // Predicated region
        $region181: #{extended_encoder_forward.3} parent=179 // pred_check
          %p1434 = pneg %p474
        $region182: #{extended_encoder_forward.3} parent=179 // pred_check_branch
          %1436 = sbr.rel (%p1434) target = $region184
        $region183: #{extended_encoder_forward.3} parent=179 // pred_region
          %s1437 = sand.u32 %s459, 1
          %s1438 = scalar_lea.sflag [#allocation7], %s1437
          %s1439 = sand.u32 %s459, 1
          %s1440 = smul.addr %s1439, 8
          %s1441 = scalar_lea.vmem [#allocation6], %s1440
          %1443 = dma.done %s1438, 128
        $region184: #{extended_encoder_forward.3} parent=179 // pred_fallthru
          _
      $region180: #{extended_encoder_forward.3} parent=5 // pred_fallthru
        _
    $region6: #{extended_encoder_forward.3} parent=1 // loop_footer
      %s31 = sadd.s32 1, %s27
    $region7: #{extended_encoder_forward.3} parent=1 // loop_footer_branch
      %26 = sbr.rel target = $region3
    $region8: #{extended_encoder_forward.3} parent=1 // loop_exit
      _
    %1444 = vsyncpa [#allocation7], 1
    %s1445 = scalar_lea.sflag [#allocation7], 1
    %1446 = vsyncpa %s1445, 1

// kernel: extended_encoder_forward.2
$region0: #{extended_encoder_forward.2}
  #allocation0 [shape = 'u32[]', space=smem, size = 0x4, offset = 0x4, fixed_abs, tag = 'smem constant byte address 0x4 - core index']
  #allocation1 [shape = 'u32[72,128]{1,0:T(1,128)}', space=vmem, size = 0x9000, scoped, tag = 'internal scratch']
  #allocation2 [shape = 'f32[32,16]{1,0:T(8,128)}', space=vmem, size = 0x4000, scoped, tag = 'scratch operand']
  #allocation3 [shape = 'f32[32,16]{1,0:T(8,128)}', space=vmem, size = 0x4000, scoped, tag = 'scratch operand']
  %s0 = inlined_call_operand.vmem [shape: bf16[2,32,16], index: 0, kind: input, shape index: {}]
  %s1 = inlined_call_operand.vmem [shape: f32[2,16,32], index: 1, kind: input, shape index: {}]
  %s2 = inlined_call_operand.vmem [shape: f32[2,4,16,8], index: 2, kind: input, shape index: {}]
  %s3 = inlined_call_operand.vmem [shape: f32[2,4,16,16], index: 3, kind: input, shape index: {}]
  %s4 = inlined_call_operand.vmem [shape: bf16[32,32], index: 4, kind: input, shape index: {}]
  %s5 = inlined_call_operand.vmem [shape: f32[32,1], index: 5, kind: input, shape index: {}]
  %s6 = inlined_call_operand.vmem [shape: bf16[32,32], index: 6, kind: input, shape index: {}]
  %s7 = inlined_call_operand.vmem [shape: f32[32,1], index: 7, kind: input, shape index: {}]
  %s8 = inlined_call_operand.vmem [shape: bf16[32,32], index: 8, kind: input, shape index: {}]
  %s9 = inlined_call_operand.vmem [shape: f32[1,32], index: 9, kind: input, shape index: {}]
  %s10 = inlined_call_operand.vmem [shape: f32[1,32], index: 10, kind: input, shape index: {}]
  %s11 = inlined_call_operand.vmem [shape: f32[1,32], index: 11, kind: input, shape index: {}]
  %s12 = inlined_call_operand.vmem [shape: bf16[32,64], index: 12, kind: input, shape index: {}]
  %s13 = inlined_call_operand.vmem [shape: f32[1,64], index: 13, kind: input, shape index: {}]
  %s14 = inlined_call_operand.vmem [shape: bf16[64,32], index: 14, kind: input, shape index: {}]
  %s15 = inlined_call_operand.vmem [shape: f32[1,32], index: 15, kind: input, shape index: {}]
  %s16 = inlined_call_operand.vmem [shape: f32[1,32], index: 16, kind: input, shape index: {}]
  %s17 = inlined_call_operand.vmem [shape: f32[1,32], index: 17, kind: input, shape index: {}]
  %s18 = inlined_call_operand.vmem [shape: f32[2,16,32], index: 18, kind: output, shape index: {}]
  %s19 = sld [smem:[#allocation0]]
  $region185: #{extended_encoder_forward.2} parent=0
    _
  %s21 = ssub.s32 1, %s19
  %s22 = scalar_select 0, %s21, %s19
  $region1: #{extended_encoder_forward.2} parent=0
    #allocation4 [shape = 'u8[32768]{0}', space=vmem, size = 0x8000, scoped, tag = 'input window, operand 2']
    #allocation5 [shape = 'u8[32768]{0}', space=vmem, size = 0x8000, scoped, tag = 'input window, operand 3']
    loop: start=0, step=1, limit=6
    $region2: #{extended_encoder_forward.2} parent=1 // loop_pre_header
      _
    $region3: #{extended_encoder_forward.2} parent=1 // loop_header
      %s24 = sphi 0, %s28
      %p25 = scmp.ge.s32.totalorder %s24, 6
      %s31 = sphi 0, %s43
      %s32 = sphi 0, %s39
      %s33 = sphi 0, %s31
      %s34 = sphi 0, %s32
      %s35 = sphi 0, %s33
      %s36 = sphi 0, %s34
      %s46 = sphi 0, %s48
      %s49 = sphi 0, %s46
      %s50 = sphi 0, %s49
      %s66 = sphi 0, %s50
      %s74 = sphi 0, %s76
      %s77 = sphi 0, %s74
      %s78 = sphi 0, %s77
      %s94 = sphi 0, %s78
      %s102 = sphi 0, %s104
      %s105 = sphi 0, %s102
      %s106 = sphi 0, %s105
      %s122 = sphi 0, %s106
      %s130 = sphi 0, %s132
      %s133 = sphi 0, %s130
      %s134 = sphi 0, %s133
      %s150 = sphi 0, %s134
      %s154 = sphi 0, %s154
      %s156 = sphi 0, %s154
      %s157 = sphi 0, %s156
      %s171 = sphi 0, %s157
      %s175 = sphi 0, %s175
      %s177 = sphi 0, %s175
      %s178 = sphi 0, %s177
      %s192 = sphi 0, %s178
      %s196 = sphi 0, %s196
      %s198 = sphi 0, %s196
      %s199 = sphi 0, %s198
      %s213 = sphi 0, %s199
      %s217 = sphi 0, %s217
      %s219 = sphi 0, %s217
      %s220 = sphi 0, %s219
      %s234 = sphi 0, %s220
      %s238 = sphi 0, %s238
      %s240 = sphi 0, %s238
      %s241 = sphi 0, %s240
      %s255 = sphi 0, %s241
      %s259 = sphi 0, %s259
      %s261 = sphi 0, %s259
      %s262 = sphi 0, %s261
      %s276 = sphi 0, %s262
      %s280 = sphi 0, %s280
      %s282 = sphi 0, %s280
      %s283 = sphi 0, %s282
      %s297 = sphi 0, %s283
      %s301 = sphi 0, %s301
      %s303 = sphi 0, %s301
      %s304 = sphi 0, %s303
      %s318 = sphi 0, %s304
      %s322 = sphi 0, %s322
      %s324 = sphi 0, %s322
      %s325 = sphi 0, %s324
      %s339 = sphi 0, %s325
      %s343 = sphi 0, %s343
      %s345 = sphi 0, %s343
      %s346 = sphi 0, %s345
      %s360 = sphi 0, %s346
      %s364 = sphi 0, %s364
      %s366 = sphi 0, %s364
      %s367 = sphi 0, %s366
      %s381 = sphi 0, %s367
      %s385 = sphi 0, %s385
      %s387 = sphi 0, %s385
      %s388 = sphi 0, %s387
      %s402 = sphi 0, %s388
      %s406 = sphi 0, %s406
      %s408 = sphi 0, %s406
      %s409 = sphi 0, %s408
      %s423 = sphi 0, %s409
      %s427 = sphi 0, %s427
      %s429 = sphi 0, %s427
      %s430 = sphi 0, %s429
      %s444 = sphi 0, %s430
      %s452 = sphi 0, %s454
      %s455 = sphi 0, %s452
      %s456 = sphi 0, %s455
      %s472 = sphi 0, %s456
    $region4: #{extended_encoder_forward.2} parent=1 // loop_header_branch
      %27 = sbr.rel (%p25) target = $region8
    $region5: #{extended_encoder_forward.2} parent=1 // loop_body
      %s29 = ssub.s32 %s24, 1
      %s30 = ssub.s32 %s24, 2
      %s37 = sadd.s32 1, %s32
      %p38 = scmp.ge.s32.totalorder %s37, 2
      %s39 = scalar_select %p38, 0, %s37
      %s40 = sadd.s32 1, %s31
      %s41 = scalar_select %p38, %s40, %s31
      %p42 = scmp.ge.s32.totalorder %s41, 2
      %s43 = scalar_select %p42, 0, %s41
      %s44 = ssub.s32 %s31, %s43
      %p45 = scmp.eq.s32.totalorder %s44, 0
      %s47 = sadd.s32 %s46, 1
      %s48 = scalar_select %p45, %s46, %s47
      %p51 = pneg %p45
      %p52 = scmp.eq.s32.totalorder %s24, 3
      %p53 = por %p51, %p52
      %p54 = scmp.ne.s32.totalorder %s46, %s49
      %p55 = scmp.eq.s32.totalorder %s24, 0
      %p56 = por %p54, %p55
      %p57 = scmp.ne.s32.totalorder %s46, %s49
      %p58 = scmp.eq.s32.totalorder %s29, 3
      %p59 = por %p57, %p58
      %p60 = scmp.ne.s32.totalorder %s49, %s50
      %p61 = scmp.eq.s32.totalorder %s29, 0
      %p62 = por %p60, %p61
      %p63 = scmp.ne.s32.totalorder %s49, %s50
      %p64 = scmp.eq.s32.totalorder %s30, 3
      %p65 = por %p63, %p64
      %p67 = scmp.ne.s32.totalorder %s50, %s66
      %p68 = scmp.eq.s32.totalorder %s30, 0
      %p69 = por %p67, %p68
      %s70 = ssub.s32 %s31, %s43
      %s71 = ssub.s32 %s32, %s39
      %s72 = sor.u32 %s70, %s71
      %p73 = scmp.eq.s32.totalorder %s72, 0
      %s75 = sadd.s32 %s74, 1
      %s76 = scalar_select %p73, %s74, %s75
      %p79 = pneg %p73
      %p80 = scmp.eq.s32.totalorder %s24, 3
      %p81 = por %p79, %p80
      %p82 = scmp.ne.s32.totalorder %s74, %s77
      %p83 = scmp.eq.s32.totalorder %s24, 0
      %p84 = por %p82, %p83
      %p85 = scmp.ne.s32.totalorder %s74, %s77
      %p86 = scmp.eq.s32.totalorder %s29, 3
      %p87 = por %p85, %p86
      %p88 = scmp.ne.s32.totalorder %s77, %s78
      %p89 = scmp.eq.s32.totalorder %s29, 0
      %p90 = por %p88, %p89
      %p91 = scmp.ne.s32.totalorder %s77, %s78
      %p92 = scmp.eq.s32.totalorder %s30, 3
      %p93 = por %p91, %p92
      %p95 = scmp.ne.s32.totalorder %s78, %s94
      %p96 = scmp.eq.s32.totalorder %s30, 0
      %p97 = por %p95, %p96
      %s98 = ssub.s32 %s31, %s43
      %s99 = ssub.s32 %s32, %s39
      %s100 = sor.u32 %s98, %s99
      %p101 = scmp.eq.s32.totalorder %s100, 0
      %s103 = sadd.s32 %s102, 1
      %s104 = scalar_select %p101, %s102, %s103
      %p107 = pneg %p101
      %p108 = scmp.eq.s32.totalorder %s24, 3
      %p109 = por %p107, %p108
      %p110 = scmp.ne.s32.totalorder %s102, %s105
      %p111 = scmp.eq.s32.totalorder %s24, 0
      %p112 = por %p110, %p111
      %p113 = scmp.ne.s32.totalorder %s102, %s105
      %p114 = scmp.eq.s32.totalorder %s29, 3
      %p115 = por %p113, %p114
      %p116 = scmp.ne.s32.totalorder %s105, %s106
      %p117 = scmp.eq.s32.totalorder %s29, 0
      %p118 = por %p116, %p117
      %p119 = scmp.ne.s32.totalorder %s105, %s106
      %p120 = scmp.eq.s32.totalorder %s30, 3
      %p121 = por %p119, %p120
      %p123 = scmp.ne.s32.totalorder %s106, %s122
      %p124 = scmp.eq.s32.totalorder %s30, 0
      %p125 = por %p123, %p124
      %s126 = ssub.s32 %s31, %s43
      %s127 = ssub.s32 %s32, %s39
      %s128 = sor.u32 %s126, %s127
      %p129 = scmp.eq.s32.totalorder %s128, 0
      %s131 = sadd.s32 %s130, 1
      %s132 = scalar_select %p129, %s130, %s131
      %p135 = pneg %p129
      %p136 = scmp.eq.s32.totalorder %s24, 3
      %p137 = por %p135, %p136
      %p138 = scmp.ne.s32.totalorder %s130, %s133
      %p139 = scmp.eq.s32.totalorder %s24, 0
      %p140 = por %p138, %p139
      %p141 = scmp.ne.s32.totalorder %s130, %s133
      %p142 = scmp.eq.s32.totalorder %s29, 3
      %p143 = por %p141, %p142
      %p144 = scmp.ne.s32.totalorder %s133, %s134
      %p145 = scmp.eq.s32.totalorder %s29, 0
      %p146 = por %p144, %p145
      %p147 = scmp.ne.s32.totalorder %s133, %s134
      %p148 = scmp.eq.s32.totalorder %s30, 3
      %p149 = por %p147, %p148
      %p151 = scmp.ne.s32.totalorder %s134, %s150
      %p152 = scmp.eq.s32.totalorder %s30, 0
      %p153 = por %p151, %p152
      %s155 = sadd.s32 %s154, 1
      %p158 = scmp.eq.s32.totalorder %s24, 3
      %p159 = scmp.ne.s32.totalorder %s154, %s156
      %p160 = scmp.eq.s32.totalorder %s24, 0
      %p161 = por %p159, %p160
      %p162 = scmp.ne.s32.totalorder %s154, %s156
      %p163 = scmp.eq.s32.totalorder %s29, 3
      %p164 = por %p162, %p163
      %p165 = scmp.ne.s32.totalorder %s156, %s157
      %p166 = scmp.eq.s32.totalorder %s29, 0
      %p167 = por %p165, %p166
      %p168 = scmp.ne.s32.totalorder %s156, %s157
      %p169 = scmp.eq.s32.totalorder %s30, 3
      %p170 = por %p168, %p169
      %p172 = scmp.ne.s32.totalorder %s157, %s171
      %p173 = scmp.eq.s32.totalorder %s30, 0
      %p174 = por %p172, %p173
      %s176 = sadd.s32 %s175, 1
      %p179 = scmp.eq.s32.totalorder %s24, 3
      %p180 = scmp.ne.s32.totalorder %s175, %s177
      %p181 = scmp.eq.s32.totalorder %s24, 0
      %p182 = por %p180, %p181
      %p183 = scmp.ne.s32.totalorder %s175, %s177
      %p184 = scmp.eq.s32.totalorder %s29, 3
      %p185 = por %p183, %p184
      %p186 = scmp.ne.s32.totalorder %s177, %s178
      %p187 = scmp.eq.s32.totalorder %s29, 0
      %p188 = por %p186, %p187
      %p189 = scmp.ne.s32.totalorder %s177, %s178
      %p190 = scmp.eq.s32.totalorder %s30, 3
      %p191 = por %p189, %p190
      %p193 = scmp.ne.s32.totalorder %s178, %s192
      %p194 = scmp.eq.s32.totalorder %s30, 0
      %p195 = por %p193, %p194
      %s197 = sadd.s32 %s196, 1
      %p200 = scmp.eq.s32.totalorder %s24, 3
      %p201 = scmp.ne.s32.totalorder %s196, %s198
      %p202 = scmp.eq.s32.totalorder %s24, 0
      %p203 = por %p201, %p202
      %p204 = scmp.ne.s32.totalorder %s196, %s198
      %p205 = scmp.eq.s32.totalorder %s29, 3
      %p206 = por %p204, %p205
      %p207 = scmp.ne.s32.totalorder %s198, %s199
      %p208 = scmp.eq.s32.totalorder %s29, 0
      %p209 = por %p207, %p208
      %p210 = scmp.ne.s32.totalorder %s198, %s199
      %p211 = scmp.eq.s32.totalorder %s30, 3
      %p212 = por %p210, %p211
      %p214 = scmp.ne.s32.totalorder %s199, %s213
      %p215 = scmp.eq.s32.totalorder %s30, 0
      %p216 = por %p214, %p215
      %s218 = sadd.s32 %s217, 1
      %p221 = scmp.eq.s32.totalorder %s24, 3
      %p222 = scmp.ne.s32.totalorder %s217, %s219
      %p223 = scmp.eq.s32.totalorder %s24, 0
      %p224 = por %p222, %p223
      %p225 = scmp.ne.s32.totalorder %s217, %s219
      %p226 = scmp.eq.s32.totalorder %s29, 3
      %p227 = por %p225, %p226
      %p228 = scmp.ne.s32.totalorder %s219, %s220
      %p229 = scmp.eq.s32.totalorder %s29, 0
      %p230 = por %p228, %p229
      %p231 = scmp.ne.s32.totalorder %s219, %s220
      %p232 = scmp.eq.s32.totalorder %s30, 3
      %p233 = por %p231, %p232
      %p235 = scmp.ne.s32.totalorder %s220, %s234
      %p236 = scmp.eq.s32.totalorder %s30, 0
      %p237 = por %p235, %p236
      %s239 = sadd.s32 %s238, 1
      %p242 = scmp.eq.s32.totalorder %s24, 3
      %p243 = scmp.ne.s32.totalorder %s238, %s240
      %p244 = scmp.eq.s32.totalorder %s24, 0
      %p245 = por %p243, %p244
      %p246 = scmp.ne.s32.totalorder %s238, %s240
      %p247 = scmp.eq.s32.totalorder %s29, 3
      %p248 = por %p246, %p247
      %p249 = scmp.ne.s32.totalorder %s240, %s241
      %p250 = scmp.eq.s32.totalorder %s29, 0
      %p251 = por %p249, %p250
      %p252 = scmp.ne.s32.totalorder %s240, %s241
      %p253 = scmp.eq.s32.totalorder %s30, 3
      %p254 = por %p252, %p253
      %p256 = scmp.ne.s32.totalorder %s241, %s255
      %p257 = scmp.eq.s32.totalorder %s30, 0
      %p258 = por %p256, %p257
      %s260 = sadd.s32 %s259, 1
      %p263 = scmp.eq.s32.totalorder %s24, 3
      %p264 = scmp.ne.s32.totalorder %s259, %s261
      %p265 = scmp.eq.s32.totalorder %s24, 0
      %p266 = por %p264, %p265
      %p267 = scmp.ne.s32.totalorder %s259, %s261
      %p268 = scmp.eq.s32.totalorder %s29, 3
      %p269 = por %p267, %p268
      %p270 = scmp.ne.s32.totalorder %s261, %s262
      %p271 = scmp.eq.s32.totalorder %s29, 0
      %p272 = por %p270, %p271
      %p273 = scmp.ne.s32.totalorder %s261, %s262
      %p274 = scmp.eq.s32.totalorder %s30, 3
      %p275 = por %p273, %p274
      %p277 = scmp.ne.s32.totalorder %s262, %s276
      %p278 = scmp.eq.s32.totalorder %s30, 0
      %p279 = por %p277, %p278
      %s281 = sadd.s32 %s280, 1
      %p284 = scmp.eq.s32.totalorder %s24, 3
      %p285 = scmp.ne.s32.totalorder %s280, %s282
      %p286 = scmp.eq.s32.totalorder %s24, 0
      %p287 = por %p285, %p286
      %p288 = scmp.ne.s32.totalorder %s280, %s282
      %p289 = scmp.eq.s32.totalorder %s29, 3
      %p290 = por %p288, %p289
      %p291 = scmp.ne.s32.totalorder %s282, %s283
      %p292 = scmp.eq.s32.totalorder %s29, 0
      %p293 = por %p291, %p292
      %p294 = scmp.ne.s32.totalorder %s282, %s283
      %p295 = scmp.eq.s32.totalorder %s30, 3
      %p296 = por %p294, %p295
      %p298 = scmp.ne.s32.totalorder %s283, %s297
      %p299 = scmp.eq.s32.totalorder %s30, 0
      %p300 = por %p298, %p299
      %s302 = sadd.s32 %s301, 1
      %p305 = scmp.eq.s32.totalorder %s24, 3
      %p306 = scmp.ne.s32.totalorder %s301, %s303
      %p307 = scmp.eq.s32.totalorder %s24, 0
      %p308 = por %p306, %p307
      %p309 = scmp.ne.s32.totalorder %s301, %s303
      %p310 = scmp.eq.s32.totalorder %s29, 3
      %p311 = por %p309, %p310
      %p312 = scmp.ne.s32.totalorder %s303, %s304
      %p313 = scmp.eq.s32.totalorder %s29, 0
      %p314 = por %p312, %p313
      %p315 = scmp.ne.s32.totalorder %s303, %s304
      %p316 = scmp.eq.s32.totalorder %s30, 3
      %p317 = por %p315, %p316
      %p319 = scmp.ne.s32.totalorder %s304, %s318
      %p320 = scmp.eq.s32.totalorder %s30, 0
      %p321 = por %p319, %p320
      %s323 = sadd.s32 %s322, 1
      %p326 = scmp.eq.s32.totalorder %s24, 3
      %p327 = scmp.ne.s32.totalorder %s322, %s324
      %p328 = scmp.eq.s32.totalorder %s24, 0
      %p329 = por %p327, %p328
      %p330 = scmp.ne.s32.totalorder %s322, %s324
      %p331 = scmp.eq.s32.totalorder %s29, 3
      %p332 = por %p330, %p331
      %p333 = scmp.ne.s32.totalorder %s324, %s325
      %p334 = scmp.eq.s32.totalorder %s29, 0
      %p335 = por %p333, %p334
      %p336 = scmp.ne.s32.totalorder %s324, %s325
      %p337 = scmp.eq.s32.totalorder %s30, 3
      %p338 = por %p336, %p337
      %p340 = scmp.ne.s32.totalorder %s325, %s339
      %p341 = scmp.eq.s32.totalorder %s30, 0
      %p342 = por %p340, %p341
      %s344 = sadd.s32 %s343, 1
      %p347 = scmp.eq.s32.totalorder %s24, 3
      %p348 = scmp.ne.s32.totalorder %s343, %s345
      %p349 = scmp.eq.s32.totalorder %s24, 0
      %p350 = por %p348, %p349
      %p351 = scmp.ne.s32.totalorder %s343, %s345
      %p352 = scmp.eq.s32.totalorder %s29, 3
      %p353 = por %p351, %p352
      %p354 = scmp.ne.s32.totalorder %s345, %s346
      %p355 = scmp.eq.s32.totalorder %s29, 0
      %p356 = por %p354, %p355
      %p357 = scmp.ne.s32.totalorder %s345, %s346
      %p358 = scmp.eq.s32.totalorder %s30, 3
      %p359 = por %p357, %p358
      %p361 = scmp.ne.s32.totalorder %s346, %s360
      %p362 = scmp.eq.s32.totalorder %s30, 0
      %p363 = por %p361, %p362
      %s365 = sadd.s32 %s364, 1
      %p368 = scmp.eq.s32.totalorder %s24, 3
      %p369 = scmp.ne.s32.totalorder %s364, %s366
      %p370 = scmp.eq.s32.totalorder %s24, 0
      %p371 = por %p369, %p370
      %p372 = scmp.ne.s32.totalorder %s364, %s366
      %p373 = scmp.eq.s32.totalorder %s29, 3
      %p374 = por %p372, %p373
      %p375 = scmp.ne.s32.totalorder %s366, %s367
      %p376 = scmp.eq.s32.totalorder %s29, 0
      %p377 = por %p375, %p376
      %p378 = scmp.ne.s32.totalorder %s366, %s367
      %p379 = scmp.eq.s32.totalorder %s30, 3
      %p380 = por %p378, %p379
      %p382 = scmp.ne.s32.totalorder %s367, %s381
      %p383 = scmp.eq.s32.totalorder %s30, 0
      %p384 = por %p382, %p383
      %s386 = sadd.s32 %s385, 1
      %p389 = scmp.eq.s32.totalorder %s24, 3
      %p390 = scmp.ne.s32.totalorder %s385, %s387
      %p391 = scmp.eq.s32.totalorder %s24, 0
      %p392 = por %p390, %p391
      %p393 = scmp.ne.s32.totalorder %s385, %s387
      %p394 = scmp.eq.s32.totalorder %s29, 3
      %p395 = por %p393, %p394
      %p396 = scmp.ne.s32.totalorder %s387, %s388
      %p397 = scmp.eq.s32.totalorder %s29, 0
      %p398 = por %p396, %p397
      %p399 = scmp.ne.s32.totalorder %s387, %s388
      %p400 = scmp.eq.s32.totalorder %s30, 3
      %p401 = por %p399, %p400
      %p403 = scmp.ne.s32.totalorder %s388, %s402
      %p404 = scmp.eq.s32.totalorder %s30, 0
      %p405 = por %p403, %p404
      %s407 = sadd.s32 %s406, 1
      %p410 = scmp.eq.s32.totalorder %s24, 3
      %p411 = scmp.ne.s32.totalorder %s406, %s408
      %p412 = scmp.eq.s32.totalorder %s24, 0
      %p413 = por %p411, %p412
      %p414 = scmp.ne.s32.totalorder %s406, %s408
      %p415 = scmp.eq.s32.totalorder %s29, 3
      %p416 = por %p414, %p415
      %p417 = scmp.ne.s32.totalorder %s408, %s409
      %p418 = scmp.eq.s32.totalorder %s29, 0
      %p419 = por %p417, %p418
      %p420 = scmp.ne.s32.totalorder %s408, %s409
      %p421 = scmp.eq.s32.totalorder %s30, 3
      %p422 = por %p420, %p421
      %p424 = scmp.ne.s32.totalorder %s409, %s423
      %p425 = scmp.eq.s32.totalorder %s30, 0
      %p426 = por %p424, %p425
      %s428 = sadd.s32 %s427, 1
      %p431 = scmp.eq.s32.totalorder %s24, 3
      %p432 = scmp.ne.s32.totalorder %s427, %s429
      %p433 = scmp.eq.s32.totalorder %s24, 0
      %p434 = por %p432, %p433
      %p435 = scmp.ne.s32.totalorder %s427, %s429
      %p436 = scmp.eq.s32.totalorder %s29, 3
      %p437 = por %p435, %p436
      %p438 = scmp.ne.s32.totalorder %s429, %s430
      %p439 = scmp.eq.s32.totalorder %s29, 0
      %p440 = por %p438, %p439
      %p441 = scmp.ne.s32.totalorder %s429, %s430
      %p442 = scmp.eq.s32.totalorder %s30, 3
      %p443 = por %p441, %p442
      %p445 = scmp.ne.s32.totalorder %s430, %s444
      %p446 = scmp.eq.s32.totalorder %s30, 0
      %p447 = por %p445, %p446
      %s448 = ssub.s32 %s31, %s43
      %s449 = ssub.s32 %s32, %s39
      %s450 = sor.u32 %s448, %s449
      %p451 = scmp.eq.s32.totalorder %s450, 0
      %s453 = sadd.s32 %s452, 1
      %s454 = scalar_select %p451, %s452, %s453
      %p457 = pneg %p451
      %p458 = scmp.eq.s32.totalorder %s24, 3
      %p459 = por %p457, %p458
      %p460 = scmp.ne.s32.totalorder %s452, %s455
      %p461 = scmp.eq.s32.totalorder %s24, 0
      %p462 = por %p460, %p461
      %p463 = scmp.ne.s32.totalorder %s452, %s455
      %p464 = scmp.eq.s32.totalorder %s29, 3
      %p465 = por %p463, %p464
      %p466 = scmp.ne.s32.totalorder %s455, %s456
      %p467 = scmp.eq.s32.totalorder %s29, 0
      %p468 = por %p466, %p467
      %p469 = scmp.ne.s32.totalorder %s455, %s456
      %p470 = scmp.eq.s32.totalorder %s30, 3
      %p471 = por %p469, %p470
      %p473 = scmp.ne.s32.totalorder %s456, %s472
      %p474 = scmp.eq.s32.totalorder %s30, 0
      %p475 = por %p473, %p474
      %p476 = scmp.le.s32.totalorder 1, %s24
      %p477 = scmp.lt.s32.totalorder %s24, 5
      %p478 = pnand %p476, %p477
      %p479 = pneg %p478
      // Predicated region
      $region9: #{extended_encoder_forward.2} parent=5 // pred_check
        _
      $region10: #{extended_encoder_forward.2} parent=5 // pred_check_branch
        %481 = sbr.rel (%p478) target = $region12
      $region11: #{extended_encoder_forward.2} parent=5 // pred_region
        %s482 = ssub.s32 %s24, 1
        // Predicated region
        $region13: #{extended_encoder_forward.2} parent=11 // pred_check
          %p483 = pneg %p167
        $region14: #{extended_encoder_forward.2} parent=11 // pred_check_branch
          %485 = sbr.rel (%p483) target = $region16
        $region15: #{extended_encoder_forward.2} parent=11 // pred_region
          _
        $region16: #{extended_encoder_forward.2} parent=11 // pred_fallthru
          _
        // Predicated region
        $region17: #{extended_encoder_forward.2} parent=11 // pred_check
          %p486 = pneg %p188
        $region18: #{extended_encoder_forward.2} parent=11 // pred_check_branch
          %488 = sbr.rel (%p486) target = $region20
        $region19: #{extended_encoder_forward.2} parent=11 // pred_region
          _
        $region20: #{extended_encoder_forward.2} parent=11 // pred_fallthru
          _
        // Predicated region
        $region21: #{extended_encoder_forward.2} parent=11 // pred_check
          %p489 = pneg %p209
        $region22: #{extended_encoder_forward.2} parent=11 // pred_check_branch
          %491 = sbr.rel (%p489) target = $region24
        $region23: #{extended_encoder_forward.2} parent=11 // pred_region
          _
        $region24: #{extended_encoder_forward.2} parent=11 // pred_fallthru
          _
        // Predicated region
        $region25: #{extended_encoder_forward.2} parent=11 // pred_check
          %p492 = pneg %p230
        $region26: #{extended_encoder_forward.2} parent=11 // pred_check_branch
          %494 = sbr.rel (%p492) target = $region28
        $region27: #{extended_encoder_forward.2} parent=11 // pred_region
          _
        $region28: #{extended_encoder_forward.2} parent=11 // pred_fallthru
          _
        // Predicated region
        $region29: #{extended_encoder_forward.2} parent=11 // pred_check
          %p495 = pneg %p251
        $region30: #{extended_encoder_forward.2} parent=11 // pred_check_branch
          %497 = sbr.rel (%p495) target = $region32
        $region31: #{extended_encoder_forward.2} parent=11 // pred_region
          _
        $region32: #{extended_encoder_forward.2} parent=11 // pred_fallthru
          _
        // Predicated region
        $region33: #{extended_encoder_forward.2} parent=11 // pred_check
          %p498 = pneg %p272
        $region34: #{extended_encoder_forward.2} parent=11 // pred_check_branch
          %500 = sbr.rel (%p498) target = $region36
        $region35: #{extended_encoder_forward.2} parent=11 // pred_region
          _
        $region36: #{extended_encoder_forward.2} parent=11 // pred_fallthru
          _
        // Predicated region
        $region37: #{extended_encoder_forward.2} parent=11 // pred_check
          %p501 = pneg %p293
        $region38: #{extended_encoder_forward.2} parent=11 // pred_check_branch
          %503 = sbr.rel (%p501) target = $region40
        $region39: #{extended_encoder_forward.2} parent=11 // pred_region
          _
        $region40: #{extended_encoder_forward.2} parent=11 // pred_fallthru
          _
        // Predicated region
        $region41: #{extended_encoder_forward.2} parent=11 // pred_check
          %p504 = pneg %p314
        $region42: #{extended_encoder_forward.2} parent=11 // pred_check_branch
          %506 = sbr.rel (%p504) target = $region44
        $region43: #{extended_encoder_forward.2} parent=11 // pred_region
          _
        $region44: #{extended_encoder_forward.2} parent=11 // pred_fallthru
          _
        // Predicated region
        $region45: #{extended_encoder_forward.2} parent=11 // pred_check
          %p507 = pneg %p335
        $region46: #{extended_encoder_forward.2} parent=11 // pred_check_branch
          %509 = sbr.rel (%p507) target = $region48
        $region47: #{extended_encoder_forward.2} parent=11 // pred_region
          _
        $region48: #{extended_encoder_forward.2} parent=11 // pred_fallthru
          _
        // Predicated region
        $region49: #{extended_encoder_forward.2} parent=11 // pred_check
          %p510 = pneg %p356
        $region50: #{extended_encoder_forward.2} parent=11 // pred_check_branch
          %512 = sbr.rel (%p510) target = $region52
        $region51: #{extended_encoder_forward.2} parent=11 // pred_region
          _
        $region52: #{extended_encoder_forward.2} parent=11 // pred_fallthru
          _
        // Predicated region
        $region53: #{extended_encoder_forward.2} parent=11 // pred_check
          %p513 = pneg %p377
        $region54: #{extended_encoder_forward.2} parent=11 // pred_check_branch
          %515 = sbr.rel (%p513) target = $region56
        $region55: #{extended_encoder_forward.2} parent=11 // pred_region
          _
        $region56: #{extended_encoder_forward.2} parent=11 // pred_fallthru
          _
        // Predicated region
        $region57: #{extended_encoder_forward.2} parent=11 // pred_check
          %p516 = pneg %p398
        $region58: #{extended_encoder_forward.2} parent=11 // pred_check_branch
          %518 = sbr.rel (%p516) target = $region60
        $region59: #{extended_encoder_forward.2} parent=11 // pred_region
          _
        $region60: #{extended_encoder_forward.2} parent=11 // pred_fallthru
          _
        // Predicated region
        $region61: #{extended_encoder_forward.2} parent=11 // pred_check
          %p519 = pneg %p419
        $region62: #{extended_encoder_forward.2} parent=11 // pred_check_branch
          %521 = sbr.rel (%p519) target = $region64
        $region63: #{extended_encoder_forward.2} parent=11 // pred_region
          _
        $region64: #{extended_encoder_forward.2} parent=11 // pred_fallthru
          _
        // Predicated region
        $region65: #{extended_encoder_forward.2} parent=11 // pred_check
          %p522 = pneg %p440
        $region66: #{extended_encoder_forward.2} parent=11 // pred_check_branch
          %524 = sbr.rel (%p522) target = $region68
        $region67: #{extended_encoder_forward.2} parent=11 // pred_region
          _
        $region68: #{extended_encoder_forward.2} parent=11 // pred_fallthru
          _
      $region12: #{extended_encoder_forward.2} parent=5 // pred_fallthru
        _
      %p525 = scmp.lt.s32.totalorder %s24, 4
      // Predicated region
      $region69: #{extended_encoder_forward.2} parent=5 // pred_check
        %p526 = pneg %p525
      $region70: #{extended_encoder_forward.2} parent=5 // pred_check_branch
        %528 = sbr.rel (%p526) target = $region72
      $region71: #{extended_encoder_forward.2} parent=5 // pred_region
        // Predicated region
        $region73: #{extended_encoder_forward.2} parent=71 // pred_check
          %p529 = pneg %p56
        $region74: #{extended_encoder_forward.2} parent=71 // pred_check_branch
          %531 = sbr.rel (%p529) target = $region76
        $region75: #{extended_encoder_forward.2} parent=71 // pred_region
          %p532 = scmp.lt.s32.totalorder %s31, 1
          %s533 = scalar_select %p532, %s31, 1
          %s534 = smul.addr %s533, 4
          %s535 = smul.addr %s534, 4
          %s536 = scalar_lea.vmem %s0, %s535
        $region76: #{extended_encoder_forward.2} parent=71 // pred_fallthru
          _
        // Predicated region
        $region77: #{extended_encoder_forward.2} parent=71 // pred_check
          %p537 = pneg %p84
        $region78: #{extended_encoder_forward.2} parent=71 // pred_check_branch
          %539 = sbr.rel (%p537) target = $region80
        $region79: #{extended_encoder_forward.2} parent=71 // pred_region
          %p540 = scmp.lt.s32.totalorder %s31, 1
          %s541 = scalar_select %p540, %s31, 1
          %p542 = scmp.lt.s32.totalorder %s32, 1
          %s543 = scalar_select %p542, %s32, 1
          %s544 = smul.addr %s541, 2
          %s545 = sadd.s32 %s543, %s544
          %s546 = smul.addr %s545, 8
          %s547 = scalar_lea.vmem %s1, %s546
        $region80: #{extended_encoder_forward.2} parent=71 // pred_fallthru
          _
        // Predicated region
        $region81: #{extended_encoder_forward.2} parent=71 // pred_check
          %p548 = pneg %p112
        $region82: #{extended_encoder_forward.2} parent=71 // pred_check_branch
          %550 = sbr.rel (%p548) target = $region84
        $region83: #{extended_encoder_forward.2} parent=71 // pred_region
          %s551 = sand.u32 %s102, 1
          %s552 = sand.u32 %s102, 1
          %s553 = smul.addr %s552, 32
          %s554 = scalar_lea.vmem [#allocation4], %s553
          %s555 = smul.addr %s31, 8
          %s556 = sadd.s32 %s32, %s555
          %s557 = smul.addr %s556, 8
          %s558 = scalar_lea.vmem %s2, %s557
          // Predicated region
          $region85: #{extended_encoder_forward.2} parent=83 // pred_check
            _
          $region86: #{extended_encoder_forward.2} parent=83 // pred_check_branch
            %560 = sbr.rel (0) target = $region88
          $region87: #{extended_encoder_forward.2} parent=83 // pred_region
            // Predicated region
            $region89: #{extended_encoder_forward.2} parent=87 // pred_check
              _
            $region90: #{extended_encoder_forward.2} parent=87 // pred_check_branch
              %562 = sbr.rel (0) target = $region92
            $region91: #{extended_encoder_forward.2} parent=87 // pred_region
              // Predicated region
              $region104: #{extended_encoder_forward.2} parent=91 // pred_check
                _
              $region105: #{extended_encoder_forward.2} parent=91 // pred_check_branch
                %584 = sbr.rel (0) target = $region107
              $region106: #{extended_encoder_forward.2} parent=91 // pred_region
                loop: start=0, step=1, limit=1
                $region108: #{extended_encoder_forward.2} parent=106 // loop_pre_header
                  _
                $region109: #{extended_encoder_forward.2} parent=106 // loop_header
                  %s586 = sphi 0, %s590
                  %p587 = scmp.ge.s32.totalorder %s586, 1
                  %s591 = sphi %s558, %s558
                  %s592 = sphi %s554, %s554
                $region110: #{extended_encoder_forward.2} parent=106 // loop_header_branch
                  %589 = sbr.rel (%p587) target = $region114
                $region111: #{extended_encoder_forward.2} parent=106 // loop_body
                  %v593 = vld [vmem:[%s591] sm:$0xff]
                  %594 = vst [vmem:[%s592] sm:$0xff] %v593
                  %v595 = vld [vmem:[%s591 + $0x10] sm:$0xff]
                  %596 = vst [vmem:[%s592 + $0x8] sm:$0xff] %v595
                  %v597 = vld [vmem:[%s591 + $0x20] sm:$0xff]
                  %598 = vst [vmem:[%s592 + $0x10] sm:$0xff] %v597
                  %v599 = vld [vmem:[%s591 + $0x30] sm:$0xff]
                  %600 = vst [vmem:[%s592 + $0x18] sm:$0xff] %v599
                $region112: #{extended_encoder_forward.2} parent=106 // loop_footer
                  %s590 = sadd.s32 1, %s586
                $region113: #{extended_encoder_forward.2} parent=106 // loop_footer_branch
                  %585 = sbr.rel target = $region109
                $region114: #{extended_encoder_forward.2} parent=106 // loop_exit
                  _
              $region107: #{extended_encoder_forward.2} parent=91 // pred_fallthru
                _
              // Predicated region
              $region115: #{extended_encoder_forward.2} parent=91 // pred_check
                _
              $region116: #{extended_encoder_forward.2} parent=91 // pred_check_branch
                %602 = sbr.rel target = $region118
              $region117: #{extended_encoder_forward.2} parent=91 // pred_region
                _
              $region118: #{extended_encoder_forward.2} parent=91 // pred_fallthru
                _
            $region92: #{extended_encoder_forward.2} parent=87 // pred_fallthru
              _
            // Predicated region
            $region93: #{extended_encoder_forward.2} parent=87 // pred_check
              _
            $region94: #{extended_encoder_forward.2} parent=87 // pred_check_branch
              %564 = sbr.rel target = $region96
            $region95: #{extended_encoder_forward.2} parent=87 // pred_region
              %s566 = ssub.s32 256, 1
              loop: start=0, step=1, limit=1
              $region97: #{extended_encoder_forward.2} parent=95 // loop_pre_header
                _
              $region98: #{extended_encoder_forward.2} parent=95 // loop_header
                %s568 = sphi 0, %s572
                %p569 = scmp.ge.s32.totalorder %s568, 1
                %s573 = sphi %s558, %s558
                %s574 = sphi %s554, %s554
              $region99: #{extended_encoder_forward.2} parent=95 // loop_header_branch
                %571 = sbr.rel (%p569) target = $region103
              $region100: #{extended_encoder_forward.2} parent=95 // loop_body
                %v575 = vld [vmem:[%s573] sm:%s566]
                %576 = vst [vmem:[%s574] sm:%s566] %v575
                %v577 = vld [vmem:[%s573 + $0x10] sm:%s566]
                %578 = vst [vmem:[%s574 + $0x8] sm:%s566] %v577
                %v579 = vld [vmem:[%s573 + $0x20] sm:%s566]
                %580 = vst [vmem:[%s574 + $0x10] sm:%s566] %v579
                %v581 = vld [vmem:[%s573 + $0x30] sm:%s566]
                %582 = vst [vmem:[%s574 + $0x18] sm:%s566] %v581
              $region101: #{extended_encoder_forward.2} parent=95 // loop_footer
                %s572 = sadd.s32 1, %s568
              $region102: #{extended_encoder_forward.2} parent=95 // loop_footer_branch
                %567 = sbr.rel target = $region98
              $region103: #{extended_encoder_forward.2} parent=95 // loop_exit
                _
            $region96: #{extended_encoder_forward.2} parent=87 // pred_fallthru
              _
          $region88: #{extended_encoder_forward.2} parent=83 // pred_fallthru
            _
          %603 = vnop
        $region84: #{extended_encoder_forward.2} parent=71 // pred_fallthru
          _
        // Predicated region
        $region119: #{extended_encoder_forward.2} parent=71 // pred_check
          %p604 = pneg %p140
        $region120: #{extended_encoder_forward.2} parent=71 // pred_check_branch
          %606 = sbr.rel (%p604) target = $region122
        $region121: #{extended_encoder_forward.2} parent=71 // pred_region
          %s607 = sand.u32 %s130, 1
          %s608 = sand.u32 %s130, 1
          %s609 = smul.addr %s608, 32
          %s610 = scalar_lea.vmem [#allocation5], %s609
          %s611 = smul.addr %s31, 8
          %s612 = sadd.s32 %s32, %s611
          %s613 = smul.addr %s612, 8
          %s614 = scalar_lea.vmem %s3, %s613
          // Predicated region
          $region123: #{extended_encoder_forward.2} parent=121 // pred_check
            _
          $region124: #{extended_encoder_forward.2} parent=121 // pred_check_branch
            %616 = sbr.rel (0) target = $region126
          $region125: #{extended_encoder_forward.2} parent=121 // pred_region
            // Predicated region
            $region127: #{extended_encoder_forward.2} parent=125 // pred_check
              _
            $region128: #{extended_encoder_forward.2} parent=125 // pred_check_branch
              %618 = sbr.rel (0) target = $region130
            $region129: #{extended_encoder_forward.2} parent=125 // pred_region
              // Predicated region
              $region142: #{extended_encoder_forward.2} parent=129 // pred_check
                _
              $region143: #{extended_encoder_forward.2} parent=129 // pred_check_branch
                %640 = sbr.rel (0) target = $region145
              $region144: #{extended_encoder_forward.2} parent=129 // pred_region
                loop: start=0, step=1, limit=1
                $region146: #{extended_encoder_forward.2} parent=144 // loop_pre_header
                  _
                $region147: #{extended_encoder_forward.2} parent=144 // loop_header
                  %s642 = sphi 0, %s646
                  %p643 = scmp.ge.s32.totalorder %s642, 1
                  %s647 = sphi %s614, %s614
                  %s648 = sphi %s610, %s610
                $region148: #{extended_encoder_forward.2} parent=144 // loop_header_branch
                  %645 = sbr.rel (%p643) target = $region152
                $region149: #{extended_encoder_forward.2} parent=144 // loop_body
                  %v649 = vld [vmem:[%s647] sm:$0xff]
                  %650 = vst [vmem:[%s648] sm:$0xff] %v649
                  %v651 = vld [vmem:[%s647 + $0x10] sm:$0xff]
                  %652 = vst [vmem:[%s648 + $0x8] sm:$0xff] %v651
                  %v653 = vld [vmem:[%s647 + $0x20] sm:$0xff]
                  %654 = vst [vmem:[%s648 + $0x10] sm:$0xff] %v653
                  %v655 = vld [vmem:[%s647 + $0x30] sm:$0xff]
                  %656 = vst [vmem:[%s648 + $0x18] sm:$0xff] %v655
                $region150: #{extended_encoder_forward.2} parent=144 // loop_footer
                  %s646 = sadd.s32 1, %s642
                $region151: #{extended_encoder_forward.2} parent=144 // loop_footer_branch
                  %641 = sbr.rel target = $region147
                $region152: #{extended_encoder_forward.2} parent=144 // loop_exit
                  _
              $region145: #{extended_encoder_forward.2} parent=129 // pred_fallthru
                _
              // Predicated region
              $region153: #{extended_encoder_forward.2} parent=129 // pred_check
                _
              $region154: #{extended_encoder_forward.2} parent=129 // pred_check_branch
                %658 = sbr.rel target = $region156
              $region155: #{extended_encoder_forward.2} parent=129 // pred_region
                _
              $region156: #{extended_encoder_forward.2} parent=129 // pred_fallthru
                _
            $region130: #{extended_encoder_forward.2} parent=125 // pred_fallthru
              _
            // Predicated region
            $region131: #{extended_encoder_forward.2} parent=125 // pred_check
              _
            $region132: #{extended_encoder_forward.2} parent=125 // pred_check_branch
              %620 = sbr.rel target = $region134
            $region133: #{extended_encoder_forward.2} parent=125 // pred_region
              %s622 = ssub.s32 256, 1
              loop: start=0, step=1, limit=1
              $region135: #{extended_encoder_forward.2} parent=133 // loop_pre_header
                _
              $region136: #{extended_encoder_forward.2} parent=133 // loop_header
                %s624 = sphi 0, %s628
                %p625 = scmp.ge.s32.totalorder %s624, 1
                %s629 = sphi %s614, %s614
                %s630 = sphi %s610, %s610
              $region137: #{extended_encoder_forward.2} parent=133 // loop_header_branch
                %627 = sbr.rel (%p625) target = $region141
              $region138: #{extended_encoder_forward.2} parent=133 // loop_body
                %v631 = vld [vmem:[%s629] sm:%s622]
                %632 = vst [vmem:[%s630] sm:%s622] %v631
                %v633 = vld [vmem:[%s629 + $0x10] sm:%s622]
                %634 = vst [vmem:[%s630 + $0x8] sm:%s622] %v633
                %v635 = vld [vmem:[%s629 + $0x20] sm:%s622]
                %636 = vst [vmem:[%s630 + $0x10] sm:%s622] %v635
                %v637 = vld [vmem:[%s629 + $0x30] sm:%s622]
                %638 = vst [vmem:[%s630 + $0x18] sm:%s622] %v637
              $region139: #{extended_encoder_forward.2} parent=133 // loop_footer
                %s628 = sadd.s32 1, %s624
              $region140: #{extended_encoder_forward.2} parent=133 // loop_footer_branch
                %623 = sbr.rel target = $region136
              $region141: #{extended_encoder_forward.2} parent=133 // loop_exit
                _
            $region134: #{extended_encoder_forward.2} parent=125 // pred_fallthru
              _
          $region126: #{extended_encoder_forward.2} parent=121 // pred_fallthru
            _
          %659 = vnop
        $region122: #{extended_encoder_forward.2} parent=71 // pred_fallthru
          _
      $region72: #{extended_encoder_forward.2} parent=5 // pred_fallthru
        _
      %p660 = scmp.le.s32.totalorder 1, %s24
      %p661 = scmp.lt.s32.totalorder %s24, 5
      %p662 = pnand %p660, %p661
      %p663 = pneg %p662
      // Predicated region
      $region157: #{extended_encoder_forward.2} parent=5 // pred_check
        _
      $region158: #{extended_encoder_forward.2} parent=5 // pred_check_branch
        %665 = sbr.rel (%p662) target = $region160
      $region159: #{extended_encoder_forward.2} parent=5 // pred_region
        %s666 = ssub.s32 %s24, 1
        %s667 = sand.u32 %s105, 1
        %s668 = sand.u32 %s105, 1
        %s669 = smul.addr %s668, 32
        %s670 = scalar_lea.vmem [#allocation4], %s669
        // Predicated region
        $region161: #{extended_encoder_forward.2} parent=159 // pred_check
          %p671 = pneg %p118
        $region162: #{extended_encoder_forward.2} parent=159 // pred_check_branch
          %673 = sbr.rel (%p671) target = $region164
        $region163: #{extended_encoder_forward.2} parent=159 // pred_region
          _
        $region164: #{extended_encoder_forward.2} parent=159 // pred_fallthru
          _
        %s674 = sand.u32 %s133, 1
        %s675 = sand.u32 %s133, 1
        %s676 = smul.addr %s675, 32
        %s677 = scalar_lea.vmem [#allocation5], %s676
        // Predicated region
        $region165: #{extended_encoder_forward.2} parent=159 // pred_check
          %p678 = pneg %p146
        $region166: #{extended_encoder_forward.2} parent=159 // pred_check_branch
          %680 = sbr.rel (%p678) target = $region168
        $region167: #{extended_encoder_forward.2} parent=159 // pred_region
          _
        $region168: #{extended_encoder_forward.2} parent=159 // pred_fallthru
          _
        %p681 = scmp.lt.s32.totalorder %s33, 1
        %s682 = scalar_select %p681, %s33, 1
        %s683 = smul.addr %s682, 4
        %s684 = smul.addr %s683, 4
        %s685 = scalar_lea.vmem %s0, %s684
        %p686 = pneg %p62
        %p687 = pneg %p59
        %p688 = scmp.lt.s32.totalorder %s33, 1
        %s689 = scalar_select %p688, %s33, 1
        %p690 = scmp.lt.s32.totalorder %s34, 1
        %s691 = scalar_select %p690, %s34, 1
        %s692 = smul.addr %s689, 2
        %s693 = sadd.s32 %s691, %s692
        %s694 = smul.addr %s693, 8
        %s695 = scalar_lea.vmem %s1, %s694
        %p696 = pneg %p90
        %p697 = pneg %p87
        %s698 = sand.u32 %s105, 1
        %s699 = sand.u32 %s105, 1
        %s700 = smul.addr %s699, 32
        %s701 = scalar_lea.vmem [#allocation4], %s700
        %p702 = pneg %p118
        %p703 = pneg %p115
        %s704 = sand.u32 %s133, 1
        %s705 = sand.u32 %s133, 1
        %s706 = smul.addr %s705, 32
        %s707 = scalar_lea.vmem [#allocation5], %s706
        %p708 = pneg %p146
        %p709 = pneg %p143
        %p710 = pneg %p167
        %p711 = pneg %p164
        %p712 = pneg %p188
        %p713 = pneg %p185
        %p714 = pneg %p209
        %p715 = pneg %p206
        %p716 = pneg %p230
        %p717 = pneg %p227
        %p718 = pneg %p251
        %p719 = pneg %p248
        %p720 = pneg %p272
        %p721 = pneg %p269
        %p722 = pneg %p293
        %p723 = pneg %p290
        %p724 = pneg %p314
        %p725 = pneg %p311
        %p726 = pneg %p335
        %p727 = pneg %p332
        %p728 = pneg %p356
        %p729 = pneg %p353
        %p730 = pneg %p377
        %p731 = pneg %p374
        %p732 = pneg %p398
        %p733 = pneg %p395
        %p734 = pneg %p419
        %p735 = pneg %p416
        %p736 = pneg %p440
        %p737 = pneg %p437
        %p738 = pneg %p468
        %p739 = pneg %p465
        %p740 = scmp.lt.s32.totalorder %s33, 1
        %s741 = scalar_select %p740, %s33, 1
        %p742 = scmp.lt.s32.totalorder %s34, 1
        %s743 = scalar_select %p742, %s34, 1
        %s744 = smul.addr %s741, 2
        %s745 = sadd.s32 %s743, %s744
        %s746 = smul.addr %s745, 8
        %s747 = scalar_lea.vmem %s18, %s746
        %p748 = scmp.lt.s32.totalorder %s33, 1
        %s749 = scalar_select %p748, %s33, 1
        %s750 = smul.addr %s749, 4
        %s751 = smul.addr %s750, 4
        %s752 = scalar_lea.vmem %s0, %s751
        %p753 = scmp.lt.s32.totalorder %s33, 1
        %s754 = scalar_select %p753, %s33, 1
        %p755 = scmp.lt.s32.totalorder %s34, 1
        %s756 = scalar_select %p755, %s34, 1
        %s757 = smul.addr %s754, 2
        %s758 = sadd.s32 %s756, %s757
        %s759 = smul.addr %s758, 8
        %s760 = scalar_lea.vmem %s1, %s759
        %p761 = scmp.lt.s32.totalorder %s33, 1
        %s762 = scalar_select %p761, %s33, 1
        %p763 = scmp.lt.s32.totalorder %s34, 1
        %s764 = scalar_select %p763, %s34, 1
        %s765 = smul.addr %s762, 2
        %s766 = sadd.s32 %s764, %s765
        %s767 = smul.addr %s766, 8
        %s768 = scalar_lea.vmem %s18, %s767
        %p770 = scmp.eq.s32.totalorder %s34, 0
        // Predicated region
        $region169: #{extended_encoder_forward.2} parent=159 // pred_check
          %p771 = pneg %p770
        $region170: #{extended_encoder_forward.2} parent=159 // pred_check_branch
          %773 = sbr.rel (%p771) target = $region172
        $region171: #{extended_encoder_forward.2} parent=159 // pred_region
          %v774 = vld [vmem:[%s752] sm:$0xf]
          %v775 = vld [vmem:[%s752 + $0x4] sm:$0xf]
          %v776 = vld [vmem:[%s752 + $0x8] sm:$0xf]
          %v777 = vld [vmem:[%s752 + $0xc] sm:$0xf]
          %v778 = vld [vmem:[%s4] sm:$0xf]
          %v779 = vld [vmem:[%s4 + $0x4] sm:$0xf]
          %v780 = vld [vmem:[%s4 + $0x8] sm:$0xf]
          %v781 = vld [vmem:[%s4 + $0xc] sm:$0xf]
          %v782 = vld [vmem:[%s5] sm:$0xff]
          %v783 = vld [vmem:[%s5 + $0x8] sm:$0xff]
          %v784 = vld [vmem:[%s5 + $0x10] sm:$0xff]
          %v785 = vld [vmem:[%s5 + $0x18] sm:$0xff]
          %787 = vset.pattern.permute.xlu0 0
          %788 = vperm.xlu0 %787, %v782
          %v789 = vpop.permute.xlu0 %788
          %792 = vset.pattern.permute.xlu0 0
          %793 = vperm.xlu0 %792, %v783
          %v794 = vpop.permute.xlu0 %793
          %797 = vset.pattern.permute.xlu0 0
          %798 = vperm.xlu0 %797, %v784
          %v799 = vpop.permute.xlu0 %798
          %802 = vset.pattern.permute.xlu0 0
          %803 = vperm.xlu0 %802, %v785
          %v804 = vpop.permute.xlu0 %803
          %v810 = vunpack.c.l.b16 %v778
          %v811 = vunpack.c.l.b16 %v779
          %v812 = vunpack.c.l.b16 %v780
          %v813 = vunpack.c.l.b16 %v781
          %v814 = vpack.c.b16 %v811, %v810
          %v815 = vpack.c.b16 %v813, %v812
          %v820 = vunpack.c.l.b16 %v774
          %v821 = vunpack.c.l.b16 %v775
          %v822 = vunpack.c.l.b16 %v776
          %v823 = vunpack.c.l.b16 %v777
          %v824 = vpack.c.b16 %v821, %v820
          %v825 = vpack.c.b16 %v823, %v822
          %vm828 = vcmask 261120
          %v830 = vsel %vm828, %v814, 0
          %v833 = vsel %vm828, %v815, 0
          %835 = vmatpush.bf16.msra.mxu0 0
          %836 = vmatpush.bf16.msra.mxu0 0
          %837 = vmatpush.bf16.msra.mxu0 0
          %838 = vmatpush.bf16.msra.mxu0 0
          %839 = vmatpush.bf16.msra.mxu0 0
          %840 = vmatpush.bf16.msra.mxu0 0
          %841 = vmatpush.bf16.msra.mxu0 %v825
          %842 = vmatpush.bf16.msra.mxu0 %v824
          %843 = vmatmul.bf16.gmra.mxu0 %v830
          %v844 = vpop.f32.mrf.mxu0
          %v845 = vadd.f32 %v789, %v844
          %v846 = vpop.f32.mrf.mxu0
          %v847 = vadd.f32 %v794, %v846
          %848 = vmatmul.bf16.gmra.mxu0 %v833
          %v849 = vpop.f32.mrf.mxu0
          %v850 = vadd.f32 %v799, %v849
          %v851 = vpop.f32.mrf.mxu0
          %v852 = vadd.f32 %v804, %v851
          %853 = vdwg.mxu0
          %vm854 = vcmask 130048
          %855 = vst.msk [vmem:[#allocation2] sm:$0xff] %vm854, %v845
          %856 = vst.msk [vmem:[#allocation2 + $0x8] sm:$0xff] %vm854, %v847
          %857 = vst.msk [vmem:[#allocation2 + $0x10] sm:$0xff] %vm854, %v850
          %858 = vst.msk [vmem:[#allocation2 + $0x18] sm:$0xff] %vm854, %v852
          %v859 = vld [vmem:[%s6] sm:$0xf]
          %v860 = vld [vmem:[%s6 + $0x4] sm:$0xf]
          %v861 = vld [vmem:[%s6 + $0x8] sm:$0xf]
          %v862 = vld [vmem:[%s6 + $0xc] sm:$0xf]
          %v863 = vld [vmem:[%s7] sm:$0xff]
          %v864 = vld [vmem:[%s7 + $0x8] sm:$0xff]
          %v865 = vld [vmem:[%s7 + $0x10] sm:$0xff]
          %v866 = vld [vmem:[%s7 + $0x18] sm:$0xff]
          %868 = vset.pattern.permute.xlu0 0
          %869 = vperm.xlu0 %868, %v863
          %v870 = vpop.permute.xlu0 %869
          %873 = vset.pattern.permute.xlu0 0
          %874 = vperm.xlu0 %873, %v864
          %v875 = vpop.permute.xlu0 %874
          %878 = vset.pattern.permute.xlu0 0
          %879 = vperm.xlu0 %878, %v865
          %v880 = vpop.permute.xlu0 %879
          %883 = vset.pattern.permute.xlu0 0
          %884 = vperm.xlu0 %883, %v866
          %v885 = vpop.permute.xlu0 %884
          %v891 = vunpack.c.l.b16 %v859
          %v892 = vunpack.c.l.b16 %v860
          %v893 = vunpack.c.l.b16 %v861
          %v894 = vunpack.c.l.b16 %v862
          %v895 = vpack.c.b16 %v892, %v891
          %v896 = vpack.c.b16 %v894, %v893
          %v898 = vsel %vm828, %v895, 0
          %v901 = vsel %vm828, %v896, 0
          %903 = vmatpush.bf16.msra.mxu0 0
          %904 = vmatpush.bf16.msra.mxu0 0
          %905 = vmatpush.bf16.msra.mxu0 0
          %906 = vmatpush.bf16.msra.mxu0 0
          %907 = vmatpush.bf16.msra.mxu0 0
          %908 = vmatpush.bf16.msra.mxu0 0
          %909 = vmatpush.bf16.msra.mxu0 %v825
          %910 = vmatpush.bf16.msra.mxu0 %v824
          %911 = vmatmul.bf16.gmra.mxu0 %v898
          %v912 = vpop.f32.mrf.mxu0
          %v913 = vadd.f32 %v870, %v912
          %v914 = vpop.f32.mrf.mxu0
          %v915 = vadd.f32 %v875, %v914
          %916 = vmatmul.bf16.gmra.mxu0 %v901
          %v917 = vpop.f32.mrf.mxu0
          %v918 = vadd.f32 %v880, %v917
          %v919 = vpop.f32.mrf.mxu0
          %v920 = vadd.f32 %v885, %v919
          %921 = vdwg.mxu0
          %922 = vst.msk [vmem:[#allocation3] sm:$0xff] %vm854, %v913
          %923 = vst.msk [vmem:[#allocation3 + $0x8] sm:$0xff] %vm854, %v915
          %924 = vst.msk [vmem:[#allocation3 + $0x10] sm:$0xff] %vm854, %v918
          %925 = vst.msk [vmem:[#allocation3 + $0x18] sm:$0xff] %vm854, %v920
        $region172: #{extended_encoder_forward.2} parent=159 // pred_fallthru
          _
        %v926 = vld [vmem:[#allocation2] sm:$0xff]
        %v927 = vld [vmem:[#allocation2 + $0x8] sm:$0xff]
        %v928 = vld [vmem:[#allocation2 + $0x10] sm:$0xff]
        %v929 = vld [vmem:[#allocation2 + $0x18] sm:$0xff]
        %v930 = vld [vmem:[#allocation3] sm:$0xff]
        %v931 = vld [vmem:[#allocation3 + $0x8] sm:$0xff]
        %v932 = vld [vmem:[#allocation3 + $0x10] sm:$0xff]
        %v933 = vld [vmem:[#allocation3 + $0x18] sm:$0xff]
        %v934 = vld [vmem:[%s670] sm:$0xff]
        %v935 = vld [vmem:[%s670 + $0x8] sm:$0xff]
        %v936 = vld [vmem:[%s670 + $0x10] sm:$0xff]
        %v937 = vld [vmem:[%s670 + $0x18] sm:$0xff]
        %v938 = vld [vmem:[%s677] sm:$0xff]
        %v939 = vld [vmem:[%s677 + $0x8] sm:$0xff]
        %v940 = vld [vmem:[%s677 + $0x10] sm:$0xff]
        %v941 = vld [vmem:[%s677 + $0x18] sm:$0xff]
        %v942 = vpack.c.bf16 %v934, %v934
        %v943 = vpack.c.bf16 %v926, %v926
        %v944 = vpack.c.bf16 %v930, %v930
        %vm945 = vcmask 64512
        %v947 = vsel %vm945, %v942, 0
        %vm949 = vcmask 1043456
        %v951 = vsel %vm949, %v943, 0
        %953 = vmatpush.bf16.msra.mxu0 0
        %954 = vmatpush.bf16.msra.mxu0 0
        %955 = vmatpush.bf16.msra.mxu0 0
        %956 = vmatpush.bf16.msra.mxu0 0
        %957 = vmatpush.bf16.msra.mxu0 0
        %958 = vmatpush.bf16.msra.mxu0 0
        %959 = vmatpush.bf16.msra.mxu0 0
        %960 = vmatpush.bf16.msra.mxu0 %v951
        %961 = vmatmul.bf16.gmra.mxu0 %v947
        %v962 = vpop.f32.mrf.mxu0
        %v963 = vadd.f32 %v938, %v962
        %v964 = vpop.f32.mrf.mxu0
        %965 = vdwg.mxu0
        %vm966 = vcmask 130048
        %v967 = vsel %vm966, %v963, -inf
        %968 = vmax.xlane.f32.xlu0 %v967
        %v969 = vpop.xlane.xlu0 %968
        %v970 = vsub.f32 %v963, %v969
        %v971 = vmul.f32 %v970, 1.442695
        %v972 = vpow.pop %v971
        %v973 = vsel %vm966, %v972, 0.0
        %974 = vadd.xlane.f32.xlu0 %v973
        %v975 = vpop.xlane.xlu0 %974
        %v976 = vrcp.pop %v975
        %v977 = vmul.f32 %v972, %v976
        %v978 = vpack.c.bf16 %v977, %v977
        %v980 = vsel %vm966, %v978, 0
        %v983 = vsel %vm966, %v944, 0
        %985 = vmatpush.bf16.xpose.msra.mxu0 0
        %986 = vmatpush.bf16.xpose.msra.mxu0 0
        %987 = vmatpush.bf16.xpose.msra.mxu0 0
        %988 = vmatpush.bf16.xpose.msra.mxu0 0
        %989 = vmatpush.bf16.xpose.msra.mxu0 0
        %990 = vmatpush.bf16.xpose.msra.mxu0 0
        %991 = vmatpush.bf16.xpose.msra.mxu0 0
        %992 = vmatpush.bf16.xpose.msra.mxu0 %v983
        %993 = vmatmul.bf16.gmra.mxu0 %v980
        %v994 = vpop.f32.mrf.mxu0
        %v995 = vadd.f32 0.0, %v994
        %v996 = vpop.f32.mrf.mxu0
        %997 = vdwg.mxu0
        %v998 = vpack.c.bf16 %v995, %v995
        %v999 = vld [vmem:[%s8] sm:$0xf]
        %v1000 = vpack.c.bf16 %v935, %v935
        %v1001 = vpack.c.bf16 %v927, %v927
        %v1002 = vpack.c.bf16 %v931, %v931
        %v1004 = vsel %vm945, %v1000, 0
        %v1007 = vsel %vm949, %v1001, 0
        %1009 = vmatpush.bf16.msra.mxu0 0
        %1010 = vmatpush.bf16.msra.mxu0 0
        %1011 = vmatpush.bf16.msra.mxu0 0
        %1012 = vmatpush.bf16.msra.mxu0 0
        %1013 = vmatpush.bf16.msra.mxu0 0
        %1014 = vmatpush.bf16.msra.mxu0 0
        %1015 = vmatpush.bf16.msra.mxu0 0
        %1016 = vmatpush.bf16.msra.mxu0 %v1007
        %1017 = vmatmul.bf16.gmra.mxu0 %v1004
        %v1018 = vpop.f32.mrf.mxu0
        %v1019 = vadd.f32 %v939, %v1018
        %v1020 = vpop.f32.mrf.mxu0
        %1021 = vdwg.mxu0
        %v1022 = vsel %vm966, %v1019, -inf
        %1023 = vmax.xlane.f32.xlu0 %v1022
        %v1024 = vpop.xlane.xlu0 %1023
        %v1025 = vsub.f32 %v1019, %v1024
        %v1026 = vmul.f32 %v1025, 1.442695
        %v1027 = vpow.pop %v1026
        %v1028 = vsel %vm966, %v1027, 0.0
        %1029 = vadd.xlane.f32.xlu0 %v1028
        %v1030 = vpop.xlane.xlu0 %1029
        %v1031 = vrcp.pop %v1030
        %v1032 = vmul.f32 %v1027, %v1031
        %v1033 = vpack.c.bf16 %v1032, %v1032
        %v1035 = vsel %vm966, %v1033, 0
        %v1038 = vsel %vm966, %v1002, 0
        %1040 = vmatpush.bf16.xpose.msra.mxu0 0
        %1041 = vmatpush.bf16.xpose.msra.mxu0 0
        %1042 = vmatpush.bf16.xpose.msra.mxu0 0
        %1043 = vmatpush.bf16.xpose.msra.mxu0 0
        %1044 = vmatpush.bf16.xpose.msra.mxu0 0
        %1045 = vmatpush.bf16.xpose.msra.mxu0 0
        %1046 = vmatpush.bf16.xpose.msra.mxu0 0
        %1047 = vmatpush.bf16.xpose.msra.mxu0 %v1038
        %1048 = vmatmul.bf16.gmra.mxu0 %v1035
        %v1049 = vpop.f32.mrf.mxu0
        %v1050 = vadd.f32 0.0, %v1049
        %v1051 = vpop.f32.mrf.mxu0
        %1052 = vdwg.mxu0
        %v1053 = vpack.c.bf16 %v1050, %v1050
        %v1054 = vld [vmem:[%s8 + $0x4] sm:$0xf]
        %v1056 = vsel %vm945, %v1053, 0
        %v1059 = vsel %vm949, %v1054, 0
        %1061 = vmatpush.bf16.msra.mxu0 0
        %1062 = vmatpush.bf16.msra.mxu0 0
        %1063 = vmatpush.bf16.msra.mxu0 0
        %1064 = vmatpush.bf16.msra.mxu0 0
        %1065 = vmatpush.bf16.msra.mxu0 0
        %1066 = vmatpush.bf16.msra.mxu0 0
        %1067 = vmatpush.bf16.msra.mxu0 0
        %1068 = vmatpush.bf16.msra.mxu0 %v1059
        %1069 = vmatmul.bf16.gmra.mxu0 %v1056
        %v1070 = vpop.f32.mrf.mxu0
        %v1071 = vadd.f32 0.0, %v1070
        %v1072 = vpop.f32.mrf.mxu0
        %1073 = vdwg.mxu0
        %v1075 = vsel %vm945, %v998, 0
        %v1078 = vsel %vm949, %v999, 0
        %1080 = vmatpush.bf16.msra.mxu0 0
        %1081 = vmatpush.bf16.msra.mxu0 0
        %1082 = vmatpush.bf16.msra.mxu0 0
        %1083 = vmatpush.bf16.msra.mxu0 0
        %1084 = vmatpush.bf16.msra.mxu0 0
        %1085 = vmatpush.bf16.msra.mxu0 0
        %1086 = vmatpush.bf16.msra.mxu0 0
        %1087 = vmatpush.bf16.msra.mxu0 %v1078
        %1088 = vmatmul.bf16.gmra.mxu0 %v1075
        %v1089 = vpop.f32.mrf.mxu0
        %v1090 = vadd.f32 %v1071, %v1089
        %v1091 = vpop.f32.mrf.mxu0
        %1092 = vdwg.mxu0
        %v1093 = vpack.c.bf16 %v936, %v936
        %v1094 = vpack.c.bf16 %v928, %v928
        %v1095 = vpack.c.bf16 %v932, %v932
        %v1097 = vsel %vm945, %v1093, 0
        %v1100 = vsel %vm949, %v1094, 0
        %1102 = vmatpush.bf16.msra.mxu0 0
        %1103 = vmatpush.bf16.msra.mxu0 0
        %1104 = vmatpush.bf16.msra.mxu0 0
        %1105 = vmatpush.bf16.msra.mxu0 0
        %1106 = vmatpush.bf16.msra.mxu0 0
        %1107 = vmatpush.bf16.msra.mxu0 0
        %1108 = vmatpush.bf16.msra.mxu0 0
        %1109 = vmatpush.bf16.msra.mxu0 %v1100
        %1110 = vmatmul.bf16.gmra.mxu0 %v1097
        %v1111 = vpop.f32.mrf.mxu0
        %v1112 = vadd.f32 %v940, %v1111
        %v1113 = vpop.f32.mrf.mxu0
        %1114 = vdwg.mxu0
        %v1115 = vsel %vm966, %v1112, -inf
        %1116 = vmax.xlane.f32.xlu0 %v1115
        %v1117 = vpop.xlane.xlu0 %1116
        %v1118 = vsub.f32 %v1112, %v1117
        %v1119 = vmul.f32 %v1118, 1.442695
        %v1120 = vpow.pop %v1119
        %v1121 = vsel %vm966, %v1120, 0.0
        %1122 = vadd.xlane.f32.xlu0 %v1121
        %v1123 = vpop.xlane.xlu0 %1122
        %v1124 = vrcp.pop %v1123
        %v1125 = vmul.f32 %v1120, %v1124
        %v1126 = vpack.c.bf16 %v1125, %v1125
        %v1128 = vsel %vm966, %v1126, 0
        %v1131 = vsel %vm966, %v1095, 0
        %1133 = vmatpush.bf16.xpose.msra.mxu0 0
        %1134 = vmatpush.bf16.xpose.msra.mxu0 0
        %1135 = vmatpush.bf16.xpose.msra.mxu0 0
        %1136 = vmatpush.bf16.xpose.msra.mxu0 0
        %1137 = vmatpush.bf16.xpose.msra.mxu0 0
        %1138 = vmatpush.bf16.xpose.msra.mxu0 0
        %1139 = vmatpush.bf16.xpose.msra.mxu0 0
        %1140 = vmatpush.bf16.xpose.msra.mxu0 %v1131
        %1141 = vmatmul.bf16.gmra.mxu0 %v1128
        %v1142 = vpop.f32.mrf.mxu0
        %v1143 = vadd.f32 0.0, %v1142
        %v1144 = vpop.f32.mrf.mxu0
        %1145 = vdwg.mxu0
        %v1146 = vpack.c.bf16 %v1143, %v1143
        %v1147 = vld [vmem:[%s8 + $0x8] sm:$0xf]
        %v1149 = vsel %vm945, %v1146, 0
        %v1152 = vsel %vm949, %v1147, 0
        %1154 = vmatpush.bf16.msra.mxu0 0
        %1155 = vmatpush.bf16.msra.mxu0 0
        %1156 = vmatpush.bf16.msra.mxu0 0
        %1157 = vmatpush.bf16.msra.mxu0 0
        %1158 = vmatpush.bf16.msra.mxu0 0
        %1159 = vmatpush.bf16.msra.mxu0 0
        %1160 = vmatpush.bf16.msra.mxu0 0
        %1161 = vmatpush.bf16.msra.mxu0 %v1152
        %1162 = vmatmul.bf16.gmra.mxu0 %v1149
        %v1163 = vpop.f32.mrf.mxu0
        %v1164 = vadd.f32 0.0, %v1163
        %v1165 = vpop.f32.mrf.mxu0
        %1166 = vdwg.mxu0
        %v1167 = vadd.f32 %v1090, %v1164
        %v1168 = vpack.c.bf16 %v937, %v937
        %v1169 = vpack.c.bf16 %v929, %v929
        %v1170 = vpack.c.bf16 %v933, %v933
        %v1172 = vsel %vm945, %v1168, 0
        %v1175 = vsel %vm949, %v1169, 0
        %1177 = vmatpush.bf16.msra.mxu0 0
        %1178 = vmatpush.bf16.msra.mxu0 0
        %1179 = vmatpush.bf16.msra.mxu0 0
        %1180 = vmatpush.bf16.msra.mxu0 0
        %1181 = vmatpush.bf16.msra.mxu0 0
        %1182 = vmatpush.bf16.msra.mxu0 0
        %1183 = vmatpush.bf16.msra.mxu0 0
        %1184 = vmatpush.bf16.msra.mxu0 %v1175
        %1185 = vmatmul.bf16.gmra.mxu0 %v1172
        %v1186 = vpop.f32.mrf.mxu0
        %v1187 = vadd.f32 %v941, %v1186
        %v1188 = vpop.f32.mrf.mxu0
        %1189 = vdwg.mxu0
        %v1190 = vsel %vm966, %v1187, -inf
        %1191 = vmax.xlane.f32.xlu0 %v1190
        %v1192 = vpop.xlane.xlu0 %1191
        %v1193 = vsub.f32 %v1187, %v1192
        %v1194 = vmul.f32 %v1193, 1.442695
        %v1195 = vpow.pop %v1194
        %v1196 = vsel %vm966, %v1195, 0.0
        %1197 = vadd.xlane.f32.xlu0 %v1196
        %v1198 = vpop.xlane.xlu0 %1197
        %v1199 = vrcp.pop %v1198
        %v1200 = vmul.f32 %v1195, %v1199
        %v1201 = vpack.c.bf16 %v1200, %v1200
        %v1203 = vsel %vm966, %v1201, 0
        %v1206 = vsel %vm966, %v1170, 0
        %1208 = vmatpush.bf16.xpose.msra.mxu0 0
        %1209 = vmatpush.bf16.xpose.msra.mxu0 0
        %1210 = vmatpush.bf16.xpose.msra.mxu0 0
        %1211 = vmatpush.bf16.xpose.msra.mxu0 0
        %1212 = vmatpush.bf16.xpose.msra.mxu0 0
        %1213 = vmatpush.bf16.xpose.msra.mxu0 0
        %1214 = vmatpush.bf16.xpose.msra.mxu0 0
        %1215 = vmatpush.bf16.xpose.msra.mxu0 %v1206
        %1216 = vmatmul.bf16.gmra.mxu0 %v1203
        %v1217 = vpop.f32.mrf.mxu0
        %v1218 = vadd.f32 0.0, %v1217
        %v1219 = vpop.f32.mrf.mxu0
        %1220 = vdwg.mxu0
        %v1221 = vpack.c.bf16 %v1218, %v1218
        %v1222 = vld [vmem:[%s8 + $0xc] sm:$0xf]
        %v1224 = vsel %vm945, %v1221, 0
        %v1227 = vsel %vm949, %v1222, 0
        %1229 = vmatpush.bf16.msra.mxu0 0
        %1230 = vmatpush.bf16.msra.mxu0 0
        %1231 = vmatpush.bf16.msra.mxu0 0
        %1232 = vmatpush.bf16.msra.mxu0 0
        %1233 = vmatpush.bf16.msra.mxu0 0
        %1234 = vmatpush.bf16.msra.mxu0 0
        %1235 = vmatpush.bf16.msra.mxu0 0
        %1236 = vmatpush.bf16.msra.mxu0 %v1227
        %1237 = vmatmul.bf16.gmra.mxu0 %v1224
        %v1238 = vpop.f32.mrf.mxu0
        %v1239 = vadd.f32 0.0, %v1238
        %v1240 = vpop.f32.mrf.mxu0
        %1241 = vdwg.mxu0
        %v1242 = vadd.f32 %v1167, %v1239
        %v1243 = vld [vmem:[%s9] sm:$0x1]
        %v1245 = vperm.slane %v1243, 0
        %v1247 = vadd.f32 %v1242, %v1245
        %v1248 = vld [vmem:[%s760] sm:$0xff]
        %v1249 = vadd.f32 %v1248, %v1247
        %v1250 = vld [vmem:[%s10] sm:$0x1]
        %v1251 = vld [vmem:[%s11] sm:$0x1]
        %vm1252 = vcmask 261120
        %v1253 = vsel %vm1252, %v1249, 0.0
        %1254 = vadd.xlane.f32.xlu0 %v1253
        %v1255 = vpop.xlane.xlu0 %1254
        %v1256 = vrcp.pop 32.0
        %v1257 = vmul.f32 32.0, %v1256
        %v1258 = vsub.f32 1.0, %v1257
        %v1259 = vmul.f32 %v1256, %v1258
        %v1260 = vadd.f32 %v1256, %v1259
        %vm1261 = vweird.f32 %v1256
        %v1262 = vsel %vm1261, %v1256, %v1260
        %v1263 = vmul.f32 %v1255, %v1262
        %v1264 = vsub.f32 %v1249, %v1263
        %v1265 = vmul.f32 %v1264, %v1264
        %v1266 = vsel %vm1252, %v1265, 0.0
        %1267 = vadd.xlane.f32.xlu0 %v1266
        %v1268 = vpop.xlane.xlu0 %1267
        %v1269 = vmul.f32 %v1268, %v1262
        %v1270 = vadd.f32 %v1269, 1e-06
        %v1271 = vrsqrt.pop %v1270
        %v1272 = vmul.f32 %v1271, %v1270
        %v1273 = vmul.f32 %v1272, %v1271
        %v1274 = vmul.f32 0.5, %v1273
        %v1275 = vsub.f32 1.5, %v1274
        %v1276 = vmul.f32 %v1271, %v1275
        %vm1277 = vweird.f32 %v1270
        %vm1278 = vweird.f32 %v1271
        %vm1279 = vmor %vm1277, %vm1278
        %v1280 = vsel %vm1279, %v1271, %v1276
        %v1281 = vmul.f32 %v1264, %v1280
        %v1283 = vperm.slane %v1250, 0
        %v1285 = vmul.f32 %v1281, %v1283
        %v1287 = vperm.slane %v1251, 0
        %v1289 = vadd.f32 %v1285, %v1287
        %v1290 = vpack.c.bf16 %v1289, %v1289
        %v1291 = vld [vmem:[%s12] sm:$0xf]
        %v1292 = vld [vmem:[%s12 + $0x4] sm:$0xf]
        %v1293 = vld [vmem:[%s12 + $0x8] sm:$0xf]
        %v1294 = vld [vmem:[%s12 + $0xc] sm:$0xf]
        %v1295 = vld [vmem:[%s13] sm:$0x1]
        %v1297 = vperm.slane %v1295, 0
        %v1303 = vunpack.c.l.b16 %v1291
        %v1304 = vunpack.c.l.b16 %v1292
        %v1305 = vunpack.c.l.b16 %v1293
        %v1306 = vunpack.c.l.b16 %v1294
        %v1307 = vpack.c.b16 %v1304, %v1303
        %v1308 = vpack.c.b16 %v1306, %v1305
        %v1312 = vsel %vm1252, %v1290, 0
        %1314 = vmatpush.bf16.msra.mxu0 0
        %1315 = vmatpush.bf16.msra.mxu0 0
        %1316 = vmatpush.bf16.msra.mxu0 0
        %1317 = vmatpush.bf16.msra.mxu0 0
        %1318 = vmatpush.bf16.msra.mxu0 0
        %1319 = vmatpush.bf16.msra.mxu0 0
        %1320 = vmatpush.bf16.msra.mxu0 %v1308
        %1321 = vmatpush.bf16.msra.mxu0 %v1307
        %1322 = vmatmul.bf16.gmra.mxu0 %v1312
        %v1323 = vpop.f32.mrf.mxu0
        %v1324 = vadd.f32 %v1297, %v1323
        %v1325 = vpop.f32.mrf.mxu0
        %1326 = vdwg.mxu0
        %v1327 = vmax.f32 %v1324, 0.0
        %v1328 = vpack.c.bf16 %v1327, %v1327
        %v1329 = vld [vmem:[%s14] sm:$0xf]
        %v1330 = vld [vmem:[%s14 + $0x4] sm:$0xf]
        %v1331 = vld [vmem:[%s14 + $0x8] sm:$0xf]
        %v1332 = vld [vmem:[%s14 + $0xc] sm:$0xf]
        %v1333 = vld [vmem:[%s14 + $0x10] sm:$0xf]
        %v1334 = vld [vmem:[%s14 + $0x14] sm:$0xf]
        %v1335 = vld [vmem:[%s14 + $0x18] sm:$0xf]
        %v1336 = vld [vmem:[%s14 + $0x1c] sm:$0xf]
        %v1337 = vld [vmem:[%s15] sm:$0x1]
        %v1339 = vperm.slane %v1337, 0
        %v1349 = vunpack.c.l.b16 %v1329
        %v1350 = vunpack.c.l.b16 %v1330
        %v1351 = vunpack.c.l.b16 %v1331
        %v1352 = vunpack.c.l.b16 %v1332
        %v1353 = vunpack.c.l.b16 %v1333
        %v1354 = vunpack.c.l.b16 %v1334
        %v1355 = vunpack.c.l.b16 %v1335
        %v1356 = vunpack.c.l.b16 %v1336
        %v1357 = vpack.c.b16 %v1350, %v1349
        %v1358 = vpack.c.b16 %v1352, %v1351
        %v1359 = vpack.c.b16 %v1354, %v1353
        %v1360 = vpack.c.b16 %v1356, %v1355
        %vm1365 = vcmask 523264
        %v1367 = vsel %vm1365, %v1328, 0
        %1369 = vmatpush.bf16.msra.mxu0 0
        %1370 = vmatpush.bf16.msra.mxu0 0
        %1371 = vmatpush.bf16.msra.mxu0 0
        %1372 = vmatpush.bf16.msra.mxu0 0
        %1373 = vmatpush.bf16.msra.mxu0 %v1360
        %1374 = vmatpush.bf16.msra.mxu0 %v1359
        %1375 = vmatpush.bf16.msra.mxu0 %v1358
        %1376 = vmatpush.bf16.msra.mxu0 %v1357
        %1377 = vmatmul.bf16.gmra.mxu0 %v1367
        %v1378 = vpop.f32.mrf.mxu0
        %v1379 = vadd.f32 %v1339, %v1378
        %v1380 = vpop.f32.mrf.mxu0
        %1381 = vdwg.mxu0
        %v1382 = vadd.f32 %v1289, %v1379
        %v1383 = vld [vmem:[%s16] sm:$0x1]
        %v1384 = vld [vmem:[%s17] sm:$0x1]
        %v1385 = vsel %vm1252, %v1382, 0.0
        %1386 = vadd.xlane.f32.xlu0 %v1385
        %v1387 = vpop.xlane.xlu0 %1386
        %v1388 = vmul.f32 %v1387, %v1262
        %v1389 = vsub.f32 %v1382, %v1388
        %v1390 = vmul.f32 %v1389, %v1389
        %v1391 = vsel %vm1252, %v1390, 0.0
        %1392 = vadd.xlane.f32.xlu0 %v1391
        %v1393 = vpop.xlane.xlu0 %1392
        %v1394 = vmul.f32 %v1393, %v1262
        %v1395 = vadd.f32 %v1394, 1e-06
        %v1396 = vrsqrt.pop %v1395
        %v1397 = vmul.f32 %v1396, %v1395
        %v1398 = vmul.f32 %v1397, %v1396
        %v1399 = vmul.f32 0.5, %v1398
        %v1400 = vsub.f32 1.5, %v1399
        %v1401 = vmul.f32 %v1396, %v1400
        %vm1402 = vweird.f32 %v1395
        %vm1403 = vweird.f32 %v1396
        %vm1404 = vmor %vm1402, %vm1403
        %v1405 = vsel %vm1404, %v1396, %v1401
        %v1406 = vmul.f32 %v1389, %v1405
        %v1408 = vperm.slane %v1383, 0
        %v1410 = vmul.f32 %v1406, %v1408
        %v1412 = vperm.slane %v1384, 0
        %v1414 = vadd.f32 %v1410, %v1412
        %1415 = vst.msk [vmem:[%s768] sm:$0xff] %vm1252, %v1414
        %p1416 = scmp.lt.s32.totalorder %s33, 1
        %s1417 = scalar_select %p1416, %s33, 1
        %p1418 = scmp.lt.s32.totalorder %s34, 1
        %s1419 = scalar_select %p1418, %s34, 1
        %s1420 = smul.addr %s1417, 2
        %s1421 = sadd.s32 %s1419, %s1420
        %s1422 = smul.addr %s1421, 8
        %s1423 = scalar_lea.vmem %s18, %s1422
        // Predicated region
        $region173: #{extended_encoder_forward.2} parent=159 // pred_check
          %p1424 = pneg %p465
        $region174: #{extended_encoder_forward.2} parent=159 // pred_check_branch
          %1426 = sbr.rel (%p1424) target = $region176
        $region175: #{extended_encoder_forward.2} parent=159 // pred_region
          _
        $region176: #{extended_encoder_forward.2} parent=159 // pred_fallthru
          _
      $region160: #{extended_encoder_forward.2} parent=5 // pred_fallthru
        _
      %p1427 = scmp.le.s32.totalorder 2, %s24
      // Predicated region
      $region177: #{extended_encoder_forward.2} parent=5 // pred_check
        %p1428 = pneg %p1427
      $region178: #{extended_encoder_forward.2} parent=5 // pred_check_branch
        %1430 = sbr.rel (%p1428) target = $region180
      $region179: #{extended_encoder_forward.2} parent=5 // pred_region
        %s1431 = ssub.s32 %s24, 2
        // Predicated region
        $region181: #{extended_encoder_forward.2} parent=179 // pred_check
          %p1432 = pneg %p471
        $region182: #{extended_encoder_forward.2} parent=179 // pred_check_branch
          %1434 = sbr.rel (%p1432) target = $region184
        $region183: #{extended_encoder_forward.2} parent=179 // pred_region
          %p1435 = scmp.lt.s32.totalorder %s35, 1
          %s1436 = scalar_select %p1435, %s35, 1
          %p1437 = scmp.lt.s32.totalorder %s36, 1
          %s1438 = scalar_select %p1437, %s36, 1
          %s1439 = smul.addr %s1436, 2
          %s1440 = sadd.s32 %s1438, %s1439
          %s1441 = smul.addr %s1440, 8
          %s1442 = scalar_lea.vmem %s18, %s1441
        $region184: #{extended_encoder_forward.2} parent=179 // pred_fallthru
          _
      $region180: #{extended_encoder_forward.2} parent=5 // pred_fallthru
        _
    $region6: #{extended_encoder_forward.2} parent=1 // loop_footer
      %s28 = sadd.s32 1, %s24
    $region7: #{extended_encoder_forward.2} parent=1 // loop_footer_branch
      %23 = sbr.rel target = $region3
    $region8: #{extended_encoder_forward.2} parent=1 // loop_exit
      _

</llo_original>
